<compile_context>
chip_gen: v7x
topology: tpu7x:2x2x1
jax: 0.10.0
libtpu: 0.0.40
codegen_flags: <defaults>
</compile_context>

<pallas_src>
import functools

import jax
import jax.numpy as jnp
from jax.experimental import pallas as pl
from jax.experimental.pallas import tpu as pltpu


# ----------------------------- Pallas kernel ---------------------------------
def _bigru_2layer_kernel(x_ref, wih0_ref, bi0_ref, whh0_ref, bhn0_ref,
                         wih1_ref, bi1_ref, whh1_ref, bhn1_ref,
                         out_ref,
                         gi0f_ref, gi0b_ref, gi1f_ref, gi1b_ref,
                         y0f_ref, y0b_ref,
                         *, T, B, H):
    """Fused 2-layer bidirectional GRU forward (packed gates, bf16 recurrence).

    x_ref    : (T*B, E)    time-major flat input (row t*B + b).
    wih0_ref : (2, E, 3H)  layer-0 W_ih^T per direction (f32).
    bi0_ref  : (2, 1, 3H)  b_ih + b_hh[r,z] folded, per direction.
    whh0_ref : (2, H, 3H)  layer-0 W_hh^T per direction (bf16).
    bhn0_ref : (2, 1, H)   layer-0 b_hh of the n gate per direction.
    wih1_ref : (4, H, 3H)  layer-1 W_ih^T blocks [f<-f, f<-b, b<-f, b<-b] (f32).
    bi1_ref  : (2, 1, 3H)  layer-1 folded input bias per direction.
    whh1_ref : (2, H, 3H)  layer-1 W_hh^T per direction (bf16).
    bhn1_ref : (2, 1, H)   layer-1 b_hh_n per direction.
    out_ref  : (2, B, H)   [fwd hidden after full sequence, bwd hidden at t=T-1].
    gi*_ref  : (T*B, 3H)   per-direction gate pre-activations (VMEM scratch).
    y0*_ref  : (T*B, H)    per-direction layer-0 outputs (VMEM scratch).
    """
    unroll = True if T <= 8 else 8          # cap unroll for general T

    def gru_cell(gi, gh, b_hn, h_prev):
        # gi, gh: (B, 3H) f32, packed gate order r|z|n (torch nn.GRU order).
        r = jax.nn.sigmoid(gi[:, 0 * H:1 * H] + gh[:, 0 * H:1 * H])
        z = jax.nn.sigmoid(gi[:, 1 * H:2 * H] + gh[:, 1 * H:2 * H])
        n = jnp.tanh(gi[:, 2 * H:3 * H] + r * (gh[:, 2 * H:3 * H] + b_hn))
        return (1.0 - z) * n + z * h_prev

    def run_layer(gif_ref, gib_ref, whh_ref, bhn_ref, y_store):
        # Hoist the (tiny, bf16) recurrence weights out of the loop so they stay
        # vreg-resident across every unrolled step.
        w_f = whh_ref[0]
        w_b = whh_ref[1]
        b_f = bhn_ref[0]
        b_b = bhn_ref[1]

        def step(t, carry):
            h_f, h_b = carry
            tau = T - 1 - t                              # bwd direction time index
            gi_f = gif_ref[pl.ds(t * B, B), :]           # (B, 3H)
            gi_b = gib_ref[pl.ds(tau * B, B), :]
            gh_f = jnp.dot(h_f.astype(jnp.bfloat16), w_f,
                           preferred_element_type=jnp.float32)
            gh_b = jnp.dot(h_b.astype(jnp.bfloat16), w_b,
                           preferred_element_type=jnp.float32)
            h_f = gru_cell(gi_f, gh_f, b_f, h_f)
            h_b = gru_cell(gi_b, gh_b, b_b, h_b)
            if y_store is not None:
                y_store(t, tau, h_f, h_b)
            return h_f, h_b

        h0 = jnp.zeros((B, H), jnp.float32)
        first = step(0, (h0, h0))                        # peeled: static indices
        last = jax.lax.fori_loop(1, T, step, first, unroll=unroll)
        return first, last

    # ---- layer-0 input projection (fused, off the serial path) ---------------
    x = x_ref[...]                                       # (T*B, E)
    gi0f_ref[...] = (jnp.dot(x, wih0_ref[0], preferred_element_type=jnp.float32)
                     + bi0_ref[0])
    gi0b_ref[...] = (jnp.dot(x, wih0_ref[1], preferred_element_type=jnp.float32)
                     + bi0_ref[1])

    # ---- layer 0 (stores every per-step output; layer 1 needs the sequence) ---
    def store0(t, tau, h_f, h_b):
        y0f_ref[pl.ds(t * B, B), :] = h_f
        y0b_ref[pl.ds(tau * B, B), :] = h_b

    run_layer(gi0f_ref, gi0b_ref, whh0_ref, bhn0_ref, store0)

    # ---- layer-1 input projection, hoisted out of the recurrence --------------
    y0f = y0f_ref[...]                                   # (T*B, H) fwd outputs
    y0b = y0b_ref[...]                                   # (T*B, H) bwd outputs
    gi1f_ref[...] = (jnp.dot(y0f, wih1_ref[0], preferred_element_type=jnp.float32)
                     + jnp.dot(y0b, wih1_ref[1], preferred_element_type=jnp.float32)
                     + bi1_ref[0])
    gi1b_ref[...] = (jnp.dot(y0f, wih1_ref[2], preferred_element_type=jnp.float32)
                     + jnp.dot(y0b, wih1_ref[3], preferred_element_type=jnp.float32)
                     + bi1_ref[1])

    # ---- layer 1: no per-step stores, only the two hiddens out[:, -1] needs ----
    first1, last1 = run_layer(gi1f_ref, gi1b_ref, whh1_ref, bhn1_ref, None)
    out_ref[1] = first1[1]     # bwd hidden at time T-1 (its first step)
    out_ref[0] = last1[0]      # fwd hidden after the whole sequence


# ----------------------- weight packing (once, off hot path) ------------------
def pack_gru_params(params, *, hidden_dim):
    """Pack nn.GRU-layout params (2-layer bidirectional, gate order r,z,n)."""
    H = hidden_dim
    assert all((l, d) in params for l in range(2) for d in range(2)), (
        "kernel implements the 2-layer bidirectional GRU config")

    def fold_bias(p):
        # b_ih + b_hh for r,z (they add linearly inside the activations);
        # b_hh_n must stay separate (it sits inside r * (...)).
        b = p["b_ih"] + jnp.concatenate(
            [p["b_hh"][:2 * H], jnp.zeros((H,), jnp.float32)])
        return b.reshape(1, 3 * H)

    def bhn(p):
        return p["b_hh"][2 * H:].reshape(1, H)

    l0 = [params[(0, d)] for d in range(2)]
    l1 = [params[(1, d)] for d in range(2)]

    wih1_blocks = []
    for p in l1:                                   # output direction
        for s in range(2):                         # input half: 0=fwd, 1=bwd
            wih1_blocks.append(p["w_ih"][:, s * H:(s + 1) * H].T)   # (H, 3H)

    return dict(
        wih0=jnp.stack([p["w_ih"].T for p in l0]),                       # (2,E,3H)
        bi0=jnp.stack([fold_bias(p) for p in l0]),                       # (2,1,3H)
        whh0=jnp.stack([p["w_hh"].T for p in l0]).astype(jnp.bfloat16),  # (2,H,3H)
        bhn0=jnp.stack([bhn(p) for p in l0]),                            # (2,1,H)
        wih1=jnp.stack(wih1_blocks),                                     # (4,H,3H)
        bi1=jnp.stack([fold_bias(p) for p in l1]),                       # (2,1,3H)
        whh1=jnp.stack([p["w_hh"].T for p in l1]).astype(jnp.bfloat16),  # (2,H,3H)
        bhn1=jnp.stack([bhn(p) for p in l1]),                            # (2,1,H)
    )


# --------------------------- Module wrapper -----------------------------------
def _full_spec(shape):
    zeros = (0,) * len(shape)
    return pl.BlockSpec(shape, lambda i, _z=zeros: _z)


@functools.partial(jax.jit, static_argnames=("hidden_dim",))
def bilstm_text_embedding_forward(x_bte, packed, *, hidden_dim):
    """BiLSTMTextEmbedding.forward (GRU, 2 layers, bidirectional, eval)."""
    B, T, E = x_bte.shape
    H = hidden_dim

    # Time-major flat input so per-step rows are contiguous: row = t*B + b.
    x_tm = jnp.transpose(x_bte, (1, 0, 2)).reshape(T * B, E).astype(jnp.float32)

    args = (x_tm, packed["wih0"], packed["bi0"], packed["whh0"], packed["bhn0"],
            packed["wih1"], packed["bi1"], packed["whh1"], packed["bhn1"])

    kernel = functools.partial(_bigru_2layer_kernel, T=T, B=B, H=H)
    out = pl.pallas_call(
        kernel,
        out_shape=jax.ShapeDtypeStruct((2, B, H), jnp.float32),
        grid=(1,),
        in_specs=[_full_spec(a.shape) for a in args],
        out_specs=_full_spec((2, B, H)),
        scratch_shapes=[
            pltpu.VMEM((T * B, 3 * H), jnp.float32),   # gi0 fwd
            pltpu.VMEM((T * B, 3 * H), jnp.float32),   # gi0 bwd
            pltpu.VMEM((T * B, 3 * H), jnp.float32),   # gi1 fwd
            pltpu.VMEM((T * B, 3 * H), jnp.float32),   # gi1 bwd
            pltpu.VMEM((T * B, H), jnp.float32),       # y0 fwd
            pltpu.VMEM((T * B, H), jnp.float32),       # y0 bwd
        ],
        compiler_params=pltpu.CompilerParams(
            dimension_semantics=("arbitrary",)),
    )(*args)

    # out[0] = fwd hidden at t=T-1, out[1] = bwd hidden at t=T-1.
    return jnp.concatenate([out[0], out[1]], axis=-1).astype(x_bte.dtype)


# ------------------------- param init + pure-JAX reference --------------------
def init_gru_params(key, embedding_dim, hidden_dim, num_layers, bidirectional):
    """Params with nn.GRU shapes: weight_ih/hh, bias_ih/hh per layer & direction
    (gate order r, z, n -> 3*H rows)."""
    params = {}
    num_dirs = 2 if bidirectional else 1
    scale = 1.0 / jnp.sqrt(hidden_dim)
    for layer in range(num_layers):
        in_dim = embedding_dim if layer == 0 else hidden_dim * num_dirs
        for d in range(num_dirs):
            key, k1, k2, k3, k4 = jax.random.split(key, 5)
            params[(layer, d)] = dict(
                w_ih=jax.random.uniform(k1, (3 * hidden_dim, in_dim),
                                        jnp.float32, -scale, scale),
                w_hh=jax.random.uniform(k2, (3 * hidden_dim, hidden_dim),
                                        jnp.float32, -scale, scale),
                b_ih=jax.random.uniform(k3, (3 * hidden_dim,),
                                        jnp.float32, -scale, scale),
                b_hh=jax.random.uniform(k4, (3 * hidden_dim,),
                                        jnp.float32, -scale, scale),
            )
    return params


def _gru_dir_ref(x_tbe, p, reverse):
    T, B, _ = x_tbe.shape
    H = p["w_hh"].shape[1]
    xs = x_tbe[::-1] if reverse else x_tbe

    def step(h, x_t):
        gi = x_t @ p["w_ih"].T + p["b_ih"]
        gh = h @ p["w_hh"].T + p["b_hh"]
        i_r, i_z, i_n = gi[:, :H], gi[:, H:2 * H], gi[:, 2 * H:]
        h_r, h_z, h_n = gh[:, :H], gh[:, H:2 * H], gh[:, 2 * H:]
        r = jax.nn.sigmoid(i_r + h_r)
        z = jax.nn.sigmoid(i_z + h_z)
        n = jnp.tanh(i_n + r * h_n)
        h_new = (1.0 - z) * n + z * h
        return h_new, h_new

    h0 = jnp.zeros((B, H), jnp.float32)
    _, outs = jax.lax.scan(step, h0, xs)
    return outs[::-1] if reverse else outs


def forward_ref(x_bte, params, *, hidden_dim, num_layers, bidirectional):
    x_tbe = jnp.transpose(x_bte, (1, 0, 2))
    num_dirs = 2 if bidirectional else 1
    inp = x_tbe
    for layer in range(num_layers):
        outs = [_gru_dir_ref(inp, params[(layer, d)], d == 1)
                for d in range(num_dirs)]
        inp = jnp.concatenate(outs, axis=-1) if num_dirs == 2 else outs[0]
    out = jnp.transpose(inp, (1, 0, 2))
    if bidirectional:
        return out[:, -1]
    return jnp.concatenate([out[:, -1, :hidden_dim], out[:, 0, hidden_dim:]],
                           axis=1)


# ----------------------------------- main --------------------------------------
if __name__ == "__main__":
    B, T, E, H = 2, 8, 16, 32
    NUM_LAYERS, BIDIRECTIONAL = 2, True   # BiLSTMTextEmbedding(H, E, 2, 0.0,
                                          #   bidirectional=True, rnn_type='GRU')

    key = jax.random.PRNGKey(0)
    k_x, k_p = jax.random.split(key)
    x = jax.random.normal(k_x, (B, T, E), dtype=jnp.float32)
    params = init_gru_params(k_p, E, H, NUM_LAYERS, BIDIRECTIONAL)
    packed = pack_gru_params(params, hidden_dim=H)   # once, off the hot path

    out = bilstm_text_embedding_forward(x, packed, hidden_dim=H)
    out = jax.block_until_ready(out)

    ref = forward_ref(x, params, hidden_dim=H, num_layers=NUM_LAYERS,
                      bidirectional=BIDIRECTIONAL)
    ref = jax.block_until_ready(ref)

    assert out.shape == (B, 2 * H), out.shape
    err = float(jnp.max(jnp.abs(out - ref)))
    # bf16 recurrence weights (f32 gate math / accumulation) -> looser tolerance
    # than the pure-f32 version; a semantic bug would show as O(0.3+) error.
    assert err < 5e-2, err
    print("KERNEL_OK")
</pallas_src>

<mosaic_0001>
module attributes {stable_mosaic.version = 11 : i64} {
  func.func @_bigru_2layer_kernel(%arg0: i32, %arg1: memref<16x16xf32, #tpu.memory_space<vmem>>, %arg2: memref<2x16x96xf32, #tpu.memory_space<vmem>>, %arg3: memref<2x1x96xf32, #tpu.memory_space<vmem>>, %arg4: memref<2x32x96xbf16, #tpu.memory_space<vmem>>, %arg5: memref<2x1x32xf32, #tpu.memory_space<vmem>>, %arg6: memref<4x32x96xf32, #tpu.memory_space<vmem>>, %arg7: memref<2x1x96xf32, #tpu.memory_space<vmem>>, %arg8: memref<2x32x96xbf16, #tpu.memory_space<vmem>>, %arg9: memref<2x1x32xf32, #tpu.memory_space<vmem>>, %arg10: memref<2x2x32xf32, #tpu.memory_space<vmem>>, %arg11: memref<16x96xf32, #tpu.memory_space<vmem>>, %arg12: memref<16x96xf32, #tpu.memory_space<vmem>>, %arg13: memref<16x96xf32, #tpu.memory_space<vmem>>, %arg14: memref<16x96xf32, #tpu.memory_space<vmem>>, %arg15: memref<16x32xf32, #tpu.memory_space<vmem>>, %arg16: memref<16x32xf32, #tpu.memory_space<vmem>>) attributes {dimension_semantics = [#tpu.dimension_semantics<arbitrary>], iteration_bounds = array<i64: 1>, scalar_prefetch = 0 : i64, scratch_operands = 6 : i64, tpu.core_type = #tpu.core_type<tc>, window_params = [{pipeline_mode = #tpu.pipeline_mode<synchronous>, transform_indices = @transform_0, window_bounds = array<i64: 16, 16>}, {pipeline_mode = #tpu.pipeline_mode<synchronous>, transform_indices = @transform_1, window_bounds = array<i64: 2, 16, 96>}, {pipeline_mode = #tpu.pipeline_mode<synchronous>, transform_indices = @transform_2, window_bounds = array<i64: 2, 1, 96>}, {pipeline_mode = #tpu.pipeline_mode<synchronous>, transform_indices = @transform_3, window_bounds = array<i64: 2, 32, 96>}, {pipeline_mode = #tpu.pipeline_mode<synchronous>, transform_indices = @transform_4, window_bounds = array<i64: 2, 1, 32>}, {pipeline_mode = #tpu.pipeline_mode<synchronous>, transform_indices = @transform_5, window_bounds = array<i64: 4, 32, 96>}, {pipeline_mode = #tpu.pipeline_mode<synchronous>, transform_indices = @transform_6, window_bounds = array<i64: 2, 1, 96>}, {pipeline_mode = #tpu.pipeline_mode<synchronous>, transform_indices = @transform_7, window_bounds = array<i64: 2, 32, 96>}, {pipeline_mode = #tpu.pipeline_mode<synchronous>, transform_indices = @transform_8, window_bounds = array<i64: 2, 1, 32>}, {pipeline_mode = #tpu.pipeline_mode<synchronous>, transform_indices = @transform_9, window_bounds = array<i64: 2, 2, 32>}]} {
    %c0 = arith.constant 0 : index
    %c0_0 = arith.constant 0 : index
    %0 = vector.load %arg1[%c0, %c0_0] : memref<16x16xf32, #tpu.memory_space<vmem>>, vector<16x16xf32>
    %c0_1 = arith.constant 0 : index
    %c0_2 = arith.constant 0 : index
    %c0_3 = arith.constant 0 : index
    %1 = vector.load %arg2[%c0_1, %c0_2, %c0_3] : memref<2x16x96xf32, #tpu.memory_space<vmem>>, vector<1x16x96xf32>
    %2 = vector.shape_cast %1 : vector<1x16x96xf32> to vector<16x96xf32>
    %cst = arith.constant dense<0.000000e+00> : vector<16x96xf32>
    %3 = tpu.matmul %0, %2, %cst {dimension_numbers = #tpu.dot_dimension_numbers<[1], [0], [0], [1], [0, 0, 1, 1], [], []>} : vector<16x16xf32>, vector<16x96xf32>, vector<16x96xf32> -> vector<16x96xf32>
    %c0_4 = arith.constant 0 : index
    %c0_5 = arith.constant 0 : index
    %c0_6 = arith.constant 0 : index
    %4 = vector.load %arg3[%c0_4, %c0_5, %c0_6] : memref<2x1x96xf32, #tpu.memory_space<vmem>>, vector<1x1x96xf32>
    %5 = vector.shape_cast %4 : vector<1x1x96xf32> to vector<1x96xf32>
    %6 = vector.broadcast %5 : vector<1x96xf32> to vector<16x96xf32>
    %7 = arith.addf %3, %6 : vector<16x96xf32>
    %c0_7 = arith.constant 0 : index
    %c0_8 = arith.constant 0 : index
    %8 = vector.load %arg11[%c0_7, %c0_8] : memref<16x96xf32, #tpu.memory_space<vmem>>, vector<16x96xf32>
    tpu.vector_store %arg11[%c0_7, %c0_8], %7 {strides = array<i32>} : memref<16x96xf32, #tpu.memory_space<vmem>>, vector<16x96xf32>,
    %c1 = arith.constant 1 : index
    %c0_9 = arith.constant 0 : index
    %c0_10 = arith.constant 0 : index
    %9 = vector.load %arg2[%c1, %c0_9, %c0_10] : memref<2x16x96xf32, #tpu.memory_space<vmem>>, vector<1x16x96xf32>
    %10 = vector.shape_cast %9 : vector<1x16x96xf32> to vector<16x96xf32>
    %cst_11 = arith.constant dense<0.000000e+00> : vector<16x96xf32>
    %11 = tpu.matmul %0, %10, %cst_11 {dimension_numbers = #tpu.dot_dimension_numbers<[1], [0], [0], [1], [0, 0, 1, 1], [], []>} : vector<16x16xf32>, vector<16x96xf32>, vector<16x96xf32> -> vector<16x96xf32>
    %c1_12 = arith.constant 1 : index
    %c0_13 = arith.constant 0 : index
    %c0_14 = arith.constant 0 : index
    %12 = vector.load %arg3[%c1_12, %c0_13, %c0_14] : memref<2x1x96xf32, #tpu.memory_space<vmem>>, vector<1x1x96xf32>
    %13 = vector.shape_cast %12 : vector<1x1x96xf32> to vector<1x96xf32>
    %14 = vector.broadcast %13 : vector<1x96xf32> to vector<16x96xf32>
    %15 = arith.addf %11, %14 : vector<16x96xf32>
    %c0_15 = arith.constant 0 : index
    %c0_16 = arith.constant 0 : index
    %16 = vector.load %arg12[%c0_15, %c0_16] : memref<16x96xf32, #tpu.memory_space<vmem>>, vector<16x96xf32>
    tpu.vector_store %arg12[%c0_15, %c0_16], %15 {strides = array<i32>} : memref<16x96xf32, #tpu.memory_space<vmem>>, vector<16x96xf32>,
    %c0_17 = arith.constant 0 : index
    %c0_18 = arith.constant 0 : index
    %c0_19 = arith.constant 0 : index
    %17 = vector.load %arg4[%c0_17, %c0_18, %c0_19] : memref<2x32x96xbf16, #tpu.memory_space<vmem>>, vector<1x32x96xbf16>
    %18 = vector.shape_cast %17 : vector<1x32x96xbf16> to vector<32x96xbf16>
    %c1_20 = arith.constant 1 : index
    %c0_21 = arith.constant 0 : index
    %c0_22 = arith.constant 0 : index
    %19 = vector.load %arg4[%c1_20, %c0_21, %c0_22] : memref<2x32x96xbf16, #tpu.memory_space<vmem>>, vector<1x32x96xbf16>
    %20 = vector.shape_cast %19 : vector<1x32x96xbf16> to vector<32x96xbf16>
    %c0_23 = arith.constant 0 : index
    %c0_24 = arith.constant 0 : index
    %c0_25 = arith.constant 0 : index
    %21 = vector.load %arg5[%c0_23, %c0_24, %c0_25] : memref<2x1x32xf32, #tpu.memory_space<vmem>>, vector<1x1x32xf32>
    %22 = vector.shape_cast %21 : vector<1x1x32xf32> to vector<1x32xf32>
    %c1_26 = arith.constant 1 : index
    %c0_27 = arith.constant 0 : index
    %c0_28 = arith.constant 0 : index
    %23 = vector.load %arg5[%c1_26, %c0_27, %c0_28] : memref<2x1x32xf32, #tpu.memory_space<vmem>>, vector<1x1x32xf32>
    %24 = vector.shape_cast %23 : vector<1x1x32xf32> to vector<1x32xf32>
    %cst_29 = arith.constant 0.000000e+00 : f32
    %25 = vector.broadcast %cst_29 : f32 to vector<2x32xf32>
    %c0_30 = arith.constant 0 : index
    %c0_31 = arith.constant 0 : index
    %26 = vector.load %arg11[%c0_30, %c0_31] : memref<16x96xf32, #tpu.memory_space<vmem>>, vector<2x96xf32>
    %c14 = arith.constant 14 : index
    %c0_32 = arith.constant 0 : index
    %27 = vector.load %arg12[%c14, %c0_32] : memref<16x96xf32, #tpu.memory_space<vmem>>, vector<2x96xf32>
    %28 = arith.truncf %25 : vector<2x32xf32> to vector<2x32xbf16>
    %cst_33 = arith.constant dense<0.000000e+00> : vector<2x96xf32>
    %29 = tpu.matmul %28, %18, %cst_33 {dimension_numbers = #tpu.dot_dimension_numbers<[1], [0], [0], [1], [0, 0, 1, 1], [], []>} : vector<2x32xbf16>, vector<32x96xbf16>, vector<2x96xf32> -> vector<2x96xf32>
    %30 = arith.truncf %25 : vector<2x32xf32> to vector<2x32xbf16>
    %cst_34 = arith.constant dense<0.000000e+00> : vector<2x96xf32>
    %31 = tpu.matmul %30, %20, %cst_34 {dimension_numbers = #tpu.dot_dimension_numbers<[1], [0], [0], [1], [0, 0, 1, 1], [], []>} : vector<2x32xbf16>, vector<32x96xbf16>, vector<2x96xf32> -> vector<2x96xf32>
    %32 = vector.extract_strided_slice %26 {offsets = [0, 0], sizes = [2, 32], strides = [1, 1]} : vector<2x96xf32> to vector<2x32xf32>
    %33 = vector.extract_strided_slice %29 {offsets = [0, 0], sizes = [2, 32], strides = [1, 1]} : vector<2x96xf32> to vector<2x32xf32>
    %34 = arith.addf %32, %33 : vector<2x32xf32>
    %35 = arith.negf %34 : vector<2x32xf32>
    %36 = math.exp %35 : vector<2x32xf32>
    %cst_35 = arith.constant 1.000000e+00 : f32
    %37 = vector.broadcast %cst_35 : f32 to vector<2x32xf32>
    %38 = arith.addf %37, %36 : vector<2x32xf32>
    %39 = arith.divf %37, %38 : vector<2x32xf32>
    %40 = vector.extract_strided_slice %26 {offsets = [0, 32], sizes = [2, 32], strides = [1, 1]} : vector<2x96xf32> to vector<2x32xf32>
    %41 = vector.extract_strided_slice %29 {offsets = [0, 32], sizes = [2, 32], strides = [1, 1]} : vector<2x96xf32> to vector<2x32xf32>
    %42 = arith.addf %40, %41 : vector<2x32xf32>
    %43 = arith.negf %42 : vector<2x32xf32>
    %44 = math.exp %43 : vector<2x32xf32>
    %cst_36 = arith.constant 1.000000e+00 : f32
    %45 = vector.broadcast %cst_36 : f32 to vector<2x32xf32>
    %46 = arith.addf %45, %44 : vector<2x32xf32>
    %47 = arith.divf %45, %46 : vector<2x32xf32>
    %48 = vector.extract_strided_slice %26 {offsets = [0, 64], sizes = [2, 32], strides = [1, 1]} : vector<2x96xf32> to vector<2x32xf32>
    %49 = vector.extract_strided_slice %29 {offsets = [0, 64], sizes = [2, 32], strides = [1, 1]} : vector<2x96xf32> to vector<2x32xf32>
    %50 = vector.broadcast %22 : vector<1x32xf32> to vector<2x32xf32>
    %51 = arith.addf %49, %50 : vector<2x32xf32>
    %52 = arith.mulf %39, %51 : vector<2x32xf32>
    %53 = arith.addf %48, %52 : vector<2x32xf32>
    %54 = math.tanh %53 : vector<2x32xf32>
    %cst_37 = arith.constant 1.000000e+00 : f32
    %55 = vector.broadcast %cst_37 : f32 to vector<2x32xf32>
    %56 = arith.subf %55, %47 : vector<2x32xf32>
    %57 = arith.mulf %56, %54 : vector<2x32xf32>
    %58 = arith.mulf %47, %25 : vector<2x32xf32>
    %59 = arith.addf %57, %58 : vector<2x32xf32>
    %60 = vector.extract_strided_slice %27 {offsets = [0, 0], sizes = [2, 32], strides = [1, 1]} : vector<2x96xf32> to vector<2x32xf32>
    %61 = vector.extract_strided_slice %31 {offsets = [0, 0], sizes = [2, 32], strides = [1, 1]} : vector<2x96xf32> to vector<2x32xf32>
    %62 = arith.addf %60, %61 : vector<2x32xf32>
    %63 = arith.negf %62 : vector<2x32xf32>
    %64 = math.exp %63 : vector<2x32xf32>
    %cst_38 = arith.constant 1.000000e+00 : f32
    %65 = vector.broadcast %cst_38 : f32 to vector<2x32xf32>
    %66 = arith.addf %65, %64 : vector<2x32xf32>
    %67 = arith.divf %65, %66 : vector<2x32xf32>
    %68 = vector.extract_strided_slice %27 {offsets = [0, 32], sizes = [2, 32], strides = [1, 1]} : vector<2x96xf32> to vector<2x32xf32>
    %69 = vector.extract_strided_slice %31 {offsets = [0, 32], sizes = [2, 32], strides = [1, 1]} : vector<2x96xf32> to vector<2x32xf32>
    %70 = arith.addf %68, %69 : vector<2x32xf32>
    %71 = arith.negf %70 : vector<2x32xf32>
    %72 = math.exp %71 : vector<2x32xf32>
    %cst_39 = arith.constant 1.000000e+00 : f32
    %73 = vector.broadcast %cst_39 : f32 to vector<2x32xf32>
    %74 = arith.addf %73, %72 : vector<2x32xf32>
    %75 = arith.divf %73, %74 : vector<2x32xf32>
    %76 = vector.extract_strided_slice %27 {offsets = [0, 64], sizes = [2, 32], strides = [1, 1]} : vector<2x96xf32> to vector<2x32xf32>
    %77 = vector.extract_strided_slice %31 {offsets = [0, 64], sizes = [2, 32], strides = [1, 1]} : vector<2x96xf32> to vector<2x32xf32>
    %78 = vector.broadcast %24 : vector<1x32xf32> to vector<2x32xf32>
    %79 = arith.addf %77, %78 : vector<2x32xf32>
    %80 = arith.mulf %67, %79 : vector<2x32xf32>
    %81 = arith.addf %76, %80 : vector<2x32xf32>
    %82 = math.tanh %81 : vector<2x32xf32>
    %cst_40 = arith.constant 1.000000e+00 : f32
    %83 = vector.broadcast %cst_40 : f32 to vector<2x32xf32>
    %84 = arith.subf %83, %75 : vector<2x32xf32>
    %85 = arith.mulf %84, %82 : vector<2x32xf32>
    %86 = arith.mulf %75, %25 : vector<2x32xf32>
    %87 = arith.addf %85, %86 : vector<2x32xf32>
    %c0_41 = arith.constant 0 : index
    %c0_42 = arith.constant 0 : index
    %88 = vector.load %arg15[%c0_41, %c0_42] : memref<16x32xf32, #tpu.memory_space<vmem>>, vector<2x32xf32>
    tpu.vector_store %arg15[%c0_41, %c0_42], %59 {strides = array<i32>} : memref<16x32xf32, #tpu.memory_space<vmem>>, vector<2x32xf32>,
    %c14_43 = arith.constant 14 : index
    %c0_44 = arith.constant 0 : index
    %89 = vector.load %arg16[%c14_43, %c0_44] : memref<16x32xf32, #tpu.memory_space<vmem>>, vector<2x32xf32>
    tpu.vector_store %arg16[%c14_43, %c0_44], %87 {strides = array<i32>} : memref<16x32xf32, #tpu.memory_space<vmem>>, vector<2x32xf32>,
    %c1_i32 = arith.constant 1 : i32
    %c7_i32 = arith.constant 7 : i32
    %90 = arith.subi %c7_i32, %c1_i32 : i32
    %c2_i32 = arith.constant 2 : i32
    %91 = arith.muli %c1_i32, %c2_i32 : i32
    %92 = arith.index_cast %91 : i32 to index
    %c0_45 = arith.constant 0 : index
    %93 = vector.load %arg11[%92, %c0_45] : memref<16x96xf32, #tpu.memory_space<vmem>>, vector<2x96xf32>
    %c2_i32_46 = arith.constant 2 : i32
    %94 = arith.muli %90, %c2_i32_46 : i32
    %95 = arith.index_cast %94 : i32 to index
    %c0_47 = arith.constant 0 : index
    %96 = vector.load %arg12[%95, %c0_47] : memref<16x96xf32, #tpu.memory_space<vmem>>, vector<2x96xf32>
    %97 = arith.truncf %59 : vector<2x32xf32> to vector<2x32xbf16>
    %cst_48 = arith.constant dense<0.000000e+00> : vector<2x96xf32>
    %98 = tpu.matmul %97, %18, %cst_48 {dimension_numbers = #tpu.dot_dimension_numbers<[1], [0], [0], [1], [0, 0, 1, 1], [], []>} : vector<2x32xbf16>, vector<32x96xbf16>, vector<2x96xf32> -> vector<2x96xf32>
    %99 = arith.truncf %87 : vector<2x32xf32> to vector<2x32xbf16>
    %cst_49 = arith.constant dense<0.000000e+00> : vector<2x96xf32>
    %100 = tpu.matmul %99, %20, %cst_49 {dimension_numbers = #tpu.dot_dimension_numbers<[1], [0], [0], [1], [0, 0, 1, 1], [], []>} : vector<2x32xbf16>, vector<32x96xbf16>, vector<2x96xf32> -> vector<2x96xf32>
    %101 = vector.extract_strided_slice %93 {offsets = [0, 0], sizes = [2, 32], strides = [1, 1]} : vector<2x96xf32> to vector<2x32xf32>
    %102 = vector.extract_strided_slice %98 {offsets = [0, 0], sizes = [2, 32], strides = [1, 1]} : vector<2x96xf32> to vector<2x32xf32>
    %103 = arith.addf %101, %102 : vector<2x32xf32>
    %104 = arith.negf %103 : vector<2x32xf32>
    %105 = math.exp %104 : vector<2x32xf32>
    %cst_50 = arith.constant 1.000000e+00 : f32
    %106 = vector.broadcast %cst_50 : f32 to vector<2x32xf32>
    %107 = arith.addf %106, %105 : vector<2x32xf32>
    %108 = arith.divf %106, %107 : vector<2x32xf32>
    %109 = vector.extract_strided_slice %93 {offsets = [0, 32], sizes = [2, 32], strides = [1, 1]} : vector<2x96xf32> to vector<2x32xf32>
    %110 = vector.extract_strided_slice %98 {offsets = [0, 32], sizes = [2, 32], strides = [1, 1]} : vector<2x96xf32> to vector<2x32xf32>
    %111 = arith.addf %109, %110 : vector<2x32xf32>
    %112 = arith.negf %111 : vector<2x32xf32>
    %113 = math.exp %112 : vector<2x32xf32>
    %cst_51 = arith.constant 1.000000e+00 : f32
    %114 = vector.broadcast %cst_51 : f32 to vector<2x32xf32>
    %115 = arith.addf %114, %113 : vector<2x32xf32>
    %116 = arith.divf %114, %115 : vector<2x32xf32>
    %117 = vector.extract_strided_slice %93 {offsets = [0, 64], sizes = [2, 32], strides = [1, 1]} : vector<2x96xf32> to vector<2x32xf32>
    %118 = vector.extract_strided_slice %98 {offsets = [0, 64], sizes = [2, 32], strides = [1, 1]} : vector<2x96xf32> to vector<2x32xf32>
    %119 = vector.broadcast %22 : vector<1x32xf32> to vector<2x32xf32>
    %120 = arith.addf %118, %119 : vector<2x32xf32>
    %121 = arith.mulf %108, %120 : vector<2x32xf32>
    %122 = arith.addf %117, %121 : vector<2x32xf32>
    %123 = math.tanh %122 : vector<2x32xf32>
    %cst_52 = arith.constant 1.000000e+00 : f32
    %124 = vector.broadcast %cst_52 : f32 to vector<2x32xf32>
    %125 = arith.subf %124, %116 : vector<2x32xf32>
    %126 = arith.mulf %125, %123 : vector<2x32xf32>
    %127 = arith.mulf %116, %59 : vector<2x32xf32>
    %128 = arith.addf %126, %127 : vector<2x32xf32>
    %129 = vector.extract_strided_slice %96 {offsets = [0, 0], sizes = [2, 32], strides = [1, 1]} : vector<2x96xf32> to vector<2x32xf32>
    %130 = vector.extract_strided_slice %100 {offsets = [0, 0], sizes = [2, 32], strides = [1, 1]} : vector<2x96xf32> to vector<2x32xf32>
    %131 = arith.addf %129, %130 : vector<2x32xf32>
    %132 = arith.negf %131 : vector<2x32xf32>
    %133 = math.exp %132 : vector<2x32xf32>
    %cst_53 = arith.constant 1.000000e+00 : f32
    %134 = vector.broadcast %cst_53 : f32 to vector<2x32xf32>
    %135 = arith.addf %134, %133 : vector<2x32xf32>
    %136 = arith.divf %134, %135 : vector<2x32xf32>
    %137 = vector.extract_strided_slice %96 {offsets = [0, 32], sizes = [2, 32], strides = [1, 1]} : vector<2x96xf32> to vector<2x32xf32>
    %138 = vector.extract_strided_slice %100 {offsets = [0, 32], sizes = [2, 32], strides = [1, 1]} : vector<2x96xf32> to vector<2x32xf32>
    %139 = arith.addf %137, %138 : vector<2x32xf32>
    %140 = arith.negf %139 : vector<2x32xf32>
    %141 = math.exp %140 : vector<2x32xf32>
    %cst_54 = arith.constant 1.000000e+00 : f32
    %142 = vector.broadcast %cst_54 : f32 to vector<2x32xf32>
    %143 = arith.addf %142, %141 : vector<2x32xf32>
    %144 = arith.divf %142, %143 : vector<2x32xf32>
    %145 = vector.extract_strided_slice %96 {offsets = [0, 64], sizes = [2, 32], strides = [1, 1]} : vector<2x96xf32> to vector<2x32xf32>
    %146 = vector.extract_strided_slice %100 {offsets = [0, 64], sizes = [2, 32], strides = [1, 1]} : vector<2x96xf32> to vector<2x32xf32>
    %147 = vector.broadcast %24 : vector<1x32xf32> to vector<2x32xf32>
    %148 = arith.addf %146, %147 : vector<2x32xf32>
    %149 = arith.mulf %136, %148 : vector<2x32xf32>
    %150 = arith.addf %145, %149 : vector<2x32xf32>
    %151 = math.tanh %150 : vector<2x32xf32>
    %cst_55 = arith.constant 1.000000e+00 : f32
    %152 = vector.broadcast %cst_55 : f32 to vector<2x32xf32>
    %153 = arith.subf %152, %144 : vector<2x32xf32>
    %154 = arith.mulf %153, %151 : vector<2x32xf32>
    %155 = arith.mulf %144, %87 : vector<2x32xf32>
    %156 = arith.addf %154, %155 : vector<2x32xf32>
    %c2_i32_56 = arith.constant 2 : i32
    %157 = arith.muli %c1_i32, %c2_i32_56 : i32
    %158 = arith.index_cast %157 : i32 to index
    %c0_57 = arith.constant 0 : index
    %159 = vector.load %arg15[%158, %c0_57] : memref<16x32xf32, #tpu.memory_space<vmem>>, vector<2x32xf32>
    tpu.vector_store %arg15[%158, %c0_57], %128 {strides = array<i32>} : memref<16x32xf32, #tpu.memory_space<vmem>>, vector<2x32xf32>,
    %c2_i32_58 = arith.constant 2 : i32
    %160 = arith.muli %90, %c2_i32_58 : i32
    %161 = arith.index_cast %160 : i32 to index
    %c0_59 = arith.constant 0 : index
    %162 = vector.load %arg16[%161, %c0_59] : memref<16x32xf32, #tpu.memory_space<vmem>>, vector<2x32xf32>
    tpu.vector_store %arg16[%161, %c0_59], %156 {strides = array<i32>} : memref<16x32xf32, #tpu.memory_space<vmem>>, vector<2x32xf32>,
    %c2_i32_60 = arith.constant 2 : i32
    %c7_i32_61 = arith.constant 7 : i32
    %163 = arith.subi %c7_i32_61, %c2_i32_60 : i32
    %c2_i32_62 = arith.constant 2 : i32
    %164 = arith.muli %c2_i32_60, %c2_i32_62 : i32
    %165 = arith.index_cast %164 : i32 to index
    %c0_63 = arith.constant 0 : index
    %166 = vector.load %arg11[%165, %c0_63] : memref<16x96xf32, #tpu.memory_space<vmem>>, vector<2x96xf32>
    %c2_i32_64 = arith.constant 2 : i32
    %167 = arith.muli %163, %c2_i32_64 : i32
    %168 = arith.index_cast %167 : i32 to index
    %c0_65 = arith.constant 0 : index
    %169 = vector.load %arg12[%168, %c0_65] : memref<16x96xf32, #tpu.memory_space<vmem>>, vector<2x96xf32>
    %170 = arith.truncf %128 : vector<2x32xf32> to vector<2x32xbf16>
    %cst_66 = arith.constant dense<0.000000e+00> : vector<2x96xf32>
    %171 = tpu.matmul %170, %18, %cst_66 {dimension_numbers = #tpu.dot_dimension_numbers<[1], [0], [0], [1], [0, 0, 1, 1], [], []>} : vector<2x32xbf16>, vector<32x96xbf16>, vector<2x96xf32> -> vector<2x96xf32>
    %172 = arith.truncf %156 : vector<2x32xf32> to vector<2x32xbf16>
    %cst_67 = arith.constant dense<0.000000e+00> : vector<2x96xf32>
    %173 = tpu.matmul %172, %20, %cst_67 {dimension_numbers = #tpu.dot_dimension_numbers<[1], [0], [0], [1], [0, 0, 1, 1], [], []>} : vector<2x32xbf16>, vector<32x96xbf16>, vector<2x96xf32> -> vector<2x96xf32>
    %174 = vector.extract_strided_slice %166 {offsets = [0, 0], sizes = [2, 32], strides = [1, 1]} : vector<2x96xf32> to vector<2x32xf32>
    %175 = vector.extract_strided_slice %171 {offsets = [0, 0], sizes = [2, 32], strides = [1, 1]} : vector<2x96xf32> to vector<2x32xf32>
    %176 = arith.addf %174, %175 : vector<2x32xf32>
    %177 = arith.negf %176 : vector<2x32xf32>
    %178 = math.exp %177 : vector<2x32xf32>
    %cst_68 = arith.constant 1.000000e+00 : f32
    %179 = vector.broadcast %cst_68 : f32 to vector<2x32xf32>
    %180 = arith.addf %179, %178 : vector<2x32xf32>
    %181 = arith.divf %179, %180 : vector<2x32xf32>
    %182 = vector.extract_strided_slice %166 {offsets = [0, 32], sizes = [2, 32], strides = [1, 1]} : vector<2x96xf32> to vector<2x32xf32>
    %183 = vector.extract_strided_slice %171 {offsets = [0, 32], sizes = [2, 32], strides = [1, 1]} : vector<2x96xf32> to vector<2x32xf32>
    %184 = arith.addf %182, %183 : vector<2x32xf32>
    %185 = arith.negf %184 : vector<2x32xf32>
    %186 = math.exp %185 : vector<2x32xf32>
    %cst_69 = arith.constant 1.000000e+00 : f32
    %187 = vector.broadcast %cst_69 : f32 to vector<2x32xf32>
    %188 = arith.addf %187, %186 : vector<2x32xf32>
    %189 = arith.divf %187, %188 : vector<2x32xf32>
    %190 = vector.extract_strided_slice %166 {offsets = [0, 64], sizes = [2, 32], strides = [1, 1]} : vector<2x96xf32> to vector<2x32xf32>
    %191 = vector.extract_strided_slice %171 {offsets = [0, 64], sizes = [2, 32], strides = [1, 1]} : vector<2x96xf32> to vector<2x32xf32>
    %192 = vector.broadcast %22 : vector<1x32xf32> to vector<2x32xf32>
    %193 = arith.addf %191, %192 : vector<2x32xf32>
    %194 = arith.mulf %181, %193 : vector<2x32xf32>
    %195 = arith.addf %190, %194 : vector<2x32xf32>
    %196 = math.tanh %195 : vector<2x32xf32>
    %cst_70 = arith.constant 1.000000e+00 : f32
    %197 = vector.broadcast %cst_70 : f32 to vector<2x32xf32>
    %198 = arith.subf %197, %189 : vector<2x32xf32>
    %199 = arith.mulf %198, %196 : vector<2x32xf32>
    %200 = arith.mulf %189, %128 : vector<2x32xf32>
    %201 = arith.addf %199, %200 : vector<2x32xf32>
    %202 = vector.extract_strided_slice %169 {offsets = [0, 0], sizes = [2, 32], strides = [1, 1]} : vector<2x96xf32> to vector<2x32xf32>
    %203 = vector.extract_strided_slice %173 {offsets = [0, 0], sizes = [2, 32], strides = [1, 1]} : vector<2x96xf32> to vector<2x32xf32>
    %204 = arith.addf %202, %203 : vector<2x32xf32>
    %205 = arith.negf %204 : vector<2x32xf32>
    %206 = math.exp %205 : vector<2x32xf32>
    %cst_71 = arith.constant 1.000000e+00 : f32
    %207 = vector.broadcast %cst_71 : f32 to vector<2x32xf32>
    %208 = arith.addf %207, %206 : vector<2x32xf32>
    %209 = arith.divf %207, %208 : vector<2x32xf32>
    %210 = vector.extract_strided_slice %169 {offsets = [0, 32], sizes = [2, 32], strides = [1, 1]} : vector<2x96xf32> to vector<2x32xf32>
    %211 = vector.extract_strided_slice %173 {offsets = [0, 32], sizes = [2, 32], strides = [1, 1]} : vector<2x96xf32> to vector<2x32xf32>
    %212 = arith.addf %210, %211 : vector<2x32xf32>
    %213 = arith.negf %212 : vector<2x32xf32>
    %214 = math.exp %213 : vector<2x32xf32>
    %cst_72 = arith.constant 1.000000e+00 : f32
    %215 = vector.broadcast %cst_72 : f32 to vector<2x32xf32>
    %216 = arith.addf %215, %214 : vector<2x32xf32>
    %217 = arith.divf %215, %216 : vector<2x32xf32>
    %218 = vector.extract_strided_slice %169 {offsets = [0, 64], sizes = [2, 32], strides = [1, 1]} : vector<2x96xf32> to vector<2x32xf32>
    %219 = vector.extract_strided_slice %173 {offsets = [0, 64], sizes = [2, 32], strides = [1, 1]} : vector<2x96xf32> to vector<2x32xf32>
    %220 = vector.broadcast %24 : vector<1x32xf32> to vector<2x32xf32>
    %221 = arith.addf %219, %220 : vector<2x32xf32>
    %222 = arith.mulf %209, %221 : vector<2x32xf32>
    %223 = arith.addf %218, %222 : vector<2x32xf32>
    %224 = math.tanh %223 : vector<2x32xf32>
    %cst_73 = arith.constant 1.000000e+00 : f32
    %225 = vector.broadcast %cst_73 : f32 to vector<2x32xf32>
    %226 = arith.subf %225, %217 : vector<2x32xf32>
    %227 = arith.mulf %226, %224 : vector<2x32xf32>
    %228 = arith.mulf %217, %156 : vector<2x32xf32>
    %229 = arith.addf %227, %228 : vector<2x32xf32>
    %c2_i32_74 = arith.constant 2 : i32
    %230 = arith.muli %c2_i32_60, %c2_i32_74 : i32
    %231 = arith.index_cast %230 : i32 to index
    %c0_75 = arith.constant 0 : index
    %232 = vector.load %arg15[%231, %c0_75] : memref<16x32xf32, #tpu.memory_space<vmem>>, vector<2x32xf32>
    tpu.vector_store %arg15[%231, %c0_75], %201 {strides = array<i32>} : memref<16x32xf32, #tpu.memory_space<vmem>>, vector<2x32xf32>,
    %c2_i32_76 = arith.constant 2 : i32
    %233 = arith.muli %163, %c2_i32_76 : i32
    %234 = arith.index_cast %233 : i32 to index
    %c0_77 = arith.constant 0 : index
    %235 = vector.load %arg16[%234, %c0_77] : memref<16x32xf32, #tpu.memory_space<vmem>>, vector<2x32xf32>
    tpu.vector_store %arg16[%234, %c0_77], %229 {strides = array<i32>} : memref<16x32xf32, #tpu.memory_space<vmem>>, vector<2x32xf32>,
    %c3_i32 = arith.constant 3 : i32
    %c7_i32_78 = arith.constant 7 : i32
    %236 = arith.subi %c7_i32_78, %c3_i32 : i32
    %c2_i32_79 = arith.constant 2 : i32
    %237 = arith.muli %c3_i32, %c2_i32_79 : i32
    %238 = arith.index_cast %237 : i32 to index
    %c0_80 = arith.constant 0 : index
    %239 = vector.load %arg11[%238, %c0_80] : memref<16x96xf32, #tpu.memory_space<vmem>>, vector<2x96xf32>
    %c2_i32_81 = arith.constant 2 : i32
    %240 = arith.muli %236, %c2_i32_81 : i32
    %241 = arith.index_cast %240 : i32 to index
    %c0_82 = arith.constant 0 : index
    %242 = vector.load %arg12[%241, %c0_82] : memref<16x96xf32, #tpu.memory_space<vmem>>, vector<2x96xf32>
    %243 = arith.truncf %201 : vector<2x32xf32> to vector<2x32xbf16>
    %cst_83 = arith.constant dense<0.000000e+00> : vector<2x96xf32>
    %244 = tpu.matmul %243, %18, %cst_83 {dimension_numbers = #tpu.dot_dimension_numbers<[1], [0], [0], [1], [0, 0, 1, 1], [], []>} : vector<2x32xbf16>, vector<32x96xbf16>, vector<2x96xf32> -> vector<2x96xf32>
    %245 = arith.truncf %229 : vector<2x32xf32> to vector<2x32xbf16>
    %cst_84 = arith.constant dense<0.000000e+00> : vector<2x96xf32>
    %246 = tpu.matmul %245, %20, %cst_84 {dimension_numbers = #tpu.dot_dimension_numbers<[1], [0], [0], [1], [0, 0, 1, 1], [], []>} : vector<2x32xbf16>, vector<32x96xbf16>, vector<2x96xf32> -> vector<2x96xf32>
    %247 = vector.extract_strided_slice %239 {offsets = [0, 0], sizes = [2, 32], strides = [1, 1]} : vector<2x96xf32> to vector<2x32xf32>
    %248 = vector.extract_strided_slice %244 {offsets = [0, 0], sizes = [2, 32], strides = [1, 1]} : vector<2x96xf32> to vector<2x32xf32>
    %249 = arith.addf %247, %248 : vector<2x32xf32>
    %250 = arith.negf %249 : vector<2x32xf32>
    %251 = math.exp %250 : vector<2x32xf32>
    %cst_85 = arith.constant 1.000000e+00 : f32
    %252 = vector.broadcast %cst_85 : f32 to vector<2x32xf32>
    %253 = arith.addf %252, %251 : vector<2x32xf32>
    %254 = arith.divf %252, %253 : vector<2x32xf32>
    %255 = vector.extract_strided_slice %239 {offsets = [0, 32], sizes = [2, 32], strides = [1, 1]} : vector<2x96xf32> to vector<2x32xf32>
    %256 = vector.extract_strided_slice %244 {offsets = [0, 32], sizes = [2, 32], strides = [1, 1]} : vector<2x96xf32> to vector<2x32xf32>
    %257 = arith.addf %255, %256 : vector<2x32xf32>
    %258 = arith.negf %257 : vector<2x32xf32>
    %259 = math.exp %258 : vector<2x32xf32>
    %cst_86 = arith.constant 1.000000e+00 : f32
    %260 = vector.broadcast %cst_86 : f32 to vector<2x32xf32>
    %261 = arith.addf %260, %259 : vector<2x32xf32>
    %262 = arith.divf %260, %261 : vector<2x32xf32>
    %263 = vector.extract_strided_slice %239 {offsets = [0, 64], sizes = [2, 32], strides = [1, 1]} : vector<2x96xf32> to vector<2x32xf32>
    %264 = vector.extract_strided_slice %244 {offsets = [0, 64], sizes = [2, 32], strides = [1, 1]} : vector<2x96xf32> to vector<2x32xf32>
    %265 = vector.broadcast %22 : vector<1x32xf32> to vector<2x32xf32>
    %266 = arith.addf %264, %265 : vector<2x32xf32>
    %267 = arith.mulf %254, %266 : vector<2x32xf32>
    %268 = arith.addf %263, %267 : vector<2x32xf32>
    %269 = math.tanh %268 : vector<2x32xf32>
    %cst_87 = arith.constant 1.000000e+00 : f32
    %270 = vector.broadcast %cst_87 : f32 to vector<2x32xf32>
    %271 = arith.subf %270, %262 : vector<2x32xf32>
    %272 = arith.mulf %271, %269 : vector<2x32xf32>
    %273 = arith.mulf %262, %201 : vector<2x32xf32>
    %274 = arith.addf %272, %273 : vector<2x32xf32>
    %275 = vector.extract_strided_slice %242 {offsets = [0, 0], sizes = [2, 32], strides = [1, 1]} : vector<2x96xf32> to vector<2x32xf32>
    %276 = vector.extract_strided_slice %246 {offsets = [0, 0], sizes = [2, 32], strides = [1, 1]} : vector<2x96xf32> to vector<2x32xf32>
    %277 = arith.addf %275, %276 : vector<2x32xf32>
    %278 = arith.negf %277 : vector<2x32xf32>
    %279 = math.exp %278 : vector<2x32xf32>
    %cst_88 = arith.constant 1.000000e+00 : f32
    %280 = vector.broadcast %cst_88 : f32 to vector<2x32xf32>
    %281 = arith.addf %280, %279 : vector<2x32xf32>
    %282 = arith.divf %280, %281 : vector<2x32xf32>
    %283 = vector.extract_strided_slice %242 {offsets = [0, 32], sizes = [2, 32], strides = [1, 1]} : vector<2x96xf32> to vector<2x32xf32>
    %284 = vector.extract_strided_slice %246 {offsets = [0, 32], sizes = [2, 32], strides = [1, 1]} : vector<2x96xf32> to vector<2x32xf32>
    %285 = arith.addf %283, %284 : vector<2x32xf32>
    %286 = arith.negf %285 : vector<2x32xf32>
    %287 = math.exp %286 : vector<2x32xf32>
    %cst_89 = arith.constant 1.000000e+00 : f32
    %288 = vector.broadcast %cst_89 : f32 to vector<2x32xf32>
    %289 = arith.addf %288, %287 : vector<2x32xf32>
    %290 = arith.divf %288, %289 : vector<2x32xf32>
    %291 = vector.extract_strided_slice %242 {offsets = [0, 64], sizes = [2, 32], strides = [1, 1]} : vector<2x96xf32> to vector<2x32xf32>
    %292 = vector.extract_strided_slice %246 {offsets = [0, 64], sizes = [2, 32], strides = [1, 1]} : vector<2x96xf32> to vector<2x32xf32>
    %293 = vector.broadcast %24 : vector<1x32xf32> to vector<2x32xf32>
    %294 = arith.addf %292, %293 : vector<2x32xf32>
    %295 = arith.mulf %282, %294 : vector<2x32xf32>
    %296 = arith.addf %291, %295 : vector<2x32xf32>
    %297 = math.tanh %296 : vector<2x32xf32>
    %cst_90 = arith.constant 1.000000e+00 : f32
    %298 = vector.broadcast %cst_90 : f32 to vector<2x32xf32>
    %299 = arith.subf %298, %290 : vector<2x32xf32>
    %300 = arith.mulf %299, %297 : vector<2x32xf32>
    %301 = arith.mulf %290, %229 : vector<2x32xf32>
    %302 = arith.addf %300, %301 : vector<2x32xf32>
    %c2_i32_91 = arith.constant 2 : i32
    %303 = arith.muli %c3_i32, %c2_i32_91 : i32
    %304 = arith.index_cast %303 : i32 to index
    %c0_92 = arith.constant 0 : index
    %305 = vector.load %arg15[%304, %c0_92] : memref<16x32xf32, #tpu.memory_space<vmem>>, vector<2x32xf32>
    tpu.vector_store %arg15[%304, %c0_92], %274 {strides = array<i32>} : memref<16x32xf32, #tpu.memory_space<vmem>>, vector<2x32xf32>,
    %c2_i32_93 = arith.constant 2 : i32
    %306 = arith.muli %236, %c2_i32_93 : i32
    %307 = arith.index_cast %306 : i32 to index
    %c0_94 = arith.constant 0 : index
    %308 = vector.load %arg16[%307, %c0_94] : memref<16x32xf32, #tpu.memory_space<vmem>>, vector<2x32xf32>
    tpu.vector_store %arg16[%307, %c0_94], %302 {strides = array<i32>} : memref<16x32xf32, #tpu.memory_space<vmem>>, vector<2x32xf32>,
    %c4_i32 = arith.constant 4 : i32
    %c7_i32_95 = arith.constant 7 : i32
    %309 = arith.subi %c7_i32_95, %c4_i32 : i32
    %c2_i32_96 = arith.constant 2 : i32
    %310 = arith.muli %c4_i32, %c2_i32_96 : i32
    %311 = arith.index_cast %310 : i32 to index
    %c0_97 = arith.constant 0 : index
    %312 = vector.load %arg11[%311, %c0_97] : memref<16x96xf32, #tpu.memory_space<vmem>>, vector<2x96xf32>
    %c2_i32_98 = arith.constant 2 : i32
    %313 = arith.muli %309, %c2_i32_98 : i32
    %314 = arith.index_cast %313 : i32 to index
    %c0_99 = arith.constant 0 : index
    %315 = vector.load %arg12[%314, %c0_99] : memref<16x96xf32, #tpu.memory_space<vmem>>, vector<2x96xf32>
    %316 = arith.truncf %274 : vector<2x32xf32> to vector<2x32xbf16>
    %cst_100 = arith.constant dense<0.000000e+00> : vector<2x96xf32>
    %317 = tpu.matmul %316, %18, %cst_100 {dimension_numbers = #tpu.dot_dimension_numbers<[1], [0], [0], [1], [0, 0, 1, 1], [], []>} : vector<2x32xbf16>, vector<32x96xbf16>, vector<2x96xf32> -> vector<2x96xf32>
    %318 = arith.truncf %302 : vector<2x32xf32> to vector<2x32xbf16>
    %cst_101 = arith.constant dense<0.000000e+00> : vector<2x96xf32>
    %319 = tpu.matmul %318, %20, %cst_101 {dimension_numbers = #tpu.dot_dimension_numbers<[1], [0], [0], [1], [0, 0, 1, 1], [], []>} : vector<2x32xbf16>, vector<32x96xbf16>, vector<2x96xf32> -> vector<2x96xf32>
    %320 = vector.extract_strided_slice %312 {offsets = [0, 0], sizes = [2, 32], strides = [1, 1]} : vector<2x96xf32> to vector<2x32xf32>
    %321 = vector.extract_strided_slice %317 {offsets = [0, 0], sizes = [2, 32], strides = [1, 1]} : vector<2x96xf32> to vector<2x32xf32>
    %322 = arith.addf %320, %321 : vector<2x32xf32>
    %323 = arith.negf %322 : vector<2x32xf32>
    %324 = math.exp %323 : vector<2x32xf32>
    %cst_102 = arith.constant 1.000000e+00 : f32
    %325 = vector.broadcast %cst_102 : f32 to vector<2x32xf32>
    %326 = arith.addf %325, %324 : vector<2x32xf32>
    %327 = arith.divf %325, %326 : vector<2x32xf32>
    %328 = vector.extract_strided_slice %312 {offsets = [0, 32], sizes = [2, 32], strides = [1, 1]} : vector<2x96xf32> to vector<2x32xf32>
    %329 = vector.extract_strided_slice %317 {offsets = [0, 32], sizes = [2, 32], strides = [1, 1]} : vector<2x96xf32> to vector<2x32xf32>
    %330 = arith.addf %328, %329 : vector<2x32xf32>
    %331 = arith.negf %330 : vector<2x32xf32>
    %332 = math.exp %331 : vector<2x32xf32>
    %cst_103 = arith.constant 1.000000e+00 : f32
    %333 = vector.broadcast %cst_103 : f32 to vector<2x32xf32>
    %334 = arith.addf %333, %332 : vector<2x32xf32>
    %335 = arith.divf %333, %334 : vector<2x32xf32>
    %336 = vector.extract_strided_slice %312 {offsets = [0, 64], sizes = [2, 32], strides = [1, 1]} : vector<2x96xf32> to vector<2x32xf32>
    %337 = vector.extract_strided_slice %317 {offsets = [0, 64], sizes = [2, 32], strides = [1, 1]} : vector<2x96xf32> to vector<2x32xf32>
    %338 = vector.broadcast %22 : vector<1x32xf32> to vector<2x32xf32>
    %339 = arith.addf %337, %338 : vector<2x32xf32>
    %340 = arith.mulf %327, %339 : vector<2x32xf32>
    %341 = arith.addf %336, %340 : vector<2x32xf32>
    %342 = math.tanh %341 : vector<2x32xf32>
    %cst_104 = arith.constant 1.000000e+00 : f32
    %343 = vector.broadcast %cst_104 : f32 to vector<2x32xf32>
    %344 = arith.subf %343, %335 : vector<2x32xf32>
    %345 = arith.mulf %344, %342 : vector<2x32xf32>
    %346 = arith.mulf %335, %274 : vector<2x32xf32>
    %347 = arith.addf %345, %346 : vector<2x32xf32>
    %348 = vector.extract_strided_slice %315 {offsets = [0, 0], sizes = [2, 32], strides = [1, 1]} : vector<2x96xf32> to vector<2x32xf32>
    %349 = vector.extract_strided_slice %319 {offsets = [0, 0], sizes = [2, 32], strides = [1, 1]} : vector<2x96xf32> to vector<2x32xf32>
    %350 = arith.addf %348, %349 : vector<2x32xf32>
    %351 = arith.negf %350 : vector<2x32xf32>
    %352 = math.exp %351 : vector<2x32xf32>
    %cst_105 = arith.constant 1.000000e+00 : f32
    %353 = vector.broadcast %cst_105 : f32 to vector<2x32xf32>
    %354 = arith.addf %353, %352 : vector<2x32xf32>
    %355 = arith.divf %353, %354 : vector<2x32xf32>
    %356 = vector.extract_strided_slice %315 {offsets = [0, 32], sizes = [2, 32], strides = [1, 1]} : vector<2x96xf32> to vector<2x32xf32>
    %357 = vector.extract_strided_slice %319 {offsets = [0, 32], sizes = [2, 32], strides = [1, 1]} : vector<2x96xf32> to vector<2x32xf32>
    %358 = arith.addf %356, %357 : vector<2x32xf32>
    %359 = arith.negf %358 : vector<2x32xf32>
    %360 = math.exp %359 : vector<2x32xf32>
    %cst_106 = arith.constant 1.000000e+00 : f32
    %361 = vector.broadcast %cst_106 : f32 to vector<2x32xf32>
    %362 = arith.addf %361, %360 : vector<2x32xf32>
    %363 = arith.divf %361, %362 : vector<2x32xf32>
    %364 = vector.extract_strided_slice %315 {offsets = [0, 64], sizes = [2, 32], strides = [1, 1]} : vector<2x96xf32> to vector<2x32xf32>
    %365 = vector.extract_strided_slice %319 {offsets = [0, 64], sizes = [2, 32], strides = [1, 1]} : vector<2x96xf32> to vector<2x32xf32>
    %366 = vector.broadcast %24 : vector<1x32xf32> to vector<2x32xf32>
    %367 = arith.addf %365, %366 : vector<2x32xf32>
    %368 = arith.mulf %355, %367 : vector<2x32xf32>
    %369 = arith.addf %364, %368 : vector<2x32xf32>
    %370 = math.tanh %369 : vector<2x32xf32>
    %cst_107 = arith.constant 1.000000e+00 : f32
    %371 = vector.broadcast %cst_107 : f32 to vector<2x32xf32>
    %372 = arith.subf %371, %363 : vector<2x32xf32>
    %373 = arith.mulf %372, %370 : vector<2x32xf32>
    %374 = arith.mulf %363, %302 : vector<2x32xf32>
    %375 = arith.addf %373, %374 : vector<2x32xf32>
    %c2_i32_108 = arith.constant 2 : i32
    %376 = arith.muli %c4_i32, %c2_i32_108 : i32
    %377 = arith.index_cast %376 : i32 to index
    %c0_109 = arith.constant 0 : index
    %378 = vector.load %arg15[%377, %c0_109] : memref<16x32xf32, #tpu.memory_space<vmem>>, vector<2x32xf32>
    tpu.vector_store %arg15[%377, %c0_109], %347 {strides = array<i32>} : memref<16x32xf32, #tpu.memory_space<vmem>>, vector<2x32xf32>,
    %c2_i32_110 = arith.constant 2 : i32
    %379 = arith.muli %309, %c2_i32_110 : i32
    %380 = arith.index_cast %379 : i32 to index
    %c0_111 = arith.constant 0 : index
    %381 = vector.load %arg16[%380, %c0_111] : memref<16x32xf32, #tpu.memory_space<vmem>>, vector<2x32xf32>
    tpu.vector_store %arg16[%380, %c0_111], %375 {strides = array<i32>} : memref<16x32xf32, #tpu.memory_space<vmem>>, vector<2x32xf32>,
    %c5_i32 = arith.constant 5 : i32
    %c7_i32_112 = arith.constant 7 : i32
    %382 = arith.subi %c7_i32_112, %c5_i32 : i32
    %c2_i32_113 = arith.constant 2 : i32
    %383 = arith.muli %c5_i32, %c2_i32_113 : i32
    %384 = arith.index_cast %383 : i32 to index
    %c0_114 = arith.constant 0 : index
    %385 = vector.load %arg11[%384, %c0_114] : memref<16x96xf32, #tpu.memory_space<vmem>>, vector<2x96xf32>
    %c2_i32_115 = arith.constant 2 : i32
    %386 = arith.muli %382, %c2_i32_115 : i32
    %387 = arith.index_cast %386 : i32 to index
    %c0_116 = arith.constant 0 : index
    %388 = vector.load %arg12[%387, %c0_116] : memref<16x96xf32, #tpu.memory_space<vmem>>, vector<2x96xf32>
    %389 = arith.truncf %347 : vector<2x32xf32> to vector<2x32xbf16>
    %cst_117 = arith.constant dense<0.000000e+00> : vector<2x96xf32>
    %390 = tpu.matmul %389, %18, %cst_117 {dimension_numbers = #tpu.dot_dimension_numbers<[1], [0], [0], [1], [0, 0, 1, 1], [], []>} : vector<2x32xbf16>, vector<32x96xbf16>, vector<2x96xf32> -> vector<2x96xf32>
    %391 = arith.truncf %375 : vector<2x32xf32> to vector<2x32xbf16>
    %cst_118 = arith.constant dense<0.000000e+00> : vector<2x96xf32>
    %392 = tpu.matmul %391, %20, %cst_118 {dimension_numbers = #tpu.dot_dimension_numbers<[1], [0], [0], [1], [0, 0, 1, 1], [], []>} : vector<2x32xbf16>, vector<32x96xbf16>, vector<2x96xf32> -> vector<2x96xf32>
    %393 = vector.extract_strided_slice %385 {offsets = [0, 0], sizes = [2, 32], strides = [1, 1]} : vector<2x96xf32> to vector<2x32xf32>
    %394 = vector.extract_strided_slice %390 {offsets = [0, 0], sizes = [2, 32], strides = [1, 1]} : vector<2x96xf32> to vector<2x32xf32>
    %395 = arith.addf %393, %394 : vector<2x32xf32>
    %396 = arith.negf %395 : vector<2x32xf32>
    %397 = math.exp %396 : vector<2x32xf32>
    %cst_119 = arith.constant 1.000000e+00 : f32
    %398 = vector.broadcast %cst_119 : f32 to vector<2x32xf32>
    %399 = arith.addf %398, %397 : vector<2x32xf32>
    %400 = arith.divf %398, %399 : vector<2x32xf32>
    %401 = vector.extract_strided_slice %385 {offsets = [0, 32], sizes = [2, 32], strides = [1, 1]} : vector<2x96xf32> to vector<2x32xf32>
    %402 = vector.extract_strided_slice %390 {offsets = [0, 32], sizes = [2, 32], strides = [1, 1]} : vector<2x96xf32> to vector<2x32xf32>
    %403 = arith.addf %401, %402 : vector<2x32xf32>
    %404 = arith.negf %403 : vector<2x32xf32>
    %405 = math.exp %404 : vector<2x32xf32>
    %cst_120 = arith.constant 1.000000e+00 : f32
    %406 = vector.broadcast %cst_120 : f32 to vector<2x32xf32>
    %407 = arith.addf %406, %405 : vector<2x32xf32>
    %408 = arith.divf %406, %407 : vector<2x32xf32>
    %409 = vector.extract_strided_slice %385 {offsets = [0, 64], sizes = [2, 32], strides = [1, 1]} : vector<2x96xf32> to vector<2x32xf32>
    %410 = vector.extract_strided_slice %390 {offsets = [0, 64], sizes = [2, 32], strides = [1, 1]} : vector<2x96xf32> to vector<2x32xf32>
    %411 = vector.broadcast %22 : vector<1x32xf32> to vector<2x32xf32>
    %412 = arith.addf %410, %411 : vector<2x32xf32>
    %413 = arith.mulf %400, %412 : vector<2x32xf32>
    %414 = arith.addf %409, %413 : vector<2x32xf32>
    %415 = math.tanh %414 : vector<2x32xf32>
    %cst_121 = arith.constant 1.000000e+00 : f32
    %416 = vector.broadcast %cst_121 : f32 to vector<2x32xf32>
    %417 = arith.subf %416, %408 : vector<2x32xf32>
    %418 = arith.mulf %417, %415 : vector<2x32xf32>
    %419 = arith.mulf %408, %347 : vector<2x32xf32>
    %420 = arith.addf %418, %419 : vector<2x32xf32>
    %421 = vector.extract_strided_slice %388 {offsets = [0, 0], sizes = [2, 32], strides = [1, 1]} : vector<2x96xf32> to vector<2x32xf32>
    %422 = vector.extract_strided_slice %392 {offsets = [0, 0], sizes = [2, 32], strides = [1, 1]} : vector<2x96xf32> to vector<2x32xf32>
    %423 = arith.addf %421, %422 : vector<2x32xf32>
    %424 = arith.negf %423 : vector<2x32xf32>
    %425 = math.exp %424 : vector<2x32xf32>
    %cst_122 = arith.constant 1.000000e+00 : f32
    %426 = vector.broadcast %cst_122 : f32 to vector<2x32xf32>
    %427 = arith.addf %426, %425 : vector<2x32xf32>
    %428 = arith.divf %426, %427 : vector<2x32xf32>
    %429 = vector.extract_strided_slice %388 {offsets = [0, 32], sizes = [2, 32], strides = [1, 1]} : vector<2x96xf32> to vector<2x32xf32>
    %430 = vector.extract_strided_slice %392 {offsets = [0, 32], sizes = [2, 32], strides = [1, 1]} : vector<2x96xf32> to vector<2x32xf32>
    %431 = arith.addf %429, %430 : vector<2x32xf32>
    %432 = arith.negf %431 : vector<2x32xf32>
    %433 = math.exp %432 : vector<2x32xf32>
    %cst_123 = arith.constant 1.000000e+00 : f32
    %434 = vector.broadcast %cst_123 : f32 to vector<2x32xf32>
    %435 = arith.addf %434, %433 : vector<2x32xf32>
    %436 = arith.divf %434, %435 : vector<2x32xf32>
    %437 = vector.extract_strided_slice %388 {offsets = [0, 64], sizes = [2, 32], strides = [1, 1]} : vector<2x96xf32> to vector<2x32xf32>
    %438 = vector.extract_strided_slice %392 {offsets = [0, 64], sizes = [2, 32], strides = [1, 1]} : vector<2x96xf32> to vector<2x32xf32>
    %439 = vector.broadcast %24 : vector<1x32xf32> to vector<2x32xf32>
    %440 = arith.addf %438, %439 : vector<2x32xf32>
    %441 = arith.mulf %428, %440 : vector<2x32xf32>
    %442 = arith.addf %437, %441 : vector<2x32xf32>
    %443 = math.tanh %442 : vector<2x32xf32>
    %cst_124 = arith.constant 1.000000e+00 : f32
    %444 = vector.broadcast %cst_124 : f32 to vector<2x32xf32>
    %445 = arith.subf %444, %436 : vector<2x32xf32>
    %446 = arith.mulf %445, %443 : vector<2x32xf32>
    %447 = arith.mulf %436, %375 : vector<2x32xf32>
    %448 = arith.addf %446, %447 : vector<2x32xf32>
    %c2_i32_125 = arith.constant 2 : i32
    %449 = arith.muli %c5_i32, %c2_i32_125 : i32
    %450 = arith.index_cast %449 : i32 to index
    %c0_126 = arith.constant 0 : index
    %451 = vector.load %arg15[%450, %c0_126] : memref<16x32xf32, #tpu.memory_space<vmem>>, vector<2x32xf32>
    tpu.vector_store %arg15[%450, %c0_126], %420 {strides = array<i32>} : memref<16x32xf32, #tpu.memory_space<vmem>>, vector<2x32xf32>,
    %c2_i32_127 = arith.constant 2 : i32
    %452 = arith.muli %382, %c2_i32_127 : i32
    %453 = arith.index_cast %452 : i32 to index
    %c0_128 = arith.constant 0 : index
    %454 = vector.load %arg16[%453, %c0_128] : memref<16x32xf32, #tpu.memory_space<vmem>>, vector<2x32xf32>
    tpu.vector_store %arg16[%453, %c0_128], %448 {strides = array<i32>} : memref<16x32xf32, #tpu.memory_space<vmem>>, vector<2x32xf32>,
    %c6_i32 = arith.constant 6 : i32
    %c7_i32_129 = arith.constant 7 : i32
    %455 = arith.subi %c7_i32_129, %c6_i32 : i32
    %c2_i32_130 = arith.constant 2 : i32
    %456 = arith.muli %c6_i32, %c2_i32_130 : i32
    %457 = arith.index_cast %456 : i32 to index
    %c0_131 = arith.constant 0 : index
    %458 = vector.load %arg11[%457, %c0_131] : memref<16x96xf32, #tpu.memory_space<vmem>>, vector<2x96xf32>
    %c2_i32_132 = arith.constant 2 : i32
    %459 = arith.muli %455, %c2_i32_132 : i32
    %460 = arith.index_cast %459 : i32 to index
    %c0_133 = arith.constant 0 : index
    %461 = vector.load %arg12[%460, %c0_133] : memref<16x96xf32, #tpu.memory_space<vmem>>, vector<2x96xf32>
    %462 = arith.truncf %420 : vector<2x32xf32> to vector<2x32xbf16>
    %cst_134 = arith.constant dense<0.000000e+00> : vector<2x96xf32>
    %463 = tpu.matmul %462, %18, %cst_134 {dimension_numbers = #tpu.dot_dimension_numbers<[1], [0], [0], [1], [0, 0, 1, 1], [], []>} : vector<2x32xbf16>, vector<32x96xbf16>, vector<2x96xf32> -> vector<2x96xf32>
    %464 = arith.truncf %448 : vector<2x32xf32> to vector<2x32xbf16>
    %cst_135 = arith.constant dense<0.000000e+00> : vector<2x96xf32>
    %465 = tpu.matmul %464, %20, %cst_135 {dimension_numbers = #tpu.dot_dimension_numbers<[1], [0], [0], [1], [0, 0, 1, 1], [], []>} : vector<2x32xbf16>, vector<32x96xbf16>, vector<2x96xf32> -> vector<2x96xf32>
    %466 = vector.extract_strided_slice %458 {offsets = [0, 0], sizes = [2, 32], strides = [1, 1]} : vector<2x96xf32> to vector<2x32xf32>
    %467 = vector.extract_strided_slice %463 {offsets = [0, 0], sizes = [2, 32], strides = [1, 1]} : vector<2x96xf32> to vector<2x32xf32>
    %468 = arith.addf %466, %467 : vector<2x32xf32>
    %469 = arith.negf %468 : vector<2x32xf32>
    %470 = math.exp %469 : vector<2x32xf32>
    %cst_136 = arith.constant 1.000000e+00 : f32
    %471 = vector.broadcast %cst_136 : f32 to vector<2x32xf32>
    %472 = arith.addf %471, %470 : vector<2x32xf32>
    %473 = arith.divf %471, %472 : vector<2x32xf32>
    %474 = vector.extract_strided_slice %458 {offsets = [0, 32], sizes = [2, 32], strides = [1, 1]} : vector<2x96xf32> to vector<2x32xf32>
    %475 = vector.extract_strided_slice %463 {offsets = [0, 32], sizes = [2, 32], strides = [1, 1]} : vector<2x96xf32> to vector<2x32xf32>
    %476 = arith.addf %474, %475 : vector<2x32xf32>
    %477 = arith.negf %476 : vector<2x32xf32>
    %478 = math.exp %477 : vector<2x32xf32>
    %cst_137 = arith.constant 1.000000e+00 : f32
    %479 = vector.broadcast %cst_137 : f32 to vector<2x32xf32>
    %480 = arith.addf %479, %478 : vector<2x32xf32>
    %481 = arith.divf %479, %480 : vector<2x32xf32>
    %482 = vector.extract_strided_slice %458 {offsets = [0, 64], sizes = [2, 32], strides = [1, 1]} : vector<2x96xf32> to vector<2x32xf32>
    %483 = vector.extract_strided_slice %463 {offsets = [0, 64], sizes = [2, 32], strides = [1, 1]} : vector<2x96xf32> to vector<2x32xf32>
    %484 = vector.broadcast %22 : vector<1x32xf32> to vector<2x32xf32>
    %485 = arith.addf %483, %484 : vector<2x32xf32>
    %486 = arith.mulf %473, %485 : vector<2x32xf32>
    %487 = arith.addf %482, %486 : vector<2x32xf32>
    %488 = math.tanh %487 : vector<2x32xf32>
    %cst_138 = arith.constant 1.000000e+00 : f32
    %489 = vector.broadcast %cst_138 : f32 to vector<2x32xf32>
    %490 = arith.subf %489, %481 : vector<2x32xf32>
    %491 = arith.mulf %490, %488 : vector<2x32xf32>
    %492 = arith.mulf %481, %420 : vector<2x32xf32>
    %493 = arith.addf %491, %492 : vector<2x32xf32>
    %494 = vector.extract_strided_slice %461 {offsets = [0, 0], sizes = [2, 32], strides = [1, 1]} : vector<2x96xf32> to vector<2x32xf32>
    %495 = vector.extract_strided_slice %465 {offsets = [0, 0], sizes = [2, 32], strides = [1, 1]} : vector<2x96xf32> to vector<2x32xf32>
    %496 = arith.addf %494, %495 : vector<2x32xf32>
    %497 = arith.negf %496 : vector<2x32xf32>
    %498 = math.exp %497 : vector<2x32xf32>
    %cst_139 = arith.constant 1.000000e+00 : f32
    %499 = vector.broadcast %cst_139 : f32 to vector<2x32xf32>
    %500 = arith.addf %499, %498 : vector<2x32xf32>
    %501 = arith.divf %499, %500 : vector<2x32xf32>
    %502 = vector.extract_strided_slice %461 {offsets = [0, 32], sizes = [2, 32], strides = [1, 1]} : vector<2x96xf32> to vector<2x32xf32>
    %503 = vector.extract_strided_slice %465 {offsets = [0, 32], sizes = [2, 32], strides = [1, 1]} : vector<2x96xf32> to vector<2x32xf32>
    %504 = arith.addf %502, %503 : vector<2x32xf32>
    %505 = arith.negf %504 : vector<2x32xf32>
    %506 = math.exp %505 : vector<2x32xf32>
    %cst_140 = arith.constant 1.000000e+00 : f32
    %507 = vector.broadcast %cst_140 : f32 to vector<2x32xf32>
    %508 = arith.addf %507, %506 : vector<2x32xf32>
    %509 = arith.divf %507, %508 : vector<2x32xf32>
    %510 = vector.extract_strided_slice %461 {offsets = [0, 64], sizes = [2, 32], strides = [1, 1]} : vector<2x96xf32> to vector<2x32xf32>
    %511 = vector.extract_strided_slice %465 {offsets = [0, 64], sizes = [2, 32], strides = [1, 1]} : vector<2x96xf32> to vector<2x32xf32>
    %512 = vector.broadcast %24 : vector<1x32xf32> to vector<2x32xf32>
    %513 = arith.addf %511, %512 : vector<2x32xf32>
    %514 = arith.mulf %501, %513 : vector<2x32xf32>
    %515 = arith.addf %510, %514 : vector<2x32xf32>
    %516 = math.tanh %515 : vector<2x32xf32>
    %cst_141 = arith.constant 1.000000e+00 : f32
    %517 = vector.broadcast %cst_141 : f32 to vector<2x32xf32>
    %518 = arith.subf %517, %509 : vector<2x32xf32>
    %519 = arith.mulf %518, %516 : vector<2x32xf32>
    %520 = arith.mulf %509, %448 : vector<2x32xf32>
    %521 = arith.addf %519, %520 : vector<2x32xf32>
    %c2_i32_142 = arith.constant 2 : i32
    %522 = arith.muli %c6_i32, %c2_i32_142 : i32
    %523 = arith.index_cast %522 : i32 to index
    %c0_143 = arith.constant 0 : index
    %524 = vector.load %arg15[%523, %c0_143] : memref<16x32xf32, #tpu.memory_space<vmem>>, vector<2x32xf32>
    tpu.vector_store %arg15[%523, %c0_143], %493 {strides = array<i32>} : memref<16x32xf32, #tpu.memory_space<vmem>>, vector<2x32xf32>,
    %c2_i32_144 = arith.constant 2 : i32
    %525 = arith.muli %455, %c2_i32_144 : i32
    %526 = arith.index_cast %525 : i32 to index
    %c0_145 = arith.constant 0 : index
    %527 = vector.load %arg16[%526, %c0_145] : memref<16x32xf32, #tpu.memory_space<vmem>>, vector<2x32xf32>
    tpu.vector_store %arg16[%526, %c0_145], %521 {strides = array<i32>} : memref<16x32xf32, #tpu.memory_space<vmem>>, vector<2x32xf32>,
    %c7_i32_146 = arith.constant 7 : i32
    %c7_i32_147 = arith.constant 7 : i32
    %528 = arith.subi %c7_i32_147, %c7_i32_146 : i32
    %c2_i32_148 = arith.constant 2 : i32
    %529 = arith.muli %c7_i32_146, %c2_i32_148 : i32
    %530 = arith.index_cast %529 : i32 to index
    %c0_149 = arith.constant 0 : index
    %531 = vector.load %arg11[%530, %c0_149] : memref<16x96xf32, #tpu.memory_space<vmem>>, vector<2x96xf32>
    %c2_i32_150 = arith.constant 2 : i32
    %532 = arith.muli %528, %c2_i32_150 : i32
    %533 = arith.index_cast %532 : i32 to index
    %c0_151 = arith.constant 0 : index
    %534 = vector.load %arg12[%533, %c0_151] : memref<16x96xf32, #tpu.memory_space<vmem>>, vector<2x96xf32>
    %535 = arith.truncf %493 : vector<2x32xf32> to vector<2x32xbf16>
    %cst_152 = arith.constant dense<0.000000e+00> : vector<2x96xf32>
    %536 = tpu.matmul %535, %18, %cst_152 {dimension_numbers = #tpu.dot_dimension_numbers<[1], [0], [0], [1], [0, 0, 1, 1], [], []>} : vector<2x32xbf16>, vector<32x96xbf16>, vector<2x96xf32> -> vector<2x96xf32>
    %537 = arith.truncf %521 : vector<2x32xf32> to vector<2x32xbf16>
    %cst_153 = arith.constant dense<0.000000e+00> : vector<2x96xf32>
    %538 = tpu.matmul %537, %20, %cst_153 {dimension_numbers = #tpu.dot_dimension_numbers<[1], [0], [0], [1], [0, 0, 1, 1], [], []>} : vector<2x32xbf16>, vector<32x96xbf16>, vector<2x96xf32> -> vector<2x96xf32>
    %539 = vector.extract_strided_slice %531 {offsets = [0, 0], sizes = [2, 32], strides = [1, 1]} : vector<2x96xf32> to vector<2x32xf32>
    %540 = vector.extract_strided_slice %536 {offsets = [0, 0], sizes = [2, 32], strides = [1, 1]} : vector<2x96xf32> to vector<2x32xf32>
    %541 = arith.addf %539, %540 : vector<2x32xf32>
    %542 = arith.negf %541 : vector<2x32xf32>
    %543 = math.exp %542 : vector<2x32xf32>
    %cst_154 = arith.constant 1.000000e+00 : f32
    %544 = vector.broadcast %cst_154 : f32 to vector<2x32xf32>
    %545 = arith.addf %544, %543 : vector<2x32xf32>
    %546 = arith.divf %544, %545 : vector<2x32xf32>
    %547 = vector.extract_strided_slice %531 {offsets = [0, 32], sizes = [2, 32], strides = [1, 1]} : vector<2x96xf32> to vector<2x32xf32>
    %548 = vector.extract_strided_slice %536 {offsets = [0, 32], sizes = [2, 32], strides = [1, 1]} : vector<2x96xf32> to vector<2x32xf32>
    %549 = arith.addf %547, %548 : vector<2x32xf32>
    %550 = arith.negf %549 : vector<2x32xf32>
    %551 = math.exp %550 : vector<2x32xf32>
    %cst_155 = arith.constant 1.000000e+00 : f32
    %552 = vector.broadcast %cst_155 : f32 to vector<2x32xf32>
    %553 = arith.addf %552, %551 : vector<2x32xf32>
    %554 = arith.divf %552, %553 : vector<2x32xf32>
    %555 = vector.extract_strided_slice %531 {offsets = [0, 64], sizes = [2, 32], strides = [1, 1]} : vector<2x96xf32> to vector<2x32xf32>
    %556 = vector.extract_strided_slice %536 {offsets = [0, 64], sizes = [2, 32], strides = [1, 1]} : vector<2x96xf32> to vector<2x32xf32>
    %557 = vector.broadcast %22 : vector<1x32xf32> to vector<2x32xf32>
    %558 = arith.addf %556, %557 : vector<2x32xf32>
    %559 = arith.mulf %546, %558 : vector<2x32xf32>
    %560 = arith.addf %555, %559 : vector<2x32xf32>
    %561 = math.tanh %560 : vector<2x32xf32>
    %cst_156 = arith.constant 1.000000e+00 : f32
    %562 = vector.broadcast %cst_156 : f32 to vector<2x32xf32>
    %563 = arith.subf %562, %554 : vector<2x32xf32>
    %564 = arith.mulf %563, %561 : vector<2x32xf32>
    %565 = arith.mulf %554, %493 : vector<2x32xf32>
    %566 = arith.addf %564, %565 : vector<2x32xf32>
    %567 = vector.extract_strided_slice %534 {offsets = [0, 0], sizes = [2, 32], strides = [1, 1]} : vector<2x96xf32> to vector<2x32xf32>
    %568 = vector.extract_strided_slice %538 {offsets = [0, 0], sizes = [2, 32], strides = [1, 1]} : vector<2x96xf32> to vector<2x32xf32>
    %569 = arith.addf %567, %568 : vector<2x32xf32>
    %570 = arith.negf %569 : vector<2x32xf32>
    %571 = math.exp %570 : vector<2x32xf32>
    %cst_157 = arith.constant 1.000000e+00 : f32
    %572 = vector.broadcast %cst_157 : f32 to vector<2x32xf32>
    %573 = arith.addf %572, %571 : vector<2x32xf32>
    %574 = arith.divf %572, %573 : vector<2x32xf32>
    %575 = vector.extract_strided_slice %534 {offsets = [0, 32], sizes = [2, 32], strides = [1, 1]} : vector<2x96xf32> to vector<2x32xf32>
    %576 = vector.extract_strided_slice %538 {offsets = [0, 32], sizes = [2, 32], strides = [1, 1]} : vector<2x96xf32> to vector<2x32xf32>
    %577 = arith.addf %575, %576 : vector<2x32xf32>
    %578 = arith.negf %577 : vector<2x32xf32>
    %579 = math.exp %578 : vector<2x32xf32>
    %cst_158 = arith.constant 1.000000e+00 : f32
    %580 = vector.broadcast %cst_158 : f32 to vector<2x32xf32>
    %581 = arith.addf %580, %579 : vector<2x32xf32>
    %582 = arith.divf %580, %581 : vector<2x32xf32>
    %583 = vector.extract_strided_slice %534 {offsets = [0, 64], sizes = [2, 32], strides = [1, 1]} : vector<2x96xf32> to vector<2x32xf32>
    %584 = vector.extract_strided_slice %538 {offsets = [0, 64], sizes = [2, 32], strides = [1, 1]} : vector<2x96xf32> to vector<2x32xf32>
    %585 = vector.broadcast %24 : vector<1x32xf32> to vector<2x32xf32>
    %586 = arith.addf %584, %585 : vector<2x32xf32>
    %587 = arith.mulf %574, %586 : vector<2x32xf32>
    %588 = arith.addf %583, %587 : vector<2x32xf32>
    %589 = math.tanh %588 : vector<2x32xf32>
    %cst_159 = arith.constant 1.000000e+00 : f32
    %590 = vector.broadcast %cst_159 : f32 to vector<2x32xf32>
    %591 = arith.subf %590, %582 : vector<2x32xf32>
    %592 = arith.mulf %591, %589 : vector<2x32xf32>
    %593 = arith.mulf %582, %521 : vector<2x32xf32>
    %594 = arith.addf %592, %593 : vector<2x32xf32>
    %c2_i32_160 = arith.constant 2 : i32
    %595 = arith.muli %c7_i32_146, %c2_i32_160 : i32
    %596 = arith.index_cast %595 : i32 to index
    %c0_161 = arith.constant 0 : index
    %597 = vector.load %arg15[%596, %c0_161] : memref<16x32xf32, #tpu.memory_space<vmem>>, vector<2x32xf32>
    tpu.vector_store %arg15[%596, %c0_161], %566 {strides = array<i32>} : memref<16x32xf32, #tpu.memory_space<vmem>>, vector<2x32xf32>,
    %c2_i32_162 = arith.constant 2 : i32
    %598 = arith.muli %528, %c2_i32_162 : i32
    %599 = arith.index_cast %598 : i32 to index
    %c0_163 = arith.constant 0 : index
    %600 = vector.load %arg16[%599, %c0_163] : memref<16x32xf32, #tpu.memory_space<vmem>>, vector<2x32xf32>
    tpu.vector_store %arg16[%599, %c0_163], %594 {strides = array<i32>} : memref<16x32xf32, #tpu.memory_space<vmem>>, vector<2x32xf32>,
    %c7_i32_164 = arith.constant 7 : i32
    %c0_165 = arith.constant 0 : index
    %c0_166 = arith.constant 0 : index
    %601 = vector.load %arg15[%c0_165, %c0_166] : memref<16x32xf32, #tpu.memory_space<vmem>>, vector<16x32xf32>
    %c0_167 = arith.constant 0 : index
    %c0_168 = arith.constant 0 : index
    %602 = vector.load %arg16[%c0_167, %c0_168] : memref<16x32xf32, #tpu.memory_space<vmem>>, vector<16x32xf32>
    %c0_169 = arith.constant 0 : index
    %c0_170 = arith.constant 0 : index
    %c0_171 = arith.constant 0 : index
    %603 = vector.load %arg6[%c0_169, %c0_170, %c0_171] : memref<4x32x96xf32, #tpu.memory_space<vmem>>, vector<1x32x96xf32>
    %604 = vector.shape_cast %603 : vector<1x32x96xf32> to vector<32x96xf32>
    %cst_172 = arith.constant dense<0.000000e+00> : vector<16x96xf32>
    %605 = tpu.matmul %601, %604, %cst_172 {dimension_numbers = #tpu.dot_dimension_numbers<[1], [0], [0], [1], [0, 0, 1, 1], [], []>} : vector<16x32xf32>, vector<32x96xf32>, vector<16x96xf32> -> vector<16x96xf32>
    %c1_173 = arith.constant 1 : index
    %c0_174 = arith.constant 0 : index
    %c0_175 = arith.constant 0 : index
    %606 = vector.load %arg6[%c1_173, %c0_174, %c0_175] : memref<4x32x96xf32, #tpu.memory_space<vmem>>, vector<1x32x96xf32>
    %607 = vector.shape_cast %606 : vector<1x32x96xf32> to vector<32x96xf32>
    %cst_176 = arith.constant dense<0.000000e+00> : vector<16x96xf32>
    %608 = tpu.matmul %602, %607, %cst_176 {dimension_numbers = #tpu.dot_dimension_numbers<[1], [0], [0], [1], [0, 0, 1, 1], [], []>} : vector<16x32xf32>, vector<32x96xf32>, vector<16x96xf32> -> vector<16x96xf32>
    %609 = arith.addf %605, %608 : vector<16x96xf32>
    %c0_177 = arith.constant 0 : index
    %c0_178 = arith.constant 0 : index
    %c0_179 = arith.constant 0 : index
    %610 = vector.load %arg7[%c0_177, %c0_178, %c0_179] : memref<2x1x96xf32, #tpu.memory_space<vmem>>, vector<1x1x96xf32>
    %611 = vector.shape_cast %610 : vector<1x1x96xf32> to vector<1x96xf32>
    %612 = vector.broadcast %611 : vector<1x96xf32> to vector<16x96xf32>
    %613 = arith.addf %609, %612 : vector<16x96xf32>
    %c0_180 = arith.constant 0 : index
    %c0_181 = arith.constant 0 : index
    %614 = vector.load %arg13[%c0_180, %c0_181] : memref<16x96xf32, #tpu.memory_space<vmem>>, vector<16x96xf32>
    tpu.vector_store %arg13[%c0_180, %c0_181], %613 {strides = array<i32>} : memref<16x96xf32, #tpu.memory_space<vmem>>, vector<16x96xf32>,
    %c2 = arith.constant 2 : index
    %c0_182 = arith.constant 0 : index
    %c0_183 = arith.constant 0 : index
    %615 = vector.load %arg6[%c2, %c0_182, %c0_183] : memref<4x32x96xf32, #tpu.memory_space<vmem>>, vector<1x32x96xf32>
    %616 = vector.shape_cast %615 : vector<1x32x96xf32> to vector<32x96xf32>
    %cst_184 = arith.constant dense<0.000000e+00> : vector<16x96xf32>
    %617 = tpu.matmul %601, %616, %cst_184 {dimension_numbers = #tpu.dot_dimension_numbers<[1], [0], [0], [1], [0, 0, 1, 1], [], []>} : vector<16x32xf32>, vector<32x96xf32>, vector<16x96xf32> -> vector<16x96xf32>
    %c3 = arith.constant 3 : index
    %c0_185 = arith.constant 0 : index
    %c0_186 = arith.constant 0 : index
    %618 = vector.load %arg6[%c3, %c0_185, %c0_186] : memref<4x32x96xf32, #tpu.memory_space<vmem>>, vector<1x32x96xf32>
    %619 = vector.shape_cast %618 : vector<1x32x96xf32> to vector<32x96xf32>
    %cst_187 = arith.constant dense<0.000000e+00> : vector<16x96xf32>
    %620 = tpu.matmul %602, %619, %cst_187 {dimension_numbers = #tpu.dot_dimension_numbers<[1], [0], [0], [1], [0, 0, 1, 1], [], []>} : vector<16x32xf32>, vector<32x96xf32>, vector<16x96xf32> -> vector<16x96xf32>
    %621 = arith.addf %617, %620 : vector<16x96xf32>
    %c1_188 = arith.constant 1 : index
    %c0_189 = arith.constant 0 : index
    %c0_190 = arith.constant 0 : index
    %622 = vector.load %arg7[%c1_188, %c0_189, %c0_190] : memref<2x1x96xf32, #tpu.memory_space<vmem>>, vector<1x1x96xf32>
    %623 = vector.shape_cast %622 : vector<1x1x96xf32> to vector<1x96xf32>
    %624 = vector.broadcast %623 : vector<1x96xf32> to vector<16x96xf32>
    %625 = arith.addf %621, %624 : vector<16x96xf32>
    %c0_191 = arith.constant 0 : index
    %c0_192 = arith.constant 0 : index
    %626 = vector.load %arg14[%c0_191, %c0_192] : memref<16x96xf32, #tpu.memory_space<vmem>>, vector<16x96xf32>
    tpu.vector_store %arg14[%c0_191, %c0_192], %625 {strides = array<i32>} : memref<16x96xf32, #tpu.memory_space<vmem>>, vector<16x96xf32>,
    %c0_193 = arith.constant 0 : index
    %c0_194 = arith.constant 0 : index
    %c0_195 = arith.constant 0 : index
    %627 = vector.load %arg8[%c0_193, %c0_194, %c0_195] : memref<2x32x96xbf16, #tpu.memory_space<vmem>>, vector<1x32x96xbf16>
    %628 = vector.shape_cast %627 : vector<1x32x96xbf16> to vector<32x96xbf16>
    %c1_196 = arith.constant 1 : index
    %c0_197 = arith.constant 0 : index
    %c0_198 = arith.constant 0 : index
    %629 = vector.load %arg8[%c1_196, %c0_197, %c0_198] : memref<2x32x96xbf16, #tpu.memory_space<vmem>>, vector<1x32x96xbf16>
    %630 = vector.shape_cast %629 : vector<1x32x96xbf16> to vector<32x96xbf16>
    %c0_199 = arith.constant 0 : index
    %c0_200 = arith.constant 0 : index
    %c0_201 = arith.constant 0 : index
    %631 = vector.load %arg9[%c0_199, %c0_200, %c0_201] : memref<2x1x32xf32, #tpu.memory_space<vmem>>, vector<1x1x32xf32>
    %632 = vector.shape_cast %631 : vector<1x1x32xf32> to vector<1x32xf32>
    %c1_202 = arith.constant 1 : index
    %c0_203 = arith.constant 0 : index
    %c0_204 = arith.constant 0 : index
    %633 = vector.load %arg9[%c1_202, %c0_203, %c0_204] : memref<2x1x32xf32, #tpu.memory_space<vmem>>, vector<1x1x32xf32>
    %634 = vector.shape_cast %633 : vector<1x1x32xf32> to vector<1x32xf32>
    %cst_205 = arith.constant 0.000000e+00 : f32
    %635 = vector.broadcast %cst_205 : f32 to vector<2x32xf32>
    %c0_206 = arith.constant 0 : index
    %c0_207 = arith.constant 0 : index
    %636 = vector.load %arg13[%c0_206, %c0_207] : memref<16x96xf32, #tpu.memory_space<vmem>>, vector<2x96xf32>
    %c14_208 = arith.constant 14 : index
    %c0_209 = arith.constant 0 : index
    %637 = vector.load %arg14[%c14_208, %c0_209] : memref<16x96xf32, #tpu.memory_space<vmem>>, vector<2x96xf32>
    %638 = arith.truncf %635 : vector<2x32xf32> to vector<2x32xbf16>
    %cst_210 = arith.constant dense<0.000000e+00> : vector<2x96xf32>
    %639 = tpu.matmul %638, %628, %cst_210 {dimension_numbers = #tpu.dot_dimension_numbers<[1], [0], [0], [1], [0, 0, 1, 1], [], []>} : vector<2x32xbf16>, vector<32x96xbf16>, vector<2x96xf32> -> vector<2x96xf32>
    %640 = arith.truncf %635 : vector<2x32xf32> to vector<2x32xbf16>
    %cst_211 = arith.constant dense<0.000000e+00> : vector<2x96xf32>
    %641 = tpu.matmul %640, %630, %cst_211 {dimension_numbers = #tpu.dot_dimension_numbers<[1], [0], [0], [1], [0, 0, 1, 1], [], []>} : vector<2x32xbf16>, vector<32x96xbf16>, vector<2x96xf32> -> vector<2x96xf32>
    %642 = vector.extract_strided_slice %636 {offsets = [0, 0], sizes = [2, 32], strides = [1, 1]} : vector<2x96xf32> to vector<2x32xf32>
    %643 = vector.extract_strided_slice %639 {offsets = [0, 0], sizes = [2, 32], strides = [1, 1]} : vector<2x96xf32> to vector<2x32xf32>
    %644 = arith.addf %642, %643 : vector<2x32xf32>
    %645 = arith.negf %644 : vector<2x32xf32>
    %646 = math.exp %645 : vector<2x32xf32>
    %cst_212 = arith.constant 1.000000e+00 : f32
    %647 = vector.broadcast %cst_212 : f32 to vector<2x32xf32>
    %648 = arith.addf %647, %646 : vector<2x32xf32>
    %649 = arith.divf %647, %648 : vector<2x32xf32>
    %650 = vector.extract_strided_slice %636 {offsets = [0, 32], sizes = [2, 32], strides = [1, 1]} : vector<2x96xf32> to vector<2x32xf32>
    %651 = vector.extract_strided_slice %639 {offsets = [0, 32], sizes = [2, 32], strides = [1, 1]} : vector<2x96xf32> to vector<2x32xf32>
    %652 = arith.addf %650, %651 : vector<2x32xf32>
    %653 = arith.negf %652 : vector<2x32xf32>
    %654 = math.exp %653 : vector<2x32xf32>
    %cst_213 = arith.constant 1.000000e+00 : f32
    %655 = vector.broadcast %cst_213 : f32 to vector<2x32xf32>
    %656 = arith.addf %655, %654 : vector<2x32xf32>
    %657 = arith.divf %655, %656 : vector<2x32xf32>
    %658 = vector.extract_strided_slice %636 {offsets = [0, 64], sizes = [2, 32], strides = [1, 1]} : vector<2x96xf32> to vector<2x32xf32>
    %659 = vector.extract_strided_slice %639 {offsets = [0, 64], sizes = [2, 32], strides = [1, 1]} : vector<2x96xf32> to vector<2x32xf32>
    %660 = vector.broadcast %632 : vector<1x32xf32> to vector<2x32xf32>
    %661 = arith.addf %659, %660 : vector<2x32xf32>
    %662 = arith.mulf %649, %661 : vector<2x32xf32>
    %663 = arith.addf %658, %662 : vector<2x32xf32>
    %664 = math.tanh %663 : vector<2x32xf32>
    %cst_214 = arith.constant 1.000000e+00 : f32
    %665 = vector.broadcast %cst_214 : f32 to vector<2x32xf32>
    %666 = arith.subf %665, %657 : vector<2x32xf32>
    %667 = arith.mulf %666, %664 : vector<2x32xf32>
    %668 = arith.mulf %657, %635 : vector<2x32xf32>
    %669 = arith.addf %667, %668 : vector<2x32xf32>
    %670 = vector.extract_strided_slice %637 {offsets = [0, 0], sizes = [2, 32], strides = [1, 1]} : vector<2x96xf32> to vector<2x32xf32>
    %671 = vector.extract_strided_slice %641 {offsets = [0, 0], sizes = [2, 32], strides = [1, 1]} : vector<2x96xf32> to vector<2x32xf32>
    %672 = arith.addf %670, %671 : vector<2x32xf32>
    %673 = arith.negf %672 : vector<2x32xf32>
    %674 = math.exp %673 : vector<2x32xf32>
    %cst_215 = arith.constant 1.000000e+00 : f32
    %675 = vector.broadcast %cst_215 : f32 to vector<2x32xf32>
    %676 = arith.addf %675, %674 : vector<2x32xf32>
    %677 = arith.divf %675, %676 : vector<2x32xf32>
    %678 = vector.extract_strided_slice %637 {offsets = [0, 32], sizes = [2, 32], strides = [1, 1]} : vector<2x96xf32> to vector<2x32xf32>
    %679 = vector.extract_strided_slice %641 {offsets = [0, 32], sizes = [2, 32], strides = [1, 1]} : vector<2x96xf32> to vector<2x32xf32>
    %680 = arith.addf %678, %679 : vector<2x32xf32>
    %681 = arith.negf %680 : vector<2x32xf32>
    %682 = math.exp %681 : vector<2x32xf32>
    %cst_216 = arith.constant 1.000000e+00 : f32
    %683 = vector.broadcast %cst_216 : f32 to vector<2x32xf32>
    %684 = arith.addf %683, %682 : vector<2x32xf32>
    %685 = arith.divf %683, %684 : vector<2x32xf32>
    %686 = vector.extract_strided_slice %637 {offsets = [0, 64], sizes = [2, 32], strides = [1, 1]} : vector<2x96xf32> to vector<2x32xf32>
    %687 = vector.extract_strided_slice %641 {offsets = [0, 64], sizes = [2, 32], strides = [1, 1]} : vector<2x96xf32> to vector<2x32xf32>
    %688 = vector.broadcast %634 : vector<1x32xf32> to vector<2x32xf32>
    %689 = arith.addf %687, %688 : vector<2x32xf32>
    %690 = arith.mulf %677, %689 : vector<2x32xf32>
    %691 = arith.addf %686, %690 : vector<2x32xf32>
    %692 = math.tanh %691 : vector<2x32xf32>
    %cst_217 = arith.constant 1.000000e+00 : f32
    %693 = vector.broadcast %cst_217 : f32 to vector<2x32xf32>
    %694 = arith.subf %693, %685 : vector<2x32xf32>
    %695 = arith.mulf %694, %692 : vector<2x32xf32>
    %696 = arith.mulf %685, %635 : vector<2x32xf32>
    %697 = arith.addf %695, %696 : vector<2x32xf32>
    %c1_i32_218 = arith.constant 1 : i32
    %c2_i32_219 = arith.constant 2 : i32
    %698 = arith.muli %c1_i32_218, %c2_i32_219 : i32
    %699 = arith.index_cast %698 : i32 to index
    %c0_220 = arith.constant 0 : index
    %700 = vector.load %arg13[%699, %c0_220] : memref<16x96xf32, #tpu.memory_space<vmem>>, vector<2x96xf32>
    %701 = arith.truncf %669 : vector<2x32xf32> to vector<2x32xbf16>
    %cst_221 = arith.constant dense<0.000000e+00> : vector<2x96xf32>
    %702 = tpu.matmul %701, %628, %cst_221 {dimension_numbers = #tpu.dot_dimension_numbers<[1], [0], [0], [1], [0, 0, 1, 1], [], []>} : vector<2x32xbf16>, vector<32x96xbf16>, vector<2x96xf32> -> vector<2x96xf32>
    %703 = vector.extract_strided_slice %700 {offsets = [0, 0], sizes = [2, 32], strides = [1, 1]} : vector<2x96xf32> to vector<2x32xf32>
    %704 = vector.extract_strided_slice %702 {offsets = [0, 0], sizes = [2, 32], strides = [1, 1]} : vector<2x96xf32> to vector<2x32xf32>
    %705 = arith.addf %703, %704 : vector<2x32xf32>
    %706 = arith.negf %705 : vector<2x32xf32>
    %707 = math.exp %706 : vector<2x32xf32>
    %cst_222 = arith.constant 1.000000e+00 : f32
    %708 = vector.broadcast %cst_222 : f32 to vector<2x32xf32>
    %709 = arith.addf %708, %707 : vector<2x32xf32>
    %710 = arith.divf %708, %709 : vector<2x32xf32>
    %711 = vector.extract_strided_slice %700 {offsets = [0, 32], sizes = [2, 32], strides = [1, 1]} : vector<2x96xf32> to vector<2x32xf32>
    %712 = vector.extract_strided_slice %702 {offsets = [0, 32], sizes = [2, 32], strides = [1, 1]} : vector<2x96xf32> to vector<2x32xf32>
    %713 = arith.addf %711, %712 : vector<2x32xf32>
    %714 = arith.negf %713 : vector<2x32xf32>
    %715 = math.exp %714 : vector<2x32xf32>
    %cst_223 = arith.constant 1.000000e+00 : f32
    %716 = vector.broadcast %cst_223 : f32 to vector<2x32xf32>
    %717 = arith.addf %716, %715 : vector<2x32xf32>
    %718 = arith.divf %716, %717 : vector<2x32xf32>
    %719 = vector.extract_strided_slice %700 {offsets = [0, 64], sizes = [2, 32], strides = [1, 1]} : vector<2x96xf32> to vector<2x32xf32>
    %720 = vector.extract_strided_slice %702 {offsets = [0, 64], sizes = [2, 32], strides = [1, 1]} : vector<2x96xf32> to vector<2x32xf32>
    %721 = vector.broadcast %632 : vector<1x32xf32> to vector<2x32xf32>
    %722 = arith.addf %720, %721 : vector<2x32xf32>
    %723 = arith.mulf %710, %722 : vector<2x32xf32>
    %724 = arith.addf %719, %723 : vector<2x32xf32>
    %725 = math.tanh %724 : vector<2x32xf32>
    %cst_224 = arith.constant 1.000000e+00 : f32
    %726 = vector.broadcast %cst_224 : f32 to vector<2x32xf32>
    %727 = arith.subf %726, %718 : vector<2x32xf32>
    %728 = arith.mulf %727, %725 : vector<2x32xf32>
    %729 = arith.mulf %718, %669 : vector<2x32xf32>
    %730 = arith.addf %728, %729 : vector<2x32xf32>
    %c2_i32_225 = arith.constant 2 : i32
    %c2_i32_226 = arith.constant 2 : i32
    %731 = arith.muli %c2_i32_225, %c2_i32_226 : i32
    %732 = arith.index_cast %731 : i32 to index
    %c0_227 = arith.constant 0 : index
    %733 = vector.load %arg13[%732, %c0_227] : memref<16x96xf32, #tpu.memory_space<vmem>>, vector<2x96xf32>
    %734 = arith.truncf %730 : vector<2x32xf32> to vector<2x32xbf16>
    %cst_228 = arith.constant dense<0.000000e+00> : vector<2x96xf32>
    %735 = tpu.matmul %734, %628, %cst_228 {dimension_numbers = #tpu.dot_dimension_numbers<[1], [0], [0], [1], [0, 0, 1, 1], [], []>} : vector<2x32xbf16>, vector<32x96xbf16>, vector<2x96xf32> -> vector<2x96xf32>
    %736 = vector.extract_strided_slice %733 {offsets = [0, 0], sizes = [2, 32], strides = [1, 1]} : vector<2x96xf32> to vector<2x32xf32>
    %737 = vector.extract_strided_slice %735 {offsets = [0, 0], sizes = [2, 32], strides = [1, 1]} : vector<2x96xf32> to vector<2x32xf32>
    %738 = arith.addf %736, %737 : vector<2x32xf32>
    %739 = arith.negf %738 : vector<2x32xf32>
    %740 = math.exp %739 : vector<2x32xf32>
    %cst_229 = arith.constant 1.000000e+00 : f32
    %741 = vector.broadcast %cst_229 : f32 to vector<2x32xf32>
    %742 = arith.addf %741, %740 : vector<2x32xf32>
    %743 = arith.divf %741, %742 : vector<2x32xf32>
    %744 = vector.extract_strided_slice %733 {offsets = [0, 32], sizes = [2, 32], strides = [1, 1]} : vector<2x96xf32> to vector<2x32xf32>
    %745 = vector.extract_strided_slice %735 {offsets = [0, 32], sizes = [2, 32], strides = [1, 1]} : vector<2x96xf32> to vector<2x32xf32>
    %746 = arith.addf %744, %745 : vector<2x32xf32>
    %747 = arith.negf %746 : vector<2x32xf32>
    %748 = math.exp %747 : vector<2x32xf32>
    %cst_230 = arith.constant 1.000000e+00 : f32
    %749 = vector.broadcast %cst_230 : f32 to vector<2x32xf32>
    %750 = arith.addf %749, %748 : vector<2x32xf32>
    %751 = arith.divf %749, %750 : vector<2x32xf32>
    %752 = vector.extract_strided_slice %733 {offsets = [0, 64], sizes = [2, 32], strides = [1, 1]} : vector<2x96xf32> to vector<2x32xf32>
    %753 = vector.extract_strided_slice %735 {offsets = [0, 64], sizes = [2, 32], strides = [1, 1]} : vector<2x96xf32> to vector<2x32xf32>
    %754 = vector.broadcast %632 : vector<1x32xf32> to vector<2x32xf32>
    %755 = arith.addf %753, %754 : vector<2x32xf32>
    %756 = arith.mulf %743, %755 : vector<2x32xf32>
    %757 = arith.addf %752, %756 : vector<2x32xf32>
    %758 = math.tanh %757 : vector<2x32xf32>
    %cst_231 = arith.constant 1.000000e+00 : f32
    %759 = vector.broadcast %cst_231 : f32 to vector<2x32xf32>
    %760 = arith.subf %759, %751 : vector<2x32xf32>
    %761 = arith.mulf %760, %758 : vector<2x32xf32>
    %762 = arith.mulf %751, %730 : vector<2x32xf32>
    %763 = arith.addf %761, %762 : vector<2x32xf32>
    %c3_i32_232 = arith.constant 3 : i32
    %c2_i32_233 = arith.constant 2 : i32
    %764 = arith.muli %c3_i32_232, %c2_i32_233 : i32
    %765 = arith.index_cast %764 : i32 to index
    %c0_234 = arith.constant 0 : index
    %766 = vector.load %arg13[%765, %c0_234] : memref<16x96xf32, #tpu.memory_space<vmem>>, vector<2x96xf32>
    %767 = arith.truncf %763 : vector<2x32xf32> to vector<2x32xbf16>
    %cst_235 = arith.constant dense<0.000000e+00> : vector<2x96xf32>
    %768 = tpu.matmul %767, %628, %cst_235 {dimension_numbers = #tpu.dot_dimension_numbers<[1], [0], [0], [1], [0, 0, 1, 1], [], []>} : vector<2x32xbf16>, vector<32x96xbf16>, vector<2x96xf32> -> vector<2x96xf32>
    %769 = vector.extract_strided_slice %766 {offsets = [0, 0], sizes = [2, 32], strides = [1, 1]} : vector<2x96xf32> to vector<2x32xf32>
    %770 = vector.extract_strided_slice %768 {offsets = [0, 0], sizes = [2, 32], strides = [1, 1]} : vector<2x96xf32> to vector<2x32xf32>
    %771 = arith.addf %769, %770 : vector<2x32xf32>
    %772 = arith.negf %771 : vector<2x32xf32>
    %773 = math.exp %772 : vector<2x32xf32>
    %cst_236 = arith.constant 1.000000e+00 : f32
    %774 = vector.broadcast %cst_236 : f32 to vector<2x32xf32>
    %775 = arith.addf %774, %773 : vector<2x32xf32>
    %776 = arith.divf %774, %775 : vector<2x32xf32>
    %777 = vector.extract_strided_slice %766 {offsets = [0, 32], sizes = [2, 32], strides = [1, 1]} : vector<2x96xf32> to vector<2x32xf32>
    %778 = vector.extract_strided_slice %768 {offsets = [0, 32], sizes = [2, 32], strides = [1, 1]} : vector<2x96xf32> to vector<2x32xf32>
    %779 = arith.addf %777, %778 : vector<2x32xf32>
    %780 = arith.negf %779 : vector<2x32xf32>
    %781 = math.exp %780 : vector<2x32xf32>
    %cst_237 = arith.constant 1.000000e+00 : f32
    %782 = vector.broadcast %cst_237 : f32 to vector<2x32xf32>
    %783 = arith.addf %782, %781 : vector<2x32xf32>
    %784 = arith.divf %782, %783 : vector<2x32xf32>
    %785 = vector.extract_strided_slice %766 {offsets = [0, 64], sizes = [2, 32], strides = [1, 1]} : vector<2x96xf32> to vector<2x32xf32>
    %786 = vector.extract_strided_slice %768 {offsets = [0, 64], sizes = [2, 32], strides = [1, 1]} : vector<2x96xf32> to vector<2x32xf32>
    %787 = vector.broadcast %632 : vector<1x32xf32> to vector<2x32xf32>
    %788 = arith.addf %786, %787 : vector<2x32xf32>
    %789 = arith.mulf %776, %788 : vector<2x32xf32>
    %790 = arith.addf %785, %789 : vector<2x32xf32>
    %791 = math.tanh %790 : vector<2x32xf32>
    %cst_238 = arith.constant 1.000000e+00 : f32
    %792 = vector.broadcast %cst_238 : f32 to vector<2x32xf32>
    %793 = arith.subf %792, %784 : vector<2x32xf32>
    %794 = arith.mulf %793, %791 : vector<2x32xf32>
    %795 = arith.mulf %784, %763 : vector<2x32xf32>
    %796 = arith.addf %794, %795 : vector<2x32xf32>
    %c4_i32_239 = arith.constant 4 : i32
    %c2_i32_240 = arith.constant 2 : i32
    %797 = arith.muli %c4_i32_239, %c2_i32_240 : i32
    %798 = arith.index_cast %797 : i32 to index
    %c0_241 = arith.constant 0 : index
    %799 = vector.load %arg13[%798, %c0_241] : memref<16x96xf32, #tpu.memory_space<vmem>>, vector<2x96xf32>
    %800 = arith.truncf %796 : vector<2x32xf32> to vector<2x32xbf16>
    %cst_242 = arith.constant dense<0.000000e+00> : vector<2x96xf32>
    %801 = tpu.matmul %800, %628, %cst_242 {dimension_numbers = #tpu.dot_dimension_numbers<[1], [0], [0], [1], [0, 0, 1, 1], [], []>} : vector<2x32xbf16>, vector<32x96xbf16>, vector<2x96xf32> -> vector<2x96xf32>
    %802 = vector.extract_strided_slice %799 {offsets = [0, 0], sizes = [2, 32], strides = [1, 1]} : vector<2x96xf32> to vector<2x32xf32>
    %803 = vector.extract_strided_slice %801 {offsets = [0, 0], sizes = [2, 32], strides = [1, 1]} : vector<2x96xf32> to vector<2x32xf32>
    %804 = arith.addf %802, %803 : vector<2x32xf32>
    %805 = arith.negf %804 : vector<2x32xf32>
    %806 = math.exp %805 : vector<2x32xf32>
    %cst_243 = arith.constant 1.000000e+00 : f32
    %807 = vector.broadcast %cst_243 : f32 to vector<2x32xf32>
    %808 = arith.addf %807, %806 : vector<2x32xf32>
    %809 = arith.divf %807, %808 : vector<2x32xf32>
    %810 = vector.extract_strided_slice %799 {offsets = [0, 32], sizes = [2, 32], strides = [1, 1]} : vector<2x96xf32> to vector<2x32xf32>
    %811 = vector.extract_strided_slice %801 {offsets = [0, 32], sizes = [2, 32], strides = [1, 1]} : vector<2x96xf32> to vector<2x32xf32>
    %812 = arith.addf %810, %811 : vector<2x32xf32>
    %813 = arith.negf %812 : vector<2x32xf32>
    %814 = math.exp %813 : vector<2x32xf32>
    %cst_244 = arith.constant 1.000000e+00 : f32
    %815 = vector.broadcast %cst_244 : f32 to vector<2x32xf32>
    %816 = arith.addf %815, %814 : vector<2x32xf32>
    %817 = arith.divf %815, %816 : vector<2x32xf32>
    %818 = vector.extract_strided_slice %799 {offsets = [0, 64], sizes = [2, 32], strides = [1, 1]} : vector<2x96xf32> to vector<2x32xf32>
    %819 = vector.extract_strided_slice %801 {offsets = [0, 64], sizes = [2, 32], strides = [1, 1]} : vector<2x96xf32> to vector<2x32xf32>
    %820 = vector.broadcast %632 : vector<1x32xf32> to vector<2x32xf32>
    %821 = arith.addf %819, %820 : vector<2x32xf32>
    %822 = arith.mulf %809, %821 : vector<2x32xf32>
    %823 = arith.addf %818, %822 : vector<2x32xf32>
    %824 = math.tanh %823 : vector<2x32xf32>
    %cst_245 = arith.constant 1.000000e+00 : f32
    %825 = vector.broadcast %cst_245 : f32 to vector<2x32xf32>
    %826 = arith.subf %825, %817 : vector<2x32xf32>
    %827 = arith.mulf %826, %824 : vector<2x32xf32>
    %828 = arith.mulf %817, %796 : vector<2x32xf32>
    %829 = arith.addf %827, %828 : vector<2x32xf32>
    %c5_i32_246 = arith.constant 5 : i32
    %c2_i32_247 = arith.constant 2 : i32
    %830 = arith.muli %c5_i32_246, %c2_i32_247 : i32
    %831 = arith.index_cast %830 : i32 to index
    %c0_248 = arith.constant 0 : index
    %832 = vector.load %arg13[%831, %c0_248] : memref<16x96xf32, #tpu.memory_space<vmem>>, vector<2x96xf32>
    %833 = arith.truncf %829 : vector<2x32xf32> to vector<2x32xbf16>
    %cst_249 = arith.constant dense<0.000000e+00> : vector<2x96xf32>
    %834 = tpu.matmul %833, %628, %cst_249 {dimension_numbers = #tpu.dot_dimension_numbers<[1], [0], [0], [1], [0, 0, 1, 1], [], []>} : vector<2x32xbf16>, vector<32x96xbf16>, vector<2x96xf32> -> vector<2x96xf32>
    %835 = vector.extract_strided_slice %832 {offsets = [0, 0], sizes = [2, 32], strides = [1, 1]} : vector<2x96xf32> to vector<2x32xf32>
    %836 = vector.extract_strided_slice %834 {offsets = [0, 0], sizes = [2, 32], strides = [1, 1]} : vector<2x96xf32> to vector<2x32xf32>
    %837 = arith.addf %835, %836 : vector<2x32xf32>
    %838 = arith.negf %837 : vector<2x32xf32>
    %839 = math.exp %838 : vector<2x32xf32>
    %cst_250 = arith.constant 1.000000e+00 : f32
    %840 = vector.broadcast %cst_250 : f32 to vector<2x32xf32>
    %841 = arith.addf %840, %839 : vector<2x32xf32>
    %842 = arith.divf %840, %841 : vector<2x32xf32>
    %843 = vector.extract_strided_slice %832 {offsets = [0, 32], sizes = [2, 32], strides = [1, 1]} : vector<2x96xf32> to vector<2x32xf32>
    %844 = vector.extract_strided_slice %834 {offsets = [0, 32], sizes = [2, 32], strides = [1, 1]} : vector<2x96xf32> to vector<2x32xf32>
    %845 = arith.addf %843, %844 : vector<2x32xf32>
    %846 = arith.negf %845 : vector<2x32xf32>
    %847 = math.exp %846 : vector<2x32xf32>
    %cst_251 = arith.constant 1.000000e+00 : f32
    %848 = vector.broadcast %cst_251 : f32 to vector<2x32xf32>
    %849 = arith.addf %848, %847 : vector<2x32xf32>
    %850 = arith.divf %848, %849 : vector<2x32xf32>
    %851 = vector.extract_strided_slice %832 {offsets = [0, 64], sizes = [2, 32], strides = [1, 1]} : vector<2x96xf32> to vector<2x32xf32>
    %852 = vector.extract_strided_slice %834 {offsets = [0, 64], sizes = [2, 32], strides = [1, 1]} : vector<2x96xf32> to vector<2x32xf32>
    %853 = vector.broadcast %632 : vector<1x32xf32> to vector<2x32xf32>
    %854 = arith.addf %852, %853 : vector<2x32xf32>
    %855 = arith.mulf %842, %854 : vector<2x32xf32>
    %856 = arith.addf %851, %855 : vector<2x32xf32>
    %857 = math.tanh %856 : vector<2x32xf32>
    %cst_252 = arith.constant 1.000000e+00 : f32
    %858 = vector.broadcast %cst_252 : f32 to vector<2x32xf32>
    %859 = arith.subf %858, %850 : vector<2x32xf32>
    %860 = arith.mulf %859, %857 : vector<2x32xf32>
    %861 = arith.mulf %850, %829 : vector<2x32xf32>
    %862 = arith.addf %860, %861 : vector<2x32xf32>
    %c6_i32_253 = arith.constant 6 : i32
    %c2_i32_254 = arith.constant 2 : i32
    %863 = arith.muli %c6_i32_253, %c2_i32_254 : i32
    %864 = arith.index_cast %863 : i32 to index
    %c0_255 = arith.constant 0 : index
    %865 = vector.load %arg13[%864, %c0_255] : memref<16x96xf32, #tpu.memory_space<vmem>>, vector<2x96xf32>
    %866 = arith.truncf %862 : vector<2x32xf32> to vector<2x32xbf16>
    %cst_256 = arith.constant dense<0.000000e+00> : vector<2x96xf32>
    %867 = tpu.matmul %866, %628, %cst_256 {dimension_numbers = #tpu.dot_dimension_numbers<[1], [0], [0], [1], [0, 0, 1, 1], [], []>} : vector<2x32xbf16>, vector<32x96xbf16>, vector<2x96xf32> -> vector<2x96xf32>
    %868 = vector.extract_strided_slice %865 {offsets = [0, 0], sizes = [2, 32], strides = [1, 1]} : vector<2x96xf32> to vector<2x32xf32>
    %869 = vector.extract_strided_slice %867 {offsets = [0, 0], sizes = [2, 32], strides = [1, 1]} : vector<2x96xf32> to vector<2x32xf32>
    %870 = arith.addf %868, %869 : vector<2x32xf32>
    %871 = arith.negf %870 : vector<2x32xf32>
    %872 = math.exp %871 : vector<2x32xf32>
    %cst_257 = arith.constant 1.000000e+00 : f32
    %873 = vector.broadcast %cst_257 : f32 to vector<2x32xf32>
    %874 = arith.addf %873, %872 : vector<2x32xf32>
    %875 = arith.divf %873, %874 : vector<2x32xf32>
    %876 = vector.extract_strided_slice %865 {offsets = [0, 32], sizes = [2, 32], strides = [1, 1]} : vector<2x96xf32> to vector<2x32xf32>
    %877 = vector.extract_strided_slice %867 {offsets = [0, 32], sizes = [2, 32], strides = [1, 1]} : vector<2x96xf32> to vector<2x32xf32>
    %878 = arith.addf %876, %877 : vector<2x32xf32>
    %879 = arith.negf %878 : vector<2x32xf32>
    %880 = math.exp %879 : vector<2x32xf32>
    %cst_258 = arith.constant 1.000000e+00 : f32
    %881 = vector.broadcast %cst_258 : f32 to vector<2x32xf32>
    %882 = arith.addf %881, %880 : vector<2x32xf32>
    %883 = arith.divf %881, %882 : vector<2x32xf32>
    %884 = vector.extract_strided_slice %865 {offsets = [0, 64], sizes = [2, 32], strides = [1, 1]} : vector<2x96xf32> to vector<2x32xf32>
    %885 = vector.extract_strided_slice %867 {offsets = [0, 64], sizes = [2, 32], strides = [1, 1]} : vector<2x96xf32> to vector<2x32xf32>
    %886 = vector.broadcast %632 : vector<1x32xf32> to vector<2x32xf32>
    %887 = arith.addf %885, %886 : vector<2x32xf32>
    %888 = arith.mulf %875, %887 : vector<2x32xf32>
    %889 = arith.addf %884, %888 : vector<2x32xf32>
    %890 = math.tanh %889 : vector<2x32xf32>
    %cst_259 = arith.constant 1.000000e+00 : f32
    %891 = vector.broadcast %cst_259 : f32 to vector<2x32xf32>
    %892 = arith.subf %891, %883 : vector<2x32xf32>
    %893 = arith.mulf %892, %890 : vector<2x32xf32>
    %894 = arith.mulf %883, %862 : vector<2x32xf32>
    %895 = arith.addf %893, %894 : vector<2x32xf32>
    %c7_i32_260 = arith.constant 7 : i32
    %c2_i32_261 = arith.constant 2 : i32
    %896 = arith.muli %c7_i32_260, %c2_i32_261 : i32
    %897 = arith.index_cast %896 : i32 to index
    %c0_262 = arith.constant 0 : index
    %898 = vector.load %arg13[%897, %c0_262] : memref<16x96xf32, #tpu.memory_space<vmem>>, vector<2x96xf32>
    %899 = arith.truncf %895 : vector<2x32xf32> to vector<2x32xbf16>
    %cst_263 = arith.constant dense<0.000000e+00> : vector<2x96xf32>
    %900 = tpu.matmul %899, %628, %cst_263 {dimension_numbers = #tpu.dot_dimension_numbers<[1], [0], [0], [1], [0, 0, 1, 1], [], []>} : vector<2x32xbf16>, vector<32x96xbf16>, vector<2x96xf32> -> vector<2x96xf32>
    %901 = vector.extract_strided_slice %898 {offsets = [0, 0], sizes = [2, 32], strides = [1, 1]} : vector<2x96xf32> to vector<2x32xf32>
    %902 = vector.extract_strided_slice %900 {offsets = [0, 0], sizes = [2, 32], strides = [1, 1]} : vector<2x96xf32> to vector<2x32xf32>
    %903 = arith.addf %901, %902 : vector<2x32xf32>
    %904 = arith.negf %903 : vector<2x32xf32>
    %905 = math.exp %904 : vector<2x32xf32>
    %cst_264 = arith.constant 1.000000e+00 : f32
    %906 = vector.broadcast %cst_264 : f32 to vector<2x32xf32>
    %907 = arith.addf %906, %905 : vector<2x32xf32>
    %908 = arith.divf %906, %907 : vector<2x32xf32>
    %909 = vector.extract_strided_slice %898 {offsets = [0, 32], sizes = [2, 32], strides = [1, 1]} : vector<2x96xf32> to vector<2x32xf32>
    %910 = vector.extract_strided_slice %900 {offsets = [0, 32], sizes = [2, 32], strides = [1, 1]} : vector<2x96xf32> to vector<2x32xf32>
    %911 = arith.addf %909, %910 : vector<2x32xf32>
    %912 = arith.negf %911 : vector<2x32xf32>
    %913 = math.exp %912 : vector<2x32xf32>
    %cst_265 = arith.constant 1.000000e+00 : f32
    %914 = vector.broadcast %cst_265 : f32 to vector<2x32xf32>
    %915 = arith.addf %914, %913 : vector<2x32xf32>
    %916 = arith.divf %914, %915 : vector<2x32xf32>
    %917 = vector.extract_strided_slice %898 {offsets = [0, 64], sizes = [2, 32], strides = [1, 1]} : vector<2x96xf32> to vector<2x32xf32>
    %918 = vector.extract_strided_slice %900 {offsets = [0, 64], sizes = [2, 32], strides = [1, 1]} : vector<2x96xf32> to vector<2x32xf32>
    %919 = vector.broadcast %632 : vector<1x32xf32> to vector<2x32xf32>
    %920 = arith.addf %918, %919 : vector<2x32xf32>
    %921 = arith.mulf %908, %920 : vector<2x32xf32>
    %922 = arith.addf %917, %921 : vector<2x32xf32>
    %923 = math.tanh %922 : vector<2x32xf32>
    %cst_266 = arith.constant 1.000000e+00 : f32
    %924 = vector.broadcast %cst_266 : f32 to vector<2x32xf32>
    %925 = arith.subf %924, %916 : vector<2x32xf32>
    %926 = arith.mulf %925, %923 : vector<2x32xf32>
    %927 = arith.mulf %916, %895 : vector<2x32xf32>
    %928 = arith.addf %926, %927 : vector<2x32xf32>
    %c7_i32_267 = arith.constant 7 : i32
    %c1_268 = arith.constant 1 : index
    %c0_269 = arith.constant 0 : index
    %c0_270 = arith.constant 0 : index
    %929 = vector.load %arg10[%c1_268, %c0_269, %c0_270] : memref<2x2x32xf32, #tpu.memory_space<vmem>>, vector<1x2x32xf32>
    %930 = vector.shape_cast %929 : vector<1x2x32xf32> to vector<2x32xf32>
    %931 = vector.shape_cast %697 : vector<2x32xf32> to vector<1x2x32xf32>
    tpu.vector_store %arg10[%c1_268, %c0_269, %c0_270], %931 {strides = array<i32>} : memref<2x2x32xf32, #tpu.memory_space<vmem>>, vector<1x2x32xf32>,
    %c0_271 = arith.constant 0 : index
    %c0_272 = arith.constant 0 : index
    %c0_273 = arith.constant 0 : index
    %932 = vector.load %arg10[%c0_271, %c0_272, %c0_273] : memref<2x2x32xf32, #tpu.memory_space<vmem>>, vector<1x2x32xf32>
    %933 = vector.shape_cast %932 : vector<1x2x32xf32> to vector<2x32xf32>
    %934 = vector.shape_cast %928 : vector<2x32xf32> to vector<1x2x32xf32>
    tpu.vector_store %arg10[%c0_271, %c0_272, %c0_273], %934 {strides = array<i32>} : memref<2x2x32xf32, #tpu.memory_space<vmem>>, vector<1x2x32xf32>,
    return
  }
  func.func @transform_0(%arg0: i32) -> (i32, i32) {
    %c0_i32 = arith.constant 0 : i32
    %c0_i32_0 = arith.constant 0 : i32
    %c0_i32_1 = arith.constant 0 : i32
    return %c0_i32, %c0_i32_0 : i32, i32
  }
  func.func @transform_1(%arg0: i32) -> (i32, i32, i32) {
    %c0_i32 = arith.constant 0 : i32
    %c0_i32_0 = arith.constant 0 : i32
    %c0_i32_1 = arith.constant 0 : i32
    %c0_i32_2 = arith.constant 0 : i32
    return %c0_i32, %c0_i32_0, %c0_i32_1 : i32, i32, i32
  }
  func.func @transform_2(%arg0: i32) -> (i32, i32, i32) {
    %c0_i32 = arith.constant 0 : i32
    %c0_i32_0 = arith.constant 0 : i32
    %c0_i32_1 = arith.constant 0 : i32
    %c0_i32_2 = arith.constant 0 : i32
    return %c0_i32, %c0_i32_0, %c0_i32_1 : i32, i32, i32
  }
  func.func @transform_3(%arg0: i32) -> (i32, i32, i32) {
    %c0_i32 = arith.constant 0 : i32
    %c0_i32_0 = arith.constant 0 : i32
    %c0_i32_1 = arith.constant 0 : i32
    %c0_i32_2 = arith.constant 0 : i32
    return %c0_i32, %c0_i32_0, %c0_i32_1 : i32, i32, i32
  }
  func.func @transform_4(%arg0: i32) -> (i32, i32, i32) {
    %c0_i32 = arith.constant 0 : i32
    %c0_i32_0 = arith.constant 0 : i32
    %c0_i32_1 = arith.constant 0 : i32
    %c0_i32_2 = arith.constant 0 : i32
    return %c0_i32, %c0_i32_0, %c0_i32_1 : i32, i32, i32
  }
  func.func @transform_5(%arg0: i32) -> (i32, i32, i32) {
    %c0_i32 = arith.constant 0 : i32
    %c0_i32_0 = arith.constant 0 : i32
    %c0_i32_1 = arith.constant 0 : i32
    %c0_i32_2 = arith.constant 0 : i32
    return %c0_i32, %c0_i32_0, %c0_i32_1 : i32, i32, i32
  }
  func.func @transform_6(%arg0: i32) -> (i32, i32, i32) {
    %c0_i32 = arith.constant 0 : i32
    %c0_i32_0 = arith.constant 0 : i32
    %c0_i32_1 = arith.constant 0 : i32
    %c0_i32_2 = arith.constant 0 : i32
    return %c0_i32, %c0_i32_0, %c0_i32_1 : i32, i32, i32
  }
  func.func @transform_7(%arg0: i32) -> (i32, i32, i32) {
    %c0_i32 = arith.constant 0 : i32
    %c0_i32_0 = arith.constant 0 : i32
    %c0_i32_1 = arith.constant 0 : i32
    %c0_i32_2 = arith.constant 0 : i32
    return %c0_i32, %c0_i32_0, %c0_i32_1 : i32, i32, i32
  }
  func.func @transform_8(%arg0: i32) -> (i32, i32, i32) {
    %c0_i32 = arith.constant 0 : i32
    %c0_i32_0 = arith.constant 0 : i32
    %c0_i32_1 = arith.constant 0 : i32
    %c0_i32_2 = arith.constant 0 : i32
    return %c0_i32, %c0_i32_0, %c0_i32_1 : i32, i32, i32
  }
  func.func @transform_9(%arg0: i32) -> (i32, i32, i32) {
    %c0_i32 = arith.constant 0 : i32
    %c0_i32_0 = arith.constant 0 : i32
    %c0_i32_1 = arith.constant 0 : i32
    %c0_i32_2 = arith.constant 0 : i32
    return %c0_i32, %c0_i32_0, %c0_i32_1 : i32, i32, i32
  }
}

</mosaic_0001>

<llo_original>
// kernel: bilstm_text_embedding_forward.1
$region0: #{bilstm_text_embedding_forward.1}
  #allocation0 [shape = 'u32[]', space=smem, size = 0x4, offset = 0x4, fixed_abs, tag = 'smem constant byte address 0x4 - core index']
  #allocation1 [shape = 'u32[144,128]{1,0:T(1,128)}', space=vmem, size = 0x12000, scoped, tag = 'internal scratch']
  #allocation2 [shape = 'f32[16,96]{1,0:T(8,128)}', space=vmem, size = 0x2000, scoped, tag = 'scratch operand']
  #allocation3 [shape = 'f32[16,96]{1,0:T(8,128)}', space=vmem, size = 0x2000, scoped, tag = 'scratch operand']
  #allocation4 [shape = 'f32[16,96]{1,0:T(8,128)}', space=vmem, size = 0x2000, scoped, tag = 'scratch operand']
  #allocation5 [shape = 'f32[16,96]{1,0:T(8,128)}', space=vmem, size = 0x2000, scoped, tag = 'scratch operand']
  #allocation6 [shape = 'f32[16,32]{1,0:T(8,128)}', space=vmem, size = 0x2000, scoped, tag = 'scratch operand']
  #allocation7 [shape = 'f32[16,32]{1,0:T(8,128)}', space=vmem, size = 0x2000, scoped, tag = 'scratch operand']
  %s0 = inlined_call_operand.vmem [shape: f32[16,16], index: 0, kind: input, shape index: {}]
  %s1 = inlined_call_operand.vmem [shape: f32[2,16,96], index: 1, kind: input, shape index: {}]
  %s2 = inlined_call_operand.vmem [shape: f32[2,1,96], index: 2, kind: input, shape index: {}]
  %s3 = inlined_call_operand.hbm [shape: bf16[2,32,96], index: 3, kind: input, shape index: {}]
  %s4 = inlined_call_operand.vmem [shape: f32[2,1,32], index: 4, kind: input, shape index: {}]
  %s5 = inlined_call_operand.hbm [shape: f32[4,32,96], index: 5, kind: input, shape index: {}]
  %s6 = inlined_call_operand.vmem [shape: f32[2,1,96], index: 6, kind: input, shape index: {}]
  %s7 = inlined_call_operand.hbm [shape: bf16[2,32,96], index: 7, kind: input, shape index: {}]
  %s8 = inlined_call_operand.vmem [shape: f32[2,1,32], index: 8, kind: input, shape index: {}]
  %s9 = inlined_call_operand.vmem [shape: f32[2,2,32], index: 9, kind: output, shape index: {}]
  %s10 = sld [smem:[#allocation0]]
  $region58: #{bilstm_text_embedding_forward.1} parent=0
    _
  %s12 = ssub.s32 1, %s10
  %s13 = scalar_select 0, %s12, %s10
  $region1: #{bilstm_text_embedding_forward.1} parent=0
    #allocation8 [shape = 'u8[16384]{0}', space=vmem, size = 0x4000, scoped, tag = 'input window, operand 3, single buffered']
    #allocation9 [shape = 's32[1]{0}', space=sflag, size = 0x4, scoped, tag = 'scoped memory for bilstm_text_embedding_forward.1']
    #allocation10 [shape = 'u8[65536]{0}', space=vmem, size = 0x10000, scoped, tag = 'input window, operand 5, single buffered']
    #allocation11 [shape = 's32[1]{0}', space=sflag, size = 0x4, scoped, tag = 'scoped memory for bilstm_text_embedding_forward.1']
    #allocation12 [shape = 'u8[16384]{0}', space=vmem, size = 0x4000, scoped, tag = 'input window, operand 7, single buffered']
    %14 = vsyncpa [#allocation9], 0
    %15 = vsyncpa [#allocation11], 0
    // Predicated region
    $region2: #{bilstm_text_embedding_forward.1} parent=1 // pred_check
      _
    $region3: #{bilstm_text_embedding_forward.1} parent=1 // pred_check_branch
      %17 = sbr.rel (0) target = $region5
    $region4: #{bilstm_text_embedding_forward.1} parent=1 // pred_region
      _
    $region5: #{bilstm_text_embedding_forward.1} parent=1 // pred_fallthru
      _
    // Predicated region
    $region6: #{bilstm_text_embedding_forward.1} parent=1 // pred_check
      _
    $region7: #{bilstm_text_embedding_forward.1} parent=1 // pred_check_branch
      %19 = sbr.rel (0) target = $region9
    $region8: #{bilstm_text_embedding_forward.1} parent=1 // pred_region
      _
    $region9: #{bilstm_text_embedding_forward.1} parent=1 // pred_fallthru
      _
    // Predicated region
    $region10: #{bilstm_text_embedding_forward.1} parent=1 // pred_check
      _
    $region11: #{bilstm_text_embedding_forward.1} parent=1 // pred_check_branch
      %21 = sbr.rel (0) target = $region13
    $region12: #{bilstm_text_embedding_forward.1} parent=1 // pred_region
      _
    $region13: #{bilstm_text_embedding_forward.1} parent=1 // pred_fallthru
      _
    // Predicated region
    $region14: #{bilstm_text_embedding_forward.1} parent=1 // pred_check
      _
    $region15: #{bilstm_text_embedding_forward.1} parent=1 // pred_check_branch
      %23 = sbr.rel (0) target = $region17
    $region16: #{bilstm_text_embedding_forward.1} parent=1 // pred_region
      %s25 = ssub.s32 512, 512
      %26 = vsyncadd [#allocation9], %s25
      %s27 = sshll.u32 [#allocation8], 4
      %s28 = int_to_ptr.vmem [resolvable:$true] %s27
      %33 = dma.hbm_to_vmem [thread:$0]  %s3, 512, %s28, [#allocation9], 64, 64, 4
    $region17: #{bilstm_text_embedding_forward.1} parent=1 // pred_fallthru
      _
    // Predicated region
    $region18: #{bilstm_text_embedding_forward.1} parent=1 // pred_check
      _
    $region19: #{bilstm_text_embedding_forward.1} parent=1 // pred_check_branch
      %35 = sbr.rel (0) target = $region21
    $region20: #{bilstm_text_embedding_forward.1} parent=1 // pred_region
      _
    $region21: #{bilstm_text_embedding_forward.1} parent=1 // pred_fallthru
      _
    // Predicated region
    $region22: #{bilstm_text_embedding_forward.1} parent=1 // pred_check
      _
    $region23: #{bilstm_text_embedding_forward.1} parent=1 // pred_check_branch
      %37 = sbr.rel (0) target = $region25
    $region24: #{bilstm_text_embedding_forward.1} parent=1 // pred_region
      %s39 = ssub.s32 2048, 2048
      %40 = vsyncadd [#allocation11], %s39
      %s41 = sshll.u32 [#allocation10], 4
      %s42 = int_to_ptr.vmem [resolvable:$true] %s41
      %47 = dma.hbm_to_vmem [thread:$0]  %s5, 2048, %s42, [#allocation11], 128, 128, 8
    $region25: #{bilstm_text_embedding_forward.1} parent=1 // pred_fallthru
      _
    // Predicated region
    $region26: #{bilstm_text_embedding_forward.1} parent=1 // pred_check
      _
    $region27: #{bilstm_text_embedding_forward.1} parent=1 // pred_check_branch
      %49 = sbr.rel (0) target = $region29
    $region28: #{bilstm_text_embedding_forward.1} parent=1 // pred_region
      _
    $region29: #{bilstm_text_embedding_forward.1} parent=1 // pred_fallthru
      _
    // Predicated region
    $region30: #{bilstm_text_embedding_forward.1} parent=1 // pred_check
      _
    $region31: #{bilstm_text_embedding_forward.1} parent=1 // pred_check_branch
      %51 = sbr.rel (0) target = $region33
    $region32: #{bilstm_text_embedding_forward.1} parent=1 // pred_region
      %s53 = ssub.s32 512, 512
      %54 = vsyncadd [#allocation11], %s53
      %s55 = sshll.u32 [#allocation12], 4
      %s56 = int_to_ptr.vmem [resolvable:$true] %s55
      %61 = dma.hbm_to_vmem [thread:$0]  %s7, 512, %s56, [#allocation11], 64, 64, 4
    $region33: #{bilstm_text_embedding_forward.1} parent=1 // pred_fallthru
      _
    // Predicated region
    $region34: #{bilstm_text_embedding_forward.1} parent=1 // pred_check
      _
    $region35: #{bilstm_text_embedding_forward.1} parent=1 // pred_check_branch
      %63 = sbr.rel (0) target = $region37
    $region36: #{bilstm_text_embedding_forward.1} parent=1 // pred_region
      _
    $region37: #{bilstm_text_embedding_forward.1} parent=1 // pred_fallthru
      _
    // Predicated region
    $region38: #{bilstm_text_embedding_forward.1} parent=1 // pred_check
      _
    $region39: #{bilstm_text_embedding_forward.1} parent=1 // pred_check_branch
      %65 = sbr.rel (0) target = $region41
    $region40: #{bilstm_text_embedding_forward.1} parent=1 // pred_region
      %66 = dma.done [#allocation9], 512
    $region41: #{bilstm_text_embedding_forward.1} parent=1 // pred_fallthru
      _
    // Predicated region
    $region42: #{bilstm_text_embedding_forward.1} parent=1 // pred_check
      _
    $region43: #{bilstm_text_embedding_forward.1} parent=1 // pred_check_branch
      %68 = sbr.rel (0) target = $region45
    $region44: #{bilstm_text_embedding_forward.1} parent=1 // pred_region
      %69 = dma.done [#allocation11], 2048
    $region45: #{bilstm_text_embedding_forward.1} parent=1 // pred_fallthru
      _
    // Predicated region
    $region46: #{bilstm_text_embedding_forward.1} parent=1 // pred_check
      _
    $region47: #{bilstm_text_embedding_forward.1} parent=1 // pred_check_branch
      %71 = sbr.rel (0) target = $region49
    $region48: #{bilstm_text_embedding_forward.1} parent=1 // pred_region
      %72 = dma.done [#allocation11], 512
    $region49: #{bilstm_text_embedding_forward.1} parent=1 // pred_fallthru
      _
    %v74 = vld [vmem:[%s0] sm:$0xff]
    %v75 = vld [vmem:[%s0 + $0x8] sm:$0xff]
    %v76 = vld [vmem:[%s1] sm:$0xff]
    %v77 = vld [vmem:[%s1 + $0x8] sm:$0xff]
    %v78 = vld [vmem:[%s2] sm:$0x1]
    %v80 = vlaneseq
    %v81 = vshrl.u32 %v80, 7
    %v82 = vsub.s32 0, %v81
    %v83 = vrot.slane %v78, %v82
    %vm85 = vcmask 130048
    %v87 = vsel %vm85, %v74, 0
    %v90 = vsel %vm85, %v75, 0
    %92 = vmatprep.subr.mxu0 0.0
    %93 = vmatpush1.msra.mxu0 %v76
    %94 = vmatprep.subr.mxu0 0.0
    %95 = vmatpush1.msra.mxu0 %v77
    %96 = vmatprep.subr.mxu0 0.0
    %97 = vmatpush1.msra.mxu0 0.0
    %98 = vmatprep.subr.mxu0 0.0
    %99 = vmatpush1.msra.mxu0 0.0
    %100 = vmatprep.subr.mxu0 0.0
    %101 = vmatpush1.msra.mxu0 0.0
    %102 = vmatprep.subr.mxu0 0.0
    %103 = vmatpush1.msra.mxu0 0.0
    %104 = vmatprep.subr.mxu0 0.0
    %105 = vmatpush1.msra.mxu0 0.0
    %106 = vmatprep.subr.mxu0 0.0
    %107 = vmatpush1.msra.mxu0 0.0
    %108 = vmatprep.subr.mxu0 0.0
    %109 = vmatpush1.msra.mxu0 0.0
    %110 = vmatprep.subr.mxu0 0.0
    %111 = vmatpush1.msra.mxu0 0.0
    %112 = vmatprep.subr.mxu0 0.0
    %113 = vmatpush1.msra.mxu0 0.0
    %114 = vmatprep.subr.mxu0 0.0
    %115 = vmatpush1.msra.mxu0 0.0
    %116 = vmatprep.subr.mxu0 0.0
    %117 = vmatpush1.msra.mxu0 0.0
    %118 = vmatprep.subr.mxu0 0.0
    %119 = vmatpush1.msra.mxu0 0.0
    %120 = vmatprep.subr.mxu0 0.0
    %121 = vmatpush1.msra.mxu0 0.0
    %122 = vmatprep.subr.mxu0 0.0
    %123 = vmatpush1.msra.mxu0 0.0
    %124 = vmatprep.subr.mxu0 0.0
    %125 = vmatpush1.msra.mxu0 0.0
    %126 = vmatprep.subr.mxu0 0.0
    %127 = vmatpush1.msra.mxu0 0.0
    %128 = vmatprep.subr.mxu0 0.0
    %129 = vmatpush1.msra.mxu0 0.0
    %130 = vmatprep.subr.mxu0 0.0
    %131 = vmatpush1.msra.mxu0 0.0
    %132 = vmatprep.subr.mxu0 0.0
    %133 = vmatpush1.msra.mxu0 0.0
    %134 = vmatprep.subr.mxu0 0.0
    %135 = vmatpush1.msra.mxu0 0.0
    %136 = vmatprep.subr.mxu0 0.0
    %137 = vmatpush1.msra.mxu0 0.0
    %138 = vmatprep.subr.mxu0 0.0
    %139 = vmatpush1.msra.mxu0 0.0
    %140 = vmatprep.subr.mxu0 0.0
    %141 = vmatpush1.msra.mxu0 0.0
    %142 = vmatprep.subr.mxu0 0.0
    %143 = vmatpush1.msra.mxu0 0.0
    %144 = vmatprep.subr.mxu0 0.0
    %145 = vmatpush1.msra.mxu0 0.0
    %146 = vmatprep.subr.mxu0 0.0
    %147 = vmatpush1.msra.mxu0 0.0
    %148 = vmatprep.subr.mxu0 0.0
    %149 = vmatpush1.msra.mxu0 0.0
    %150 = vmatprep.subr.mxu0 0.0
    %151 = vmatpush1.msra.mxu0 0.0
    %152 = vmatprep.subr.mxu0 0.0
    %153 = vmatpush1.msra.mxu0 0.0
    %154 = vmatprep.subr.mxu0 0.0
    %155 = vmatpush1.msra.mxu0 0.0
    %156 = vmatprep.mubr.f32.mxu0 0.0
    %157 = vmatmul.mubr.f32.gmra.mrb[0].mxu0 %v87
    %v158 = vpop.f32.mrb[0].mxu0
    %v159 = vadd.f32 %v83, %v158
    %v160 = vpop.f32.mrb[0].mxu0
    %161 = vmatprep.mubr.f32.mxu0 0.0
    %162 = vmatmul.mubr.f32.gmra.mrb[0].mxu0 %v90
    %v163 = vpop.f32.mrb[0].mxu0
    %v164 = vadd.f32 %v83, %v163
    %v165 = vpop.f32.mrb[0].mxu0
    %166 = vdwg.mxu0
    %vm167 = vcmask 785408
    %168 = vst.msk [vmem:[#allocation2] sm:$0xff] %vm167, %v159
    %169 = vst.msk [vmem:[#allocation2 + $0x8] sm:$0xff] %vm167, %v164
    %s170 = scalar_lea.vmem %s1, 16
    %v171 = vld [vmem:[%s170] sm:$0xff]
    %v172 = vld [vmem:[%s170 + $0x8] sm:$0xff]
    %s173 = scalar_lea.vmem %s2, 1
    %v174 = vld [vmem:[%s173] sm:$0x1]
    %v176 = vlaneseq
    %v177 = vshrl.u32 %v176, 7
    %v178 = vsub.s32 0, %v177
    %v179 = vrot.slane %v174, %v178
    %181 = vmatprep.subr.mxu0 0.0
    %182 = vmatpush1.msra.mxu0 %v171
    %183 = vmatprep.subr.mxu0 0.0
    %184 = vmatpush1.msra.mxu0 %v172
    %185 = vmatprep.subr.mxu0 0.0
    %186 = vmatpush1.msra.mxu0 0.0
    %187 = vmatprep.subr.mxu0 0.0
    %188 = vmatpush1.msra.mxu0 0.0
    %189 = vmatprep.subr.mxu0 0.0
    %190 = vmatpush1.msra.mxu0 0.0
    %191 = vmatprep.subr.mxu0 0.0
    %192 = vmatpush1.msra.mxu0 0.0
    %193 = vmatprep.subr.mxu0 0.0
    %194 = vmatpush1.msra.mxu0 0.0
    %195 = vmatprep.subr.mxu0 0.0
    %196 = vmatpush1.msra.mxu0 0.0
    %197 = vmatprep.subr.mxu0 0.0
    %198 = vmatpush1.msra.mxu0 0.0
    %199 = vmatprep.subr.mxu0 0.0
    %200 = vmatpush1.msra.mxu0 0.0
    %201 = vmatprep.subr.mxu0 0.0
    %202 = vmatpush1.msra.mxu0 0.0
    %203 = vmatprep.subr.mxu0 0.0
    %204 = vmatpush1.msra.mxu0 0.0
    %205 = vmatprep.subr.mxu0 0.0
    %206 = vmatpush1.msra.mxu0 0.0
    %207 = vmatprep.subr.mxu0 0.0
    %208 = vmatpush1.msra.mxu0 0.0
    %209 = vmatprep.subr.mxu0 0.0
    %210 = vmatpush1.msra.mxu0 0.0
    %211 = vmatprep.subr.mxu0 0.0
    %212 = vmatpush1.msra.mxu0 0.0
    %213 = vmatprep.subr.mxu0 0.0
    %214 = vmatpush1.msra.mxu0 0.0
    %215 = vmatprep.subr.mxu0 0.0
    %216 = vmatpush1.msra.mxu0 0.0
    %217 = vmatprep.subr.mxu0 0.0
    %218 = vmatpush1.msra.mxu0 0.0
    %219 = vmatprep.subr.mxu0 0.0
    %220 = vmatpush1.msra.mxu0 0.0
    %221 = vmatprep.subr.mxu0 0.0
    %222 = vmatpush1.msra.mxu0 0.0
    %223 = vmatprep.subr.mxu0 0.0
    %224 = vmatpush1.msra.mxu0 0.0
    %225 = vmatprep.subr.mxu0 0.0
    %226 = vmatpush1.msra.mxu0 0.0
    %227 = vmatprep.subr.mxu0 0.0
    %228 = vmatpush1.msra.mxu0 0.0
    %229 = vmatprep.subr.mxu0 0.0
    %230 = vmatpush1.msra.mxu0 0.0
    %231 = vmatprep.subr.mxu0 0.0
    %232 = vmatpush1.msra.mxu0 0.0
    %233 = vmatprep.subr.mxu0 0.0
    %234 = vmatpush1.msra.mxu0 0.0
    %235 = vmatprep.subr.mxu0 0.0
    %236 = vmatpush1.msra.mxu0 0.0
    %237 = vmatprep.subr.mxu0 0.0
    %238 = vmatpush1.msra.mxu0 0.0
    %239 = vmatprep.subr.mxu0 0.0
    %240 = vmatpush1.msra.mxu0 0.0
    %241 = vmatprep.subr.mxu0 0.0
    %242 = vmatpush1.msra.mxu0 0.0
    %243 = vmatprep.subr.mxu0 0.0
    %244 = vmatpush1.msra.mxu0 0.0
    %245 = vmatprep.mubr.f32.mxu0 0.0
    %246 = vmatmul.mubr.f32.gmra.mrb[0].mxu0 %v87
    %v247 = vpop.f32.mrb[0].mxu0
    %v248 = vadd.f32 %v179, %v247
    %v249 = vpop.f32.mrb[0].mxu0
    %250 = vmatprep.mubr.f32.mxu0 0.0
    %251 = vmatmul.mubr.f32.gmra.mrb[0].mxu0 %v90
    %v252 = vpop.f32.mrb[0].mxu0
    %v253 = vadd.f32 %v179, %v252
    %v254 = vpop.f32.mrb[0].mxu0
    %255 = vdwg.mxu0
    %256 = vst.msk [vmem:[#allocation3] sm:$0xff] %vm167, %v248
    %257 = vst.msk [vmem:[#allocation3 + $0x8] sm:$0xff] %vm167, %v253
    %v258 = vld [vmem:[#allocation8] sm:$0xf]
    %v259 = vld [vmem:[#allocation8 + $0x4] sm:$0xf]
    %v260 = vld [vmem:[#allocation8 + $0x8] sm:$0xf]
    %v261 = vld [vmem:[#allocation8 + $0xc] sm:$0xf]
    %s262 = scalar_lea.vmem [#allocation8], 16
    %v263 = vld [vmem:[%s262] sm:$0xf]
    %v264 = vld [vmem:[%s262 + $0x4] sm:$0xf]
    %v265 = vld [vmem:[%s262 + $0x8] sm:$0xf]
    %v266 = vld [vmem:[%s262 + $0xc] sm:$0xf]
    %v267 = vld [vmem:[%s4] sm:$0x1]
    %s268 = scalar_lea.vmem %s4, 1
    %v269 = vld [vmem:[%s268] sm:$0x1]
    %v270 = vld [vmem:[#allocation2] sm:$0x3]
    %v271 = vld [vmem:[#allocation3 + $0xe] sm:$0x3]
    %v276 = vunpack.c.l.b16 %v258
    %v277 = vunpack.c.l.b16 %v259
    %v278 = vunpack.c.l.b16 %v260
    %v279 = vunpack.c.l.b16 %v261
    %v280 = vpack.c.b16 %v277, %v276
    %v281 = vpack.c.b16 %v279, %v278
    %vm284 = vcmask 261120
    %v286 = vsel %vm284, 0, 0
    %288 = vmatprep.subr.bf16.mxu0 0
    %289 = vmatpush1.bf16.msra.mxu0 %v280
    %290 = vmatprep.subr.bf16.mxu0 0
    %291 = vmatpush1.bf16.msra.mxu0 %v281
    %292 = vmatprep.subr.bf16.mxu0 0
    %293 = vmatpush1.bf16.msra.mxu0 0
    %294 = vmatprep.subr.bf16.mxu0 0
    %295 = vmatpush1.bf16.msra.mxu0 0
    %296 = vmatprep.subr.bf16.mxu0 0
    %297 = vmatpush1.bf16.msra.mxu0 0
    %298 = vmatprep.subr.bf16.mxu0 0
    %299 = vmatpush1.bf16.msra.mxu0 0
    %300 = vmatprep.subr.bf16.mxu0 0
    %301 = vmatpush1.bf16.msra.mxu0 0
    %302 = vmatprep.subr.bf16.mxu0 0
    %303 = vmatpush1.bf16.msra.mxu0 0
    %304 = vmatprep.subr.bf16.mxu0 0
    %305 = vmatpush1.bf16.msra.mxu0 0
    %306 = vmatprep.subr.bf16.mxu0 0
    %307 = vmatpush1.bf16.msra.mxu0 0
    %308 = vmatprep.subr.bf16.mxu0 0
    %309 = vmatpush1.bf16.msra.mxu0 0
    %310 = vmatprep.subr.bf16.mxu0 0
    %311 = vmatpush1.bf16.msra.mxu0 0
    %312 = vmatprep.subr.bf16.mxu0 0
    %313 = vmatpush1.bf16.msra.mxu0 0
    %314 = vmatprep.subr.bf16.mxu0 0
    %315 = vmatpush1.bf16.msra.mxu0 0
    %316 = vmatprep.subr.bf16.mxu0 0
    %317 = vmatpush1.bf16.msra.mxu0 0
    %318 = vmatprep.subr.bf16.mxu0 0
    %319 = vmatpush1.bf16.msra.mxu0 0
    %320 = vmatprep.mubr.bf16.mxu0 0
    %321 = vmatmul.mubr.bf16.gmra.mrb[0].mxu0 %v286
    %v322 = vpop.f32.mrb[0].mxu0
    %v323 = vadd.f32 0.0, %v322
    %v324 = vpop.f32.mrb[0].mxu0
    %v325 = vpop.f32.mrb[0].mxu0
    %v326 = vpop.f32.mrb[0].mxu0
    %327 = vdwg.mxu0
    %v332 = vunpack.c.l.b16 %v263
    %v333 = vunpack.c.l.b16 %v264
    %v334 = vunpack.c.l.b16 %v265
    %v335 = vunpack.c.l.b16 %v266
    %v336 = vpack.c.b16 %v333, %v332
    %v337 = vpack.c.b16 %v335, %v334
    %340 = vmatprep.subr.bf16.mxu0 0
    %341 = vmatpush1.bf16.msra.mxu0 %v336
    %342 = vmatprep.subr.bf16.mxu0 0
    %343 = vmatpush1.bf16.msra.mxu0 %v337
    %344 = vmatprep.subr.bf16.mxu0 0
    %345 = vmatpush1.bf16.msra.mxu0 0
    %346 = vmatprep.subr.bf16.mxu0 0
    %347 = vmatpush1.bf16.msra.mxu0 0
    %348 = vmatprep.subr.bf16.mxu0 0
    %349 = vmatpush1.bf16.msra.mxu0 0
    %350 = vmatprep.subr.bf16.mxu0 0
    %351 = vmatpush1.bf16.msra.mxu0 0
    %352 = vmatprep.subr.bf16.mxu0 0
    %353 = vmatpush1.bf16.msra.mxu0 0
    %354 = vmatprep.subr.bf16.mxu0 0
    %355 = vmatpush1.bf16.msra.mxu0 0
    %356 = vmatprep.subr.bf16.mxu0 0
    %357 = vmatpush1.bf16.msra.mxu0 0
    %358 = vmatprep.subr.bf16.mxu0 0
    %359 = vmatpush1.bf16.msra.mxu0 0
    %360 = vmatprep.subr.bf16.mxu0 0
    %361 = vmatpush1.bf16.msra.mxu0 0
    %362 = vmatprep.subr.bf16.mxu0 0
    %363 = vmatpush1.bf16.msra.mxu0 0
    %364 = vmatprep.subr.bf16.mxu0 0
    %365 = vmatpush1.bf16.msra.mxu0 0
    %366 = vmatprep.subr.bf16.mxu0 0
    %367 = vmatpush1.bf16.msra.mxu0 0
    %368 = vmatprep.subr.bf16.mxu0 0
    %369 = vmatpush1.bf16.msra.mxu0 0
    %370 = vmatprep.subr.bf16.mxu0 0
    %371 = vmatpush1.bf16.msra.mxu0 0
    %372 = vmatprep.mubr.bf16.mxu0 0
    %373 = vmatmul.mubr.bf16.gmra.mrb[0].mxu0 %v286
    %v374 = vpop.f32.mrb[0].mxu0
    %v375 = vadd.f32 0.0, %v374
    %v376 = vpop.f32.mrb[0].mxu0
    %v377 = vpop.f32.mrb[0].mxu0
    %v378 = vpop.f32.mrb[0].mxu0
    %379 = vdwg.mxu0
    %v380 = vadd.f32 %v270, %v323
    %v381 = vxor.u32 %v380, 2147483648
    %v382 = vmul.f32 %v381, 1.442695
    %v383 = vpow.pop %v382
    %v384 = vadd.f32 %v383, 1.0
    %v385 = vrcp.pop %v384
    %v386 = vmul.f32 1.0, %v385
    %v388 = vlaneseq
    %v389 = vshrl.u32 %v388, 7
    %v390 = vsub.s32 0, %v389
    %v391 = vrot.slane %v267, %v390
    %392 = vrot.lane.b32.xlu0 %v391, 64
    %v393 = vpop.permute.xlu0 %392
    %v395 = vadd.f32 %v323, %v393
    %397 = vrot.lane.b32.xlu0 %v395, 64
    %v398 = vpop.permute.xlu0 %397
    %v400 = vmul.f32 %v386, %v398
    %402 = vrot.lane.b32.xlu0 %v400, 64
    %v403 = vpop.permute.xlu0 %402
    %v405 = vadd.f32 %v270, %v403
    %v406 = vtanh.pop %v405
    %v407 = vsub.f32 1.0, %v386
    %409 = vrot.lane.b32.xlu0 %v406, 96
    %v410 = vpop.permute.xlu0 %409
    %v412 = vmul.f32 %v407, %v410
    %v413 = vmul.f32 %v386, 0.0
    %v414 = vadd.f32 %v412, %v413
    %v415 = vadd.f32 %v271, %v375
    %v416 = vxor.u32 %v415, 2147483648
    %v417 = vmul.f32 %v416, 1.442695
    %v418 = vpow.pop %v417
    %v419 = vadd.f32 %v418, 1.0
    %v420 = vrcp.pop %v419
    %v421 = vmul.f32 1.0, %v420
    %v423 = vlaneseq
    %v424 = vshrl.u32 %v423, 7
    %v425 = vsub.s32 0, %v424
    %v426 = vrot.slane %v269, %v425
    %427 = vrot.lane.b32.xlu0 %v426, 64
    %v428 = vpop.permute.xlu0 %427
    %v430 = vadd.f32 %v375, %v428
    %432 = vrot.lane.b32.xlu0 %v430, 64
    %v433 = vpop.permute.xlu0 %432
    %v435 = vmul.f32 %v421, %v433
    %437 = vrot.lane.b32.xlu0 %v435, 64
    %v438 = vpop.permute.xlu0 %437
    %v440 = vadd.f32 %v271, %v438
    %v441 = vtanh.pop %v440
    %v442 = vsub.f32 1.0, %v421
    %444 = vrot.lane.b32.xlu0 %v441, 96
    %v445 = vpop.permute.xlu0 %444
    %v447 = vmul.f32 %v442, %v445
    %v448 = vmul.f32 %v421, 0.0
    %v449 = vadd.f32 %v447, %v448
    %451 = vrot.lane.b32.xlu0 %v414, 96
    %v452 = vpop.permute.xlu0 %451
    %vm454 = vcmask 254976
    %455 = vst.msk [vmem:[#allocation6] sm:$0x3] %vm454, %v452
    %457 = vrot.lane.b32.xlu0 %v449, 96
    %v458 = vpop.permute.xlu0 %457
    %460 = vst.msk [vmem:[#allocation7 + $0xe] sm:$0x3] %vm454, %v458
    %v461 = vld [vmem:[#allocation2 + $0x2] sm:$0x3]
    %v462 = vld [vmem:[#allocation3 + $0xc] sm:$0x3]
    %v463 = vpack.c.bf16 %v414, %v414
    %465 = vrot.lane.b32.xlu0 %v463, 96
    %v466 = vpop.permute.xlu0 %465
    %v468 = vsel %vm284, %v466, 0
    %470 = vmatprep.subr.bf16.mxu0 0
    %471 = vmatpush1.bf16.msra.mxu0 %v280
    %472 = vmatprep.subr.bf16.mxu0 0
    %473 = vmatpush1.bf16.msra.mxu0 %v281
    %474 = vmatprep.subr.bf16.mxu0 0
    %475 = vmatpush1.bf16.msra.mxu0 0
    %476 = vmatprep.subr.bf16.mxu0 0
    %477 = vmatpush1.bf16.msra.mxu0 0
    %478 = vmatprep.subr.bf16.mxu0 0
    %479 = vmatpush1.bf16.msra.mxu0 0
    %480 = vmatprep.subr.bf16.mxu0 0
    %481 = vmatpush1.bf16.msra.mxu0 0
    %482 = vmatprep.subr.bf16.mxu0 0
    %483 = vmatpush1.bf16.msra.mxu0 0
    %484 = vmatprep.subr.bf16.mxu0 0
    %485 = vmatpush1.bf16.msra.mxu0 0
    %486 = vmatprep.subr.bf16.mxu0 0
    %487 = vmatpush1.bf16.msra.mxu0 0
    %488 = vmatprep.subr.bf16.mxu0 0
    %489 = vmatpush1.bf16.msra.mxu0 0
    %490 = vmatprep.subr.bf16.mxu0 0
    %491 = vmatpush1.bf16.msra.mxu0 0
    %492 = vmatprep.subr.bf16.mxu0 0
    %493 = vmatpush1.bf16.msra.mxu0 0
    %494 = vmatprep.subr.bf16.mxu0 0
    %495 = vmatpush1.bf16.msra.mxu0 0
    %496 = vmatprep.subr.bf16.mxu0 0
    %497 = vmatpush1.bf16.msra.mxu0 0
    %498 = vmatprep.subr.bf16.mxu0 0
    %499 = vmatpush1.bf16.msra.mxu0 0
    %500 = vmatprep.subr.bf16.mxu0 0
    %501 = vmatpush1.bf16.msra.mxu0 0
    %502 = vmatprep.mubr.bf16.mxu0 0
    %503 = vmatmul.mubr.bf16.gmra.mrb[0].mxu0 %v468
    %v504 = vpop.f32.mrb[0].mxu0
    %v505 = vadd.f32 0.0, %v504
    %v506 = vpop.f32.mrb[0].mxu0
    %v507 = vpop.f32.mrb[0].mxu0
    %v508 = vpop.f32.mrb[0].mxu0
    %509 = vdwg.mxu0
    %v510 = vpack.c.bf16 %v449, %v449
    %512 = vrot.lane.b32.xlu0 %v510, 96
    %v513 = vpop.permute.xlu0 %512
    %v515 = vsel %vm284, %v513, 0
    %517 = vmatprep.subr.bf16.mxu0 0
    %518 = vmatpush1.bf16.msra.mxu0 %v336
    %519 = vmatprep.subr.bf16.mxu0 0
    %520 = vmatpush1.bf16.msra.mxu0 %v337
    %521 = vmatprep.subr.bf16.mxu0 0
    %522 = vmatpush1.bf16.msra.mxu0 0
    %523 = vmatprep.subr.bf16.mxu0 0
    %524 = vmatpush1.bf16.msra.mxu0 0
    %525 = vmatprep.subr.bf16.mxu0 0
    %526 = vmatpush1.bf16.msra.mxu0 0
    %527 = vmatprep.subr.bf16.mxu0 0
    %528 = vmatpush1.bf16.msra.mxu0 0
    %529 = vmatprep.subr.bf16.mxu0 0
    %530 = vmatpush1.bf16.msra.mxu0 0
    %531 = vmatprep.subr.bf16.mxu0 0
    %532 = vmatpush1.bf16.msra.mxu0 0
    %533 = vmatprep.subr.bf16.mxu0 0
    %534 = vmatpush1.bf16.msra.mxu0 0
    %535 = vmatprep.subr.bf16.mxu0 0
    %536 = vmatpush1.bf16.msra.mxu0 0
    %537 = vmatprep.subr.bf16.mxu0 0
    %538 = vmatpush1.bf16.msra.mxu0 0
    %539 = vmatprep.subr.bf16.mxu0 0
    %540 = vmatpush1.bf16.msra.mxu0 0
    %541 = vmatprep.subr.bf16.mxu0 0
    %542 = vmatpush1.bf16.msra.mxu0 0
    %543 = vmatprep.subr.bf16.mxu0 0
    %544 = vmatpush1.bf16.msra.mxu0 0
    %545 = vmatprep.subr.bf16.mxu0 0
    %546 = vmatpush1.bf16.msra.mxu0 0
    %547 = vmatprep.subr.bf16.mxu0 0
    %548 = vmatpush1.bf16.msra.mxu0 0
    %549 = vmatprep.mubr.bf16.mxu0 0
    %550 = vmatmul.mubr.bf16.gmra.mrb[0].mxu0 %v515
    %v551 = vpop.f32.mrb[0].mxu0
    %v552 = vadd.f32 0.0, %v551
    %v553 = vpop.f32.mrb[0].mxu0
    %v554 = vpop.f32.mrb[0].mxu0
    %v555 = vpop.f32.mrb[0].mxu0
    %556 = vdwg.mxu0
    %v557 = vadd.f32 %v461, %v505
    %v558 = vxor.u32 %v557, 2147483648
    %v559 = vmul.f32 %v558, 1.442695
    %v560 = vpow.pop %v559
    %v561 = vadd.f32 %v560, 1.0
    %v562 = vrcp.pop %v561
    %v563 = vmul.f32 1.0, %v562
    %v564 = vadd.f32 %v505, %v393
    %566 = vrot.lane.b32.xlu0 %v564, 64
    %v567 = vpop.permute.xlu0 %566
    %v569 = vmul.f32 %v563, %v567
    %571 = vrot.lane.b32.xlu0 %v569, 64
    %v572 = vpop.permute.xlu0 %571
    %v574 = vadd.f32 %v461, %v572
    %v575 = vtanh.pop %v574
    %v576 = vsub.f32 1.0, %v563
    %578 = vrot.lane.b32.xlu0 %v575, 96
    %v579 = vpop.permute.xlu0 %578
    %v581 = vmul.f32 %v576, %v579
    %v582 = vmul.f32 %v563, %v414
    %v583 = vadd.f32 %v581, %v582
    %v584 = vadd.f32 %v462, %v552
    %v585 = vxor.u32 %v584, 2147483648
    %v586 = vmul.f32 %v585, 1.442695
    %v587 = vpow.pop %v586
    %v588 = vadd.f32 %v587, 1.0
    %v589 = vrcp.pop %v588
    %v590 = vmul.f32 1.0, %v589
    %v591 = vadd.f32 %v552, %v428
    %593 = vrot.lane.b32.xlu0 %v591, 64
    %v594 = vpop.permute.xlu0 %593
    %v596 = vmul.f32 %v590, %v594
    %598 = vrot.lane.b32.xlu0 %v596, 64
    %v599 = vpop.permute.xlu0 %598
    %v601 = vadd.f32 %v462, %v599
    %v602 = vtanh.pop %v601
    %v603 = vsub.f32 1.0, %v590
    %605 = vrot.lane.b32.xlu0 %v602, 96
    %v606 = vpop.permute.xlu0 %605
    %v608 = vmul.f32 %v603, %v606
    %v609 = vmul.f32 %v590, %v449
    %v610 = vadd.f32 %v608, %v609
    %612 = vrot.lane.b32.xlu0 %v583, 96
    %v613 = vpop.permute.xlu0 %612
    %615 = vst.msk [vmem:[#allocation6 + $0x2] sm:$0x3] %vm454, %v613
    %617 = vrot.lane.b32.xlu0 %v610, 96
    %v618 = vpop.permute.xlu0 %617
    %620 = vst.msk [vmem:[#allocation7 + $0xc] sm:$0x3] %vm454, %v618
    %v621 = vld [vmem:[#allocation2 + $0x4] sm:$0x3]
    %v622 = vld [vmem:[#allocation3 + $0xa] sm:$0x3]
    %v623 = vpack.c.bf16 %v583, %v583
    %625 = vrot.lane.b32.xlu0 %v623, 96
    %v626 = vpop.permute.xlu0 %625
    %v628 = vsel %vm284, %v626, 0
    %630 = vmatprep.subr.bf16.mxu0 0
    %631 = vmatpush1.bf16.msra.mxu0 %v280
    %632 = vmatprep.subr.bf16.mxu0 0
    %633 = vmatpush1.bf16.msra.mxu0 %v281
    %634 = vmatprep.subr.bf16.mxu0 0
    %635 = vmatpush1.bf16.msra.mxu0 0
    %636 = vmatprep.subr.bf16.mxu0 0
    %637 = vmatpush1.bf16.msra.mxu0 0
    %638 = vmatprep.subr.bf16.mxu0 0
    %639 = vmatpush1.bf16.msra.mxu0 0
    %640 = vmatprep.subr.bf16.mxu0 0
    %641 = vmatpush1.bf16.msra.mxu0 0
    %642 = vmatprep.subr.bf16.mxu0 0
    %643 = vmatpush1.bf16.msra.mxu0 0
    %644 = vmatprep.subr.bf16.mxu0 0
    %645 = vmatpush1.bf16.msra.mxu0 0
    %646 = vmatprep.subr.bf16.mxu0 0
    %647 = vmatpush1.bf16.msra.mxu0 0
    %648 = vmatprep.subr.bf16.mxu0 0
    %649 = vmatpush1.bf16.msra.mxu0 0
    %650 = vmatprep.subr.bf16.mxu0 0
    %651 = vmatpush1.bf16.msra.mxu0 0
    %652 = vmatprep.subr.bf16.mxu0 0
    %653 = vmatpush1.bf16.msra.mxu0 0
    %654 = vmatprep.subr.bf16.mxu0 0
    %655 = vmatpush1.bf16.msra.mxu0 0
    %656 = vmatprep.subr.bf16.mxu0 0
    %657 = vmatpush1.bf16.msra.mxu0 0
    %658 = vmatprep.subr.bf16.mxu0 0
    %659 = vmatpush1.bf16.msra.mxu0 0
    %660 = vmatprep.subr.bf16.mxu0 0
    %661 = vmatpush1.bf16.msra.mxu0 0
    %662 = vmatprep.mubr.bf16.mxu0 0
    %663 = vmatmul.mubr.bf16.gmra.mrb[0].mxu0 %v628
    %v664 = vpop.f32.mrb[0].mxu0
    %v665 = vadd.f32 0.0, %v664
    %v666 = vpop.f32.mrb[0].mxu0
    %v667 = vpop.f32.mrb[0].mxu0
    %v668 = vpop.f32.mrb[0].mxu0
    %669 = vdwg.mxu0
    %v670 = vpack.c.bf16 %v610, %v610
    %672 = vrot.lane.b32.xlu0 %v670, 96
    %v673 = vpop.permute.xlu0 %672
    %v675 = vsel %vm284, %v673, 0
    %677 = vmatprep.subr.bf16.mxu0 0
    %678 = vmatpush1.bf16.msra.mxu0 %v336
    %679 = vmatprep.subr.bf16.mxu0 0
    %680 = vmatpush1.bf16.msra.mxu0 %v337
    %681 = vmatprep.subr.bf16.mxu0 0
    %682 = vmatpush1.bf16.msra.mxu0 0
    %683 = vmatprep.subr.bf16.mxu0 0
    %684 = vmatpush1.bf16.msra.mxu0 0
    %685 = vmatprep.subr.bf16.mxu0 0
    %686 = vmatpush1.bf16.msra.mxu0 0
    %687 = vmatprep.subr.bf16.mxu0 0
    %688 = vmatpush1.bf16.msra.mxu0 0
    %689 = vmatprep.subr.bf16.mxu0 0
    %690 = vmatpush1.bf16.msra.mxu0 0
    %691 = vmatprep.subr.bf16.mxu0 0
    %692 = vmatpush1.bf16.msra.mxu0 0
    %693 = vmatprep.subr.bf16.mxu0 0
    %694 = vmatpush1.bf16.msra.mxu0 0
    %695 = vmatprep.subr.bf16.mxu0 0
    %696 = vmatpush1.bf16.msra.mxu0 0
    %697 = vmatprep.subr.bf16.mxu0 0
    %698 = vmatpush1.bf16.msra.mxu0 0
    %699 = vmatprep.subr.bf16.mxu0 0
    %700 = vmatpush1.bf16.msra.mxu0 0
    %701 = vmatprep.subr.bf16.mxu0 0
    %702 = vmatpush1.bf16.msra.mxu0 0
    %703 = vmatprep.subr.bf16.mxu0 0
    %704 = vmatpush1.bf16.msra.mxu0 0
    %705 = vmatprep.subr.bf16.mxu0 0
    %706 = vmatpush1.bf16.msra.mxu0 0
    %707 = vmatprep.subr.bf16.mxu0 0
    %708 = vmatpush1.bf16.msra.mxu0 0
    %709 = vmatprep.mubr.bf16.mxu0 0
    %710 = vmatmul.mubr.bf16.gmra.mrb[0].mxu0 %v675
    %v711 = vpop.f32.mrb[0].mxu0
    %v712 = vadd.f32 0.0, %v711
    %v713 = vpop.f32.mrb[0].mxu0
    %v714 = vpop.f32.mrb[0].mxu0
    %v715 = vpop.f32.mrb[0].mxu0
    %716 = vdwg.mxu0
    %v717 = vadd.f32 %v621, %v665
    %v718 = vxor.u32 %v717, 2147483648
    %v719 = vmul.f32 %v718, 1.442695
    %v720 = vpow.pop %v719
    %v721 = vadd.f32 %v720, 1.0
    %v722 = vrcp.pop %v721
    %v723 = vmul.f32 1.0, %v722
    %v724 = vadd.f32 %v665, %v393
    %726 = vrot.lane.b32.xlu0 %v724, 64
    %v727 = vpop.permute.xlu0 %726
    %v729 = vmul.f32 %v723, %v727
    %731 = vrot.lane.b32.xlu0 %v729, 64
    %v732 = vpop.permute.xlu0 %731
    %v734 = vadd.f32 %v621, %v732
    %v735 = vtanh.pop %v734
    %v736 = vsub.f32 1.0, %v723
    %738 = vrot.lane.b32.xlu0 %v735, 96
    %v739 = vpop.permute.xlu0 %738
    %v741 = vmul.f32 %v736, %v739
    %v742 = vmul.f32 %v723, %v583
    %v743 = vadd.f32 %v741, %v742
    %v744 = vadd.f32 %v622, %v712
    %v745 = vxor.u32 %v744, 2147483648
    %v746 = vmul.f32 %v745, 1.442695
    %v747 = vpow.pop %v746
    %v748 = vadd.f32 %v747, 1.0
    %v749 = vrcp.pop %v748
    %v750 = vmul.f32 1.0, %v749
    %v751 = vadd.f32 %v712, %v428
    %753 = vrot.lane.b32.xlu0 %v751, 64
    %v754 = vpop.permute.xlu0 %753
    %v756 = vmul.f32 %v750, %v754
    %758 = vrot.lane.b32.xlu0 %v756, 64
    %v759 = vpop.permute.xlu0 %758
    %v761 = vadd.f32 %v622, %v759
    %v762 = vtanh.pop %v761
    %v763 = vsub.f32 1.0, %v750
    %765 = vrot.lane.b32.xlu0 %v762, 96
    %v766 = vpop.permute.xlu0 %765
    %v768 = vmul.f32 %v763, %v766
    %v769 = vmul.f32 %v750, %v610
    %v770 = vadd.f32 %v768, %v769
    %772 = vrot.lane.b32.xlu0 %v743, 96
    %v773 = vpop.permute.xlu0 %772
    %775 = vst.msk [vmem:[#allocation6 + $0x4] sm:$0x3] %vm454, %v773
    %777 = vrot.lane.b32.xlu0 %v770, 96
    %v778 = vpop.permute.xlu0 %777
    %780 = vst.msk [vmem:[#allocation7 + $0xa] sm:$0x3] %vm454, %v778
    %v781 = vld [vmem:[#allocation2 + $0x6] sm:$0x3]
    %v782 = vld [vmem:[#allocation3 + $0x8] sm:$0x3]
    %v783 = vpack.c.bf16 %v743, %v743
    %785 = vrot.lane.b32.xlu0 %v783, 96
    %v786 = vpop.permute.xlu0 %785
    %v788 = vsel %vm284, %v786, 0
    %790 = vmatprep.subr.bf16.mxu0 0
    %791 = vmatpush1.bf16.msra.mxu0 %v280
    %792 = vmatprep.subr.bf16.mxu0 0
    %793 = vmatpush1.bf16.msra.mxu0 %v281
    %794 = vmatprep.subr.bf16.mxu0 0
    %795 = vmatpush1.bf16.msra.mxu0 0
    %796 = vmatprep.subr.bf16.mxu0 0
    %797 = vmatpush1.bf16.msra.mxu0 0
    %798 = vmatprep.subr.bf16.mxu0 0
    %799 = vmatpush1.bf16.msra.mxu0 0
    %800 = vmatprep.subr.bf16.mxu0 0
    %801 = vmatpush1.bf16.msra.mxu0 0
    %802 = vmatprep.subr.bf16.mxu0 0
    %803 = vmatpush1.bf16.msra.mxu0 0
    %804 = vmatprep.subr.bf16.mxu0 0
    %805 = vmatpush1.bf16.msra.mxu0 0
    %806 = vmatprep.subr.bf16.mxu0 0
    %807 = vmatpush1.bf16.msra.mxu0 0
    %808 = vmatprep.subr.bf16.mxu0 0
    %809 = vmatpush1.bf16.msra.mxu0 0
    %810 = vmatprep.subr.bf16.mxu0 0
    %811 = vmatpush1.bf16.msra.mxu0 0
    %812 = vmatprep.subr.bf16.mxu0 0
    %813 = vmatpush1.bf16.msra.mxu0 0
    %814 = vmatprep.subr.bf16.mxu0 0
    %815 = vmatpush1.bf16.msra.mxu0 0
    %816 = vmatprep.subr.bf16.mxu0 0
    %817 = vmatpush1.bf16.msra.mxu0 0
    %818 = vmatprep.subr.bf16.mxu0 0
    %819 = vmatpush1.bf16.msra.mxu0 0
    %820 = vmatprep.subr.bf16.mxu0 0
    %821 = vmatpush1.bf16.msra.mxu0 0
    %822 = vmatprep.mubr.bf16.mxu0 0
    %823 = vmatmul.mubr.bf16.gmra.mrb[0].mxu0 %v788
    %v824 = vpop.f32.mrb[0].mxu0
    %v825 = vadd.f32 0.0, %v824
    %v826 = vpop.f32.mrb[0].mxu0
    %v827 = vpop.f32.mrb[0].mxu0
    %v828 = vpop.f32.mrb[0].mxu0
    %829 = vdwg.mxu0
    %v830 = vpack.c.bf16 %v770, %v770
    %832 = vrot.lane.b32.xlu0 %v830, 96
    %v833 = vpop.permute.xlu0 %832
    %v835 = vsel %vm284, %v833, 0
    %837 = vmatprep.subr.bf16.mxu0 0
    %838 = vmatpush1.bf16.msra.mxu0 %v336
    %839 = vmatprep.subr.bf16.mxu0 0
    %840 = vmatpush1.bf16.msra.mxu0 %v337
    %841 = vmatprep.subr.bf16.mxu0 0
    %842 = vmatpush1.bf16.msra.mxu0 0
    %843 = vmatprep.subr.bf16.mxu0 0
    %844 = vmatpush1.bf16.msra.mxu0 0
    %845 = vmatprep.subr.bf16.mxu0 0
    %846 = vmatpush1.bf16.msra.mxu0 0
    %847 = vmatprep.subr.bf16.mxu0 0
    %848 = vmatpush1.bf16.msra.mxu0 0
    %849 = vmatprep.subr.bf16.mxu0 0
    %850 = vmatpush1.bf16.msra.mxu0 0
    %851 = vmatprep.subr.bf16.mxu0 0
    %852 = vmatpush1.bf16.msra.mxu0 0
    %853 = vmatprep.subr.bf16.mxu0 0
    %854 = vmatpush1.bf16.msra.mxu0 0
    %855 = vmatprep.subr.bf16.mxu0 0
    %856 = vmatpush1.bf16.msra.mxu0 0
    %857 = vmatprep.subr.bf16.mxu0 0
    %858 = vmatpush1.bf16.msra.mxu0 0
    %859 = vmatprep.subr.bf16.mxu0 0
    %860 = vmatpush1.bf16.msra.mxu0 0
    %861 = vmatprep.subr.bf16.mxu0 0
    %862 = vmatpush1.bf16.msra.mxu0 0
    %863 = vmatprep.subr.bf16.mxu0 0
    %864 = vmatpush1.bf16.msra.mxu0 0
    %865 = vmatprep.subr.bf16.mxu0 0
    %866 = vmatpush1.bf16.msra.mxu0 0
    %867 = vmatprep.subr.bf16.mxu0 0
    %868 = vmatpush1.bf16.msra.mxu0 0
    %869 = vmatprep.mubr.bf16.mxu0 0
    %870 = vmatmul.mubr.bf16.gmra.mrb[0].mxu0 %v835
    %v871 = vpop.f32.mrb[0].mxu0
    %v872 = vadd.f32 0.0, %v871
    %v873 = vpop.f32.mrb[0].mxu0
    %v874 = vpop.f32.mrb[0].mxu0
    %v875 = vpop.f32.mrb[0].mxu0
    %876 = vdwg.mxu0
    %v877 = vadd.f32 %v781, %v825
    %v878 = vxor.u32 %v877, 2147483648
    %v879 = vmul.f32 %v878, 1.442695
    %v880 = vpow.pop %v879
    %v881 = vadd.f32 %v880, 1.0
    %v882 = vrcp.pop %v881
    %v883 = vmul.f32 1.0, %v882
    %v884 = vadd.f32 %v825, %v393
    %886 = vrot.lane.b32.xlu0 %v884, 64
    %v887 = vpop.permute.xlu0 %886
    %v889 = vmul.f32 %v883, %v887
    %891 = vrot.lane.b32.xlu0 %v889, 64
    %v892 = vpop.permute.xlu0 %891
    %v894 = vadd.f32 %v781, %v892
    %v895 = vtanh.pop %v894
    %v896 = vsub.f32 1.0, %v883
    %898 = vrot.lane.b32.xlu0 %v895, 96
    %v899 = vpop.permute.xlu0 %898
    %v901 = vmul.f32 %v896, %v899
    %v902 = vmul.f32 %v883, %v743
    %v903 = vadd.f32 %v901, %v902
    %v904 = vadd.f32 %v782, %v872
    %v905 = vxor.u32 %v904, 2147483648
    %v906 = vmul.f32 %v905, 1.442695
    %v907 = vpow.pop %v906
    %v908 = vadd.f32 %v907, 1.0
    %v909 = vrcp.pop %v908
    %v910 = vmul.f32 1.0, %v909
    %v911 = vadd.f32 %v872, %v428
    %913 = vrot.lane.b32.xlu0 %v911, 64
    %v914 = vpop.permute.xlu0 %913
    %v916 = vmul.f32 %v910, %v914
    %918 = vrot.lane.b32.xlu0 %v916, 64
    %v919 = vpop.permute.xlu0 %918
    %v921 = vadd.f32 %v782, %v919
    %v922 = vtanh.pop %v921
    %v923 = vsub.f32 1.0, %v910
    %925 = vrot.lane.b32.xlu0 %v922, 96
    %v926 = vpop.permute.xlu0 %925
    %v928 = vmul.f32 %v923, %v926
    %v929 = vmul.f32 %v910, %v770
    %v930 = vadd.f32 %v928, %v929
    %932 = vrot.lane.b32.xlu0 %v903, 96
    %v933 = vpop.permute.xlu0 %932
    %935 = vst.msk [vmem:[#allocation6 + $0x6] sm:$0x3] %vm454, %v933
    %937 = vrot.lane.b32.xlu0 %v930, 96
    %v938 = vpop.permute.xlu0 %937
    %940 = vst.msk [vmem:[#allocation7 + $0x8] sm:$0x3] %vm454, %v938
    %v941 = vld [vmem:[#allocation2 + $0x8] sm:$0x3]
    %v942 = vld [vmem:[#allocation3 + $0x6] sm:$0x3]
    %v943 = vpack.c.bf16 %v903, %v903
    %945 = vrot.lane.b32.xlu0 %v943, 96
    %v946 = vpop.permute.xlu0 %945
    %v948 = vsel %vm284, %v946, 0
    %950 = vmatprep.subr.bf16.mxu0 0
    %951 = vmatpush1.bf16.msra.mxu0 %v280
    %952 = vmatprep.subr.bf16.mxu0 0
    %953 = vmatpush1.bf16.msra.mxu0 %v281
    %954 = vmatprep.subr.bf16.mxu0 0
    %955 = vmatpush1.bf16.msra.mxu0 0
    %956 = vmatprep.subr.bf16.mxu0 0
    %957 = vmatpush1.bf16.msra.mxu0 0
    %958 = vmatprep.subr.bf16.mxu0 0
    %959 = vmatpush1.bf16.msra.mxu0 0
    %960 = vmatprep.subr.bf16.mxu0 0
    %961 = vmatpush1.bf16.msra.mxu0 0
    %962 = vmatprep.subr.bf16.mxu0 0
    %963 = vmatpush1.bf16.msra.mxu0 0
    %964 = vmatprep.subr.bf16.mxu0 0
    %965 = vmatpush1.bf16.msra.mxu0 0
    %966 = vmatprep.subr.bf16.mxu0 0
    %967 = vmatpush1.bf16.msra.mxu0 0
    %968 = vmatprep.subr.bf16.mxu0 0
    %969 = vmatpush1.bf16.msra.mxu0 0
    %970 = vmatprep.subr.bf16.mxu0 0
    %971 = vmatpush1.bf16.msra.mxu0 0
    %972 = vmatprep.subr.bf16.mxu0 0
    %973 = vmatpush1.bf16.msra.mxu0 0
    %974 = vmatprep.subr.bf16.mxu0 0
    %975 = vmatpush1.bf16.msra.mxu0 0
    %976 = vmatprep.subr.bf16.mxu0 0
    %977 = vmatpush1.bf16.msra.mxu0 0
    %978 = vmatprep.subr.bf16.mxu0 0
    %979 = vmatpush1.bf16.msra.mxu0 0
    %980 = vmatprep.subr.bf16.mxu0 0
    %981 = vmatpush1.bf16.msra.mxu0 0
    %982 = vmatprep.mubr.bf16.mxu0 0
    %983 = vmatmul.mubr.bf16.gmra.mrb[0].mxu0 %v948
    %v984 = vpop.f32.mrb[0].mxu0
    %v985 = vadd.f32 0.0, %v984
    %v986 = vpop.f32.mrb[0].mxu0
    %v987 = vpop.f32.mrb[0].mxu0
    %v988 = vpop.f32.mrb[0].mxu0
    %989 = vdwg.mxu0
    %v990 = vpack.c.bf16 %v930, %v930
    %992 = vrot.lane.b32.xlu0 %v990, 96
    %v993 = vpop.permute.xlu0 %992
    %v995 = vsel %vm284, %v993, 0
    %997 = vmatprep.subr.bf16.mxu0 0
    %998 = vmatpush1.bf16.msra.mxu0 %v336
    %999 = vmatprep.subr.bf16.mxu0 0
    %1000 = vmatpush1.bf16.msra.mxu0 %v337
    %1001 = vmatprep.subr.bf16.mxu0 0
    %1002 = vmatpush1.bf16.msra.mxu0 0
    %1003 = vmatprep.subr.bf16.mxu0 0
    %1004 = vmatpush1.bf16.msra.mxu0 0
    %1005 = vmatprep.subr.bf16.mxu0 0
    %1006 = vmatpush1.bf16.msra.mxu0 0
    %1007 = vmatprep.subr.bf16.mxu0 0
    %1008 = vmatpush1.bf16.msra.mxu0 0
    %1009 = vmatprep.subr.bf16.mxu0 0
    %1010 = vmatpush1.bf16.msra.mxu0 0
    %1011 = vmatprep.subr.bf16.mxu0 0
    %1012 = vmatpush1.bf16.msra.mxu0 0
    %1013 = vmatprep.subr.bf16.mxu0 0
    %1014 = vmatpush1.bf16.msra.mxu0 0
    %1015 = vmatprep.subr.bf16.mxu0 0
    %1016 = vmatpush1.bf16.msra.mxu0 0
    %1017 = vmatprep.subr.bf16.mxu0 0
    %1018 = vmatpush1.bf16.msra.mxu0 0
    %1019 = vmatprep.subr.bf16.mxu0 0
    %1020 = vmatpush1.bf16.msra.mxu0 0
    %1021 = vmatprep.subr.bf16.mxu0 0
    %1022 = vmatpush1.bf16.msra.mxu0 0
    %1023 = vmatprep.subr.bf16.mxu0 0
    %1024 = vmatpush1.bf16.msra.mxu0 0
    %1025 = vmatprep.subr.bf16.mxu0 0
    %1026 = vmatpush1.bf16.msra.mxu0 0
    %1027 = vmatprep.subr.bf16.mxu0 0
    %1028 = vmatpush1.bf16.msra.mxu0 0
    %1029 = vmatprep.mubr.bf16.mxu0 0
    %1030 = vmatmul.mubr.bf16.gmra.mrb[0].mxu0 %v995
    %v1031 = vpop.f32.mrb[0].mxu0
    %v1032 = vadd.f32 0.0, %v1031
    %v1033 = vpop.f32.mrb[0].mxu0
    %v1034 = vpop.f32.mrb[0].mxu0
    %v1035 = vpop.f32.mrb[0].mxu0
    %1036 = vdwg.mxu0
    %v1037 = vadd.f32 %v941, %v985
    %v1038 = vxor.u32 %v1037, 2147483648
    %v1039 = vmul.f32 %v1038, 1.442695
    %v1040 = vpow.pop %v1039
    %v1041 = vadd.f32 %v1040, 1.0
    %v1042 = vrcp.pop %v1041
    %v1043 = vmul.f32 1.0, %v1042
    %v1044 = vadd.f32 %v985, %v393
    %1046 = vrot.lane.b32.xlu0 %v1044, 64
    %v1047 = vpop.permute.xlu0 %1046
    %v1049 = vmul.f32 %v1043, %v1047
    %1051 = vrot.lane.b32.xlu0 %v1049, 64
    %v1052 = vpop.permute.xlu0 %1051
    %v1054 = vadd.f32 %v941, %v1052
    %v1055 = vtanh.pop %v1054
    %v1056 = vsub.f32 1.0, %v1043
    %1058 = vrot.lane.b32.xlu0 %v1055, 96
    %v1059 = vpop.permute.xlu0 %1058
    %v1061 = vmul.f32 %v1056, %v1059
    %v1062 = vmul.f32 %v1043, %v903
    %v1063 = vadd.f32 %v1061, %v1062
    %v1064 = vadd.f32 %v942, %v1032
    %v1065 = vxor.u32 %v1064, 2147483648
    %v1066 = vmul.f32 %v1065, 1.442695
    %v1067 = vpow.pop %v1066
    %v1068 = vadd.f32 %v1067, 1.0
    %v1069 = vrcp.pop %v1068
    %v1070 = vmul.f32 1.0, %v1069
    %v1071 = vadd.f32 %v1032, %v428
    %1073 = vrot.lane.b32.xlu0 %v1071, 64
    %v1074 = vpop.permute.xlu0 %1073
    %v1076 = vmul.f32 %v1070, %v1074
    %1078 = vrot.lane.b32.xlu0 %v1076, 64
    %v1079 = vpop.permute.xlu0 %1078
    %v1081 = vadd.f32 %v942, %v1079
    %v1082 = vtanh.pop %v1081
    %v1083 = vsub.f32 1.0, %v1070
    %1085 = vrot.lane.b32.xlu0 %v1082, 96
    %v1086 = vpop.permute.xlu0 %1085
    %v1088 = vmul.f32 %v1083, %v1086
    %v1089 = vmul.f32 %v1070, %v930
    %v1090 = vadd.f32 %v1088, %v1089
    %1092 = vrot.lane.b32.xlu0 %v1063, 96
    %v1093 = vpop.permute.xlu0 %1092
    %1095 = vst.msk [vmem:[#allocation6 + $0x8] sm:$0x3] %vm454, %v1093
    %1097 = vrot.lane.b32.xlu0 %v1090, 96
    %v1098 = vpop.permute.xlu0 %1097
    %1100 = vst.msk [vmem:[#allocation7 + $0x6] sm:$0x3] %vm454, %v1098
    %v1101 = vld [vmem:[#allocation2 + $0xa] sm:$0x3]
    %v1102 = vld [vmem:[#allocation3 + $0x4] sm:$0x3]
    %v1103 = vpack.c.bf16 %v1063, %v1063
    %1105 = vrot.lane.b32.xlu0 %v1103, 96
    %v1106 = vpop.permute.xlu0 %1105
    %v1108 = vsel %vm284, %v1106, 0
    %1110 = vmatprep.subr.bf16.mxu0 0
    %1111 = vmatpush1.bf16.msra.mxu0 %v280
    %1112 = vmatprep.subr.bf16.mxu0 0
    %1113 = vmatpush1.bf16.msra.mxu0 %v281
    %1114 = vmatprep.subr.bf16.mxu0 0
    %1115 = vmatpush1.bf16.msra.mxu0 0
    %1116 = vmatprep.subr.bf16.mxu0 0
    %1117 = vmatpush1.bf16.msra.mxu0 0
    %1118 = vmatprep.subr.bf16.mxu0 0
    %1119 = vmatpush1.bf16.msra.mxu0 0
    %1120 = vmatprep.subr.bf16.mxu0 0
    %1121 = vmatpush1.bf16.msra.mxu0 0
    %1122 = vmatprep.subr.bf16.mxu0 0
    %1123 = vmatpush1.bf16.msra.mxu0 0
    %1124 = vmatprep.subr.bf16.mxu0 0
    %1125 = vmatpush1.bf16.msra.mxu0 0
    %1126 = vmatprep.subr.bf16.mxu0 0
    %1127 = vmatpush1.bf16.msra.mxu0 0
    %1128 = vmatprep.subr.bf16.mxu0 0
    %1129 = vmatpush1.bf16.msra.mxu0 0
    %1130 = vmatprep.subr.bf16.mxu0 0
    %1131 = vmatpush1.bf16.msra.mxu0 0
    %1132 = vmatprep.subr.bf16.mxu0 0
    %1133 = vmatpush1.bf16.msra.mxu0 0
    %1134 = vmatprep.subr.bf16.mxu0 0
    %1135 = vmatpush1.bf16.msra.mxu0 0
    %1136 = vmatprep.subr.bf16.mxu0 0
    %1137 = vmatpush1.bf16.msra.mxu0 0
    %1138 = vmatprep.subr.bf16.mxu0 0
    %1139 = vmatpush1.bf16.msra.mxu0 0
    %1140 = vmatprep.subr.bf16.mxu0 0
    %1141 = vmatpush1.bf16.msra.mxu0 0
    %1142 = vmatprep.mubr.bf16.mxu0 0
    %1143 = vmatmul.mubr.bf16.gmra.mrb[0].mxu0 %v1108
    %v1144 = vpop.f32.mrb[0].mxu0
    %v1145 = vadd.f32 0.0, %v1144
    %v1146 = vpop.f32.mrb[0].mxu0
    %v1147 = vpop.f32.mrb[0].mxu0
    %v1148 = vpop.f32.mrb[0].mxu0
    %1149 = vdwg.mxu0
    %v1150 = vpack.c.bf16 %v1090, %v1090
    %1152 = vrot.lane.b32.xlu0 %v1150, 96
    %v1153 = vpop.permute.xlu0 %1152
    %v1155 = vsel %vm284, %v1153, 0
    %1157 = vmatprep.subr.bf16.mxu0 0
    %1158 = vmatpush1.bf16.msra.mxu0 %v336
    %1159 = vmatprep.subr.bf16.mxu0 0
    %1160 = vmatpush1.bf16.msra.mxu0 %v337
    %1161 = vmatprep.subr.bf16.mxu0 0
    %1162 = vmatpush1.bf16.msra.mxu0 0
    %1163 = vmatprep.subr.bf16.mxu0 0
    %1164 = vmatpush1.bf16.msra.mxu0 0
    %1165 = vmatprep.subr.bf16.mxu0 0
    %1166 = vmatpush1.bf16.msra.mxu0 0
    %1167 = vmatprep.subr.bf16.mxu0 0
    %1168 = vmatpush1.bf16.msra.mxu0 0
    %1169 = vmatprep.subr.bf16.mxu0 0
    %1170 = vmatpush1.bf16.msra.mxu0 0
    %1171 = vmatprep.subr.bf16.mxu0 0
    %1172 = vmatpush1.bf16.msra.mxu0 0
    %1173 = vmatprep.subr.bf16.mxu0 0
    %1174 = vmatpush1.bf16.msra.mxu0 0
    %1175 = vmatprep.subr.bf16.mxu0 0
    %1176 = vmatpush1.bf16.msra.mxu0 0
    %1177 = vmatprep.subr.bf16.mxu0 0
    %1178 = vmatpush1.bf16.msra.mxu0 0
    %1179 = vmatprep.subr.bf16.mxu0 0
    %1180 = vmatpush1.bf16.msra.mxu0 0
    %1181 = vmatprep.subr.bf16.mxu0 0
    %1182 = vmatpush1.bf16.msra.mxu0 0
    %1183 = vmatprep.subr.bf16.mxu0 0
    %1184 = vmatpush1.bf16.msra.mxu0 0
    %1185 = vmatprep.subr.bf16.mxu0 0
    %1186 = vmatpush1.bf16.msra.mxu0 0
    %1187 = vmatprep.subr.bf16.mxu0 0
    %1188 = vmatpush1.bf16.msra.mxu0 0
    %1189 = vmatprep.mubr.bf16.mxu0 0
    %1190 = vmatmul.mubr.bf16.gmra.mrb[0].mxu0 %v1155
    %v1191 = vpop.f32.mrb[0].mxu0
    %v1192 = vadd.f32 0.0, %v1191
    %v1193 = vpop.f32.mrb[0].mxu0
    %v1194 = vpop.f32.mrb[0].mxu0
    %v1195 = vpop.f32.mrb[0].mxu0
    %1196 = vdwg.mxu0
    %v1197 = vadd.f32 %v1101, %v1145
    %v1198 = vxor.u32 %v1197, 2147483648
    %v1199 = vmul.f32 %v1198, 1.442695
    %v1200 = vpow.pop %v1199
    %v1201 = vadd.f32 %v1200, 1.0
    %v1202 = vrcp.pop %v1201
    %v1203 = vmul.f32 1.0, %v1202
    %v1204 = vadd.f32 %v1145, %v393
    %1206 = vrot.lane.b32.xlu0 %v1204, 64
    %v1207 = vpop.permute.xlu0 %1206
    %v1209 = vmul.f32 %v1203, %v1207
    %1211 = vrot.lane.b32.xlu0 %v1209, 64
    %v1212 = vpop.permute.xlu0 %1211
    %v1214 = vadd.f32 %v1101, %v1212
    %v1215 = vtanh.pop %v1214
    %v1216 = vsub.f32 1.0, %v1203
    %1218 = vrot.lane.b32.xlu0 %v1215, 96
    %v1219 = vpop.permute.xlu0 %1218
    %v1221 = vmul.f32 %v1216, %v1219
    %v1222 = vmul.f32 %v1203, %v1063
    %v1223 = vadd.f32 %v1221, %v1222
    %v1224 = vadd.f32 %v1102, %v1192
    %v1225 = vxor.u32 %v1224, 2147483648
    %v1226 = vmul.f32 %v1225, 1.442695
    %v1227 = vpow.pop %v1226
    %v1228 = vadd.f32 %v1227, 1.0
    %v1229 = vrcp.pop %v1228
    %v1230 = vmul.f32 1.0, %v1229
    %v1231 = vadd.f32 %v1192, %v428
    %1233 = vrot.lane.b32.xlu0 %v1231, 64
    %v1234 = vpop.permute.xlu0 %1233
    %v1236 = vmul.f32 %v1230, %v1234
    %1238 = vrot.lane.b32.xlu0 %v1236, 64
    %v1239 = vpop.permute.xlu0 %1238
    %v1241 = vadd.f32 %v1102, %v1239
    %v1242 = vtanh.pop %v1241
    %v1243 = vsub.f32 1.0, %v1230
    %1245 = vrot.lane.b32.xlu0 %v1242, 96
    %v1246 = vpop.permute.xlu0 %1245
    %v1248 = vmul.f32 %v1243, %v1246
    %v1249 = vmul.f32 %v1230, %v1090
    %v1250 = vadd.f32 %v1248, %v1249
    %1252 = vrot.lane.b32.xlu0 %v1223, 96
    %v1253 = vpop.permute.xlu0 %1252
    %1255 = vst.msk [vmem:[#allocation6 + $0xa] sm:$0x3] %vm454, %v1253
    %1257 = vrot.lane.b32.xlu0 %v1250, 96
    %v1258 = vpop.permute.xlu0 %1257
    %1260 = vst.msk [vmem:[#allocation7 + $0x4] sm:$0x3] %vm454, %v1258
    %v1261 = vld [vmem:[#allocation2 + $0xc] sm:$0x3]
    %v1262 = vld [vmem:[#allocation3 + $0x2] sm:$0x3]
    %v1263 = vpack.c.bf16 %v1223, %v1223
    %1265 = vrot.lane.b32.xlu0 %v1263, 96
    %v1266 = vpop.permute.xlu0 %1265
    %v1268 = vsel %vm284, %v1266, 0
    %1270 = vmatprep.subr.bf16.mxu0 0
    %1271 = vmatpush1.bf16.msra.mxu0 %v280
    %1272 = vmatprep.subr.bf16.mxu0 0
    %1273 = vmatpush1.bf16.msra.mxu0 %v281
    %1274 = vmatprep.subr.bf16.mxu0 0
    %1275 = vmatpush1.bf16.msra.mxu0 0
    %1276 = vmatprep.subr.bf16.mxu0 0
    %1277 = vmatpush1.bf16.msra.mxu0 0
    %1278 = vmatprep.subr.bf16.mxu0 0
    %1279 = vmatpush1.bf16.msra.mxu0 0
    %1280 = vmatprep.subr.bf16.mxu0 0
    %1281 = vmatpush1.bf16.msra.mxu0 0
    %1282 = vmatprep.subr.bf16.mxu0 0
    %1283 = vmatpush1.bf16.msra.mxu0 0
    %1284 = vmatprep.subr.bf16.mxu0 0
    %1285 = vmatpush1.bf16.msra.mxu0 0
    %1286 = vmatprep.subr.bf16.mxu0 0
    %1287 = vmatpush1.bf16.msra.mxu0 0
    %1288 = vmatprep.subr.bf16.mxu0 0
    %1289 = vmatpush1.bf16.msra.mxu0 0
    %1290 = vmatprep.subr.bf16.mxu0 0
    %1291 = vmatpush1.bf16.msra.mxu0 0
    %1292 = vmatprep.subr.bf16.mxu0 0
    %1293 = vmatpush1.bf16.msra.mxu0 0
    %1294 = vmatprep.subr.bf16.mxu0 0
    %1295 = vmatpush1.bf16.msra.mxu0 0
    %1296 = vmatprep.subr.bf16.mxu0 0
    %1297 = vmatpush1.bf16.msra.mxu0 0
    %1298 = vmatprep.subr.bf16.mxu0 0
    %1299 = vmatpush1.bf16.msra.mxu0 0
    %1300 = vmatprep.subr.bf16.mxu0 0
    %1301 = vmatpush1.bf16.msra.mxu0 0
    %1302 = vmatprep.mubr.bf16.mxu0 0
    %1303 = vmatmul.mubr.bf16.gmra.mrb[0].mxu0 %v1268
    %v1304 = vpop.f32.mrb[0].mxu0
    %v1305 = vadd.f32 0.0, %v1304
    %v1306 = vpop.f32.mrb[0].mxu0
    %v1307 = vpop.f32.mrb[0].mxu0
    %v1308 = vpop.f32.mrb[0].mxu0
    %1309 = vdwg.mxu0
    %v1310 = vpack.c.bf16 %v1250, %v1250
    %1312 = vrot.lane.b32.xlu0 %v1310, 96
    %v1313 = vpop.permute.xlu0 %1312
    %v1315 = vsel %vm284, %v1313, 0
    %1317 = vmatprep.subr.bf16.mxu0 0
    %1318 = vmatpush1.bf16.msra.mxu0 %v336
    %1319 = vmatprep.subr.bf16.mxu0 0
    %1320 = vmatpush1.bf16.msra.mxu0 %v337
    %1321 = vmatprep.subr.bf16.mxu0 0
    %1322 = vmatpush1.bf16.msra.mxu0 0
    %1323 = vmatprep.subr.bf16.mxu0 0
    %1324 = vmatpush1.bf16.msra.mxu0 0
    %1325 = vmatprep.subr.bf16.mxu0 0
    %1326 = vmatpush1.bf16.msra.mxu0 0
    %1327 = vmatprep.subr.bf16.mxu0 0
    %1328 = vmatpush1.bf16.msra.mxu0 0
    %1329 = vmatprep.subr.bf16.mxu0 0
    %1330 = vmatpush1.bf16.msra.mxu0 0
    %1331 = vmatprep.subr.bf16.mxu0 0
    %1332 = vmatpush1.bf16.msra.mxu0 0
    %1333 = vmatprep.subr.bf16.mxu0 0
    %1334 = vmatpush1.bf16.msra.mxu0 0
    %1335 = vmatprep.subr.bf16.mxu0 0
    %1336 = vmatpush1.bf16.msra.mxu0 0
    %1337 = vmatprep.subr.bf16.mxu0 0
    %1338 = vmatpush1.bf16.msra.mxu0 0
    %1339 = vmatprep.subr.bf16.mxu0 0
    %1340 = vmatpush1.bf16.msra.mxu0 0
    %1341 = vmatprep.subr.bf16.mxu0 0
    %1342 = vmatpush1.bf16.msra.mxu0 0
    %1343 = vmatprep.subr.bf16.mxu0 0
    %1344 = vmatpush1.bf16.msra.mxu0 0
    %1345 = vmatprep.subr.bf16.mxu0 0
    %1346 = vmatpush1.bf16.msra.mxu0 0
    %1347 = vmatprep.subr.bf16.mxu0 0
    %1348 = vmatpush1.bf16.msra.mxu0 0
    %1349 = vmatprep.mubr.bf16.mxu0 0
    %1350 = vmatmul.mubr.bf16.gmra.mrb[0].mxu0 %v1315
    %v1351 = vpop.f32.mrb[0].mxu0
    %v1352 = vadd.f32 0.0, %v1351
    %v1353 = vpop.f32.mrb[0].mxu0
    %v1354 = vpop.f32.mrb[0].mxu0
    %v1355 = vpop.f32.mrb[0].mxu0
    %1356 = vdwg.mxu0
    %v1357 = vadd.f32 %v1261, %v1305
    %v1358 = vxor.u32 %v1357, 2147483648
    %v1359 = vmul.f32 %v1358, 1.442695
    %v1360 = vpow.pop %v1359
    %v1361 = vadd.f32 %v1360, 1.0
    %v1362 = vrcp.pop %v1361
    %v1363 = vmul.f32 1.0, %v1362
    %v1364 = vadd.f32 %v1305, %v393
    %1366 = vrot.lane.b32.xlu0 %v1364, 64
    %v1367 = vpop.permute.xlu0 %1366
    %v1369 = vmul.f32 %v1363, %v1367
    %1371 = vrot.lane.b32.xlu0 %v1369, 64
    %v1372 = vpop.permute.xlu0 %1371
    %v1374 = vadd.f32 %v1261, %v1372
    %v1375 = vtanh.pop %v1374
    %v1376 = vsub.f32 1.0, %v1363
    %1378 = vrot.lane.b32.xlu0 %v1375, 96
    %v1379 = vpop.permute.xlu0 %1378
    %v1381 = vmul.f32 %v1376, %v1379
    %v1382 = vmul.f32 %v1363, %v1223
    %v1383 = vadd.f32 %v1381, %v1382
    %v1384 = vadd.f32 %v1262, %v1352
    %v1385 = vxor.u32 %v1384, 2147483648
    %v1386 = vmul.f32 %v1385, 1.442695
    %v1387 = vpow.pop %v1386
    %v1388 = vadd.f32 %v1387, 1.0
    %v1389 = vrcp.pop %v1388
    %v1390 = vmul.f32 1.0, %v1389
    %v1391 = vadd.f32 %v1352, %v428
    %1393 = vrot.lane.b32.xlu0 %v1391, 64
    %v1394 = vpop.permute.xlu0 %1393
    %v1396 = vmul.f32 %v1390, %v1394
    %1398 = vrot.lane.b32.xlu0 %v1396, 64
    %v1399 = vpop.permute.xlu0 %1398
    %v1401 = vadd.f32 %v1262, %v1399
    %v1402 = vtanh.pop %v1401
    %v1403 = vsub.f32 1.0, %v1390
    %1405 = vrot.lane.b32.xlu0 %v1402, 96
    %v1406 = vpop.permute.xlu0 %1405
    %v1408 = vmul.f32 %v1403, %v1406
    %v1409 = vmul.f32 %v1390, %v1250
    %v1410 = vadd.f32 %v1408, %v1409
    %1412 = vrot.lane.b32.xlu0 %v1383, 96
    %v1413 = vpop.permute.xlu0 %1412
    %1415 = vst.msk [vmem:[#allocation6 + $0xc] sm:$0x3] %vm454, %v1413
    %1417 = vrot.lane.b32.xlu0 %v1410, 96
    %v1418 = vpop.permute.xlu0 %1417
    %1420 = vst.msk [vmem:[#allocation7 + $0x2] sm:$0x3] %vm454, %v1418
    %v1421 = vld [vmem:[#allocation2 + $0xe] sm:$0x3]
    %v1422 = vld [vmem:[#allocation3] sm:$0x3]
    %v1423 = vpack.c.bf16 %v1383, %v1383
    %1425 = vrot.lane.b32.xlu0 %v1423, 96
    %v1426 = vpop.permute.xlu0 %1425
    %v1428 = vsel %vm284, %v1426, 0
    %1430 = vmatprep.subr.bf16.mxu0 0
    %1431 = vmatpush1.bf16.msra.mxu0 %v280
    %1432 = vmatprep.subr.bf16.mxu0 0
    %1433 = vmatpush1.bf16.msra.mxu0 %v281
    %1434 = vmatprep.subr.bf16.mxu0 0
    %1435 = vmatpush1.bf16.msra.mxu0 0
    %1436 = vmatprep.subr.bf16.mxu0 0
    %1437 = vmatpush1.bf16.msra.mxu0 0
    %1438 = vmatprep.subr.bf16.mxu0 0
    %1439 = vmatpush1.bf16.msra.mxu0 0
    %1440 = vmatprep.subr.bf16.mxu0 0
    %1441 = vmatpush1.bf16.msra.mxu0 0
    %1442 = vmatprep.subr.bf16.mxu0 0
    %1443 = vmatpush1.bf16.msra.mxu0 0
    %1444 = vmatprep.subr.bf16.mxu0 0
    %1445 = vmatpush1.bf16.msra.mxu0 0
    %1446 = vmatprep.subr.bf16.mxu0 0
    %1447 = vmatpush1.bf16.msra.mxu0 0
    %1448 = vmatprep.subr.bf16.mxu0 0
    %1449 = vmatpush1.bf16.msra.mxu0 0
    %1450 = vmatprep.subr.bf16.mxu0 0
    %1451 = vmatpush1.bf16.msra.mxu0 0
    %1452 = vmatprep.subr.bf16.mxu0 0
    %1453 = vmatpush1.bf16.msra.mxu0 0
    %1454 = vmatprep.subr.bf16.mxu0 0
    %1455 = vmatpush1.bf16.msra.mxu0 0
    %1456 = vmatprep.subr.bf16.mxu0 0
    %1457 = vmatpush1.bf16.msra.mxu0 0
    %1458 = vmatprep.subr.bf16.mxu0 0
    %1459 = vmatpush1.bf16.msra.mxu0 0
    %1460 = vmatprep.subr.bf16.mxu0 0
    %1461 = vmatpush1.bf16.msra.mxu0 0
    %1462 = vmatprep.mubr.bf16.mxu0 0
    %1463 = vmatmul.mubr.bf16.gmra.mrb[0].mxu0 %v1428
    %v1464 = vpop.f32.mrb[0].mxu0
    %v1465 = vadd.f32 0.0, %v1464
    %v1466 = vpop.f32.mrb[0].mxu0
    %v1467 = vpop.f32.mrb[0].mxu0
    %v1468 = vpop.f32.mrb[0].mxu0
    %1469 = vdwg.mxu0
    %v1470 = vpack.c.bf16 %v1410, %v1410
    %1472 = vrot.lane.b32.xlu0 %v1470, 96
    %v1473 = vpop.permute.xlu0 %1472
    %v1475 = vsel %vm284, %v1473, 0
    %1477 = vmatprep.subr.bf16.mxu0 0
    %1478 = vmatpush1.bf16.msra.mxu0 %v336
    %1479 = vmatprep.subr.bf16.mxu0 0
    %1480 = vmatpush1.bf16.msra.mxu0 %v337
    %1481 = vmatprep.subr.bf16.mxu0 0
    %1482 = vmatpush1.bf16.msra.mxu0 0
    %1483 = vmatprep.subr.bf16.mxu0 0
    %1484 = vmatpush1.bf16.msra.mxu0 0
    %1485 = vmatprep.subr.bf16.mxu0 0
    %1486 = vmatpush1.bf16.msra.mxu0 0
    %1487 = vmatprep.subr.bf16.mxu0 0
    %1488 = vmatpush1.bf16.msra.mxu0 0
    %1489 = vmatprep.subr.bf16.mxu0 0
    %1490 = vmatpush1.bf16.msra.mxu0 0
    %1491 = vmatprep.subr.bf16.mxu0 0
    %1492 = vmatpush1.bf16.msra.mxu0 0
    %1493 = vmatprep.subr.bf16.mxu0 0
    %1494 = vmatpush1.bf16.msra.mxu0 0
    %1495 = vmatprep.subr.bf16.mxu0 0
    %1496 = vmatpush1.bf16.msra.mxu0 0
    %1497 = vmatprep.subr.bf16.mxu0 0
    %1498 = vmatpush1.bf16.msra.mxu0 0
    %1499 = vmatprep.subr.bf16.mxu0 0
    %1500 = vmatpush1.bf16.msra.mxu0 0
    %1501 = vmatprep.subr.bf16.mxu0 0
    %1502 = vmatpush1.bf16.msra.mxu0 0
    %1503 = vmatprep.subr.bf16.mxu0 0
    %1504 = vmatpush1.bf16.msra.mxu0 0
    %1505 = vmatprep.subr.bf16.mxu0 0
    %1506 = vmatpush1.bf16.msra.mxu0 0
    %1507 = vmatprep.subr.bf16.mxu0 0
    %1508 = vmatpush1.bf16.msra.mxu0 0
    %1509 = vmatprep.mubr.bf16.mxu0 0
    %1510 = vmatmul.mubr.bf16.gmra.mrb[0].mxu0 %v1475
    %v1511 = vpop.f32.mrb[0].mxu0
    %v1512 = vadd.f32 0.0, %v1511
    %v1513 = vpop.f32.mrb[0].mxu0
    %v1514 = vpop.f32.mrb[0].mxu0
    %v1515 = vpop.f32.mrb[0].mxu0
    %1516 = vdwg.mxu0
    %v1517 = vadd.f32 %v1421, %v1465
    %v1518 = vxor.u32 %v1517, 2147483648
    %v1519 = vmul.f32 %v1518, 1.442695
    %v1520 = vpow.pop %v1519
    %v1521 = vadd.f32 %v1520, 1.0
    %v1522 = vrcp.pop %v1521
    %v1523 = vmul.f32 1.0, %v1522
    %v1524 = vadd.f32 %v1465, %v393
    %1526 = vrot.lane.b32.xlu0 %v1524, 64
    %v1527 = vpop.permute.xlu0 %1526
    %v1529 = vmul.f32 %v1523, %v1527
    %1531 = vrot.lane.b32.xlu0 %v1529, 64
    %v1532 = vpop.permute.xlu0 %1531
    %v1534 = vadd.f32 %v1421, %v1532
    %v1535 = vtanh.pop %v1534
    %v1536 = vsub.f32 1.0, %v1523
    %1538 = vrot.lane.b32.xlu0 %v1535, 96
    %v1539 = vpop.permute.xlu0 %1538
    %v1541 = vmul.f32 %v1536, %v1539
    %v1542 = vmul.f32 %v1523, %v1383
    %v1543 = vadd.f32 %v1541, %v1542
    %v1544 = vadd.f32 %v1422, %v1512
    %v1545 = vxor.u32 %v1544, 2147483648
    %v1546 = vmul.f32 %v1545, 1.442695
    %v1547 = vpow.pop %v1546
    %v1548 = vadd.f32 %v1547, 1.0
    %v1549 = vrcp.pop %v1548
    %v1550 = vmul.f32 1.0, %v1549
    %v1551 = vadd.f32 %v1512, %v428
    %1553 = vrot.lane.b32.xlu0 %v1551, 64
    %v1554 = vpop.permute.xlu0 %1553
    %v1556 = vmul.f32 %v1550, %v1554
    %1558 = vrot.lane.b32.xlu0 %v1556, 64
    %v1559 = vpop.permute.xlu0 %1558
    %v1561 = vadd.f32 %v1422, %v1559
    %v1562 = vtanh.pop %v1561
    %v1563 = vsub.f32 1.0, %v1550
    %1565 = vrot.lane.b32.xlu0 %v1562, 96
    %v1566 = vpop.permute.xlu0 %1565
    %v1568 = vmul.f32 %v1563, %v1566
    %v1569 = vmul.f32 %v1550, %v1410
    %v1570 = vadd.f32 %v1568, %v1569
    %1572 = vrot.lane.b32.xlu0 %v1543, 96
    %v1573 = vpop.permute.xlu0 %1572
    %1575 = vst.msk [vmem:[#allocation6 + $0xe] sm:$0x3] %vm454, %v1573
    %1577 = vrot.lane.b32.xlu0 %v1570, 96
    %v1578 = vpop.permute.xlu0 %1577
    %1580 = vst.msk [vmem:[#allocation7] sm:$0x3] %vm454, %v1578
    %v1581 = vld [vmem:[#allocation6] sm:$0xff]
    %v1582 = vld [vmem:[#allocation6 + $0x8] sm:$0xff]
    %v1583 = vld [vmem:[#allocation7] sm:$0xff]
    %v1584 = vld [vmem:[#allocation7 + $0x8] sm:$0xff]
    %v1585 = vld [vmem:[#allocation10] sm:$0xff]
    %v1586 = vld [vmem:[#allocation10 + $0x8] sm:$0xff]
    %v1587 = vld [vmem:[#allocation10 + $0x10] sm:$0xff]
    %v1588 = vld [vmem:[#allocation10 + $0x18] sm:$0xff]
    %s1589 = scalar_lea.vmem [#allocation10], 32
    %v1590 = vld [vmem:[%s1589] sm:$0xff]
    %v1591 = vld [vmem:[%s1589 + $0x8] sm:$0xff]
    %v1592 = vld [vmem:[%s1589 + $0x10] sm:$0xff]
    %v1593 = vld [vmem:[%s1589 + $0x18] sm:$0xff]
    %v1595 = vsel %vm284, %v1583, 0
    %v1598 = vsel %vm284, %v1584, 0
    %1600 = vmatprep.subr.mxu0 0.0
    %1601 = vmatpush1.msra.mxu0 %v1590
    %1602 = vmatprep.subr.mxu0 0.0
    %1603 = vmatpush1.msra.mxu0 %v1591
    %1604 = vmatprep.subr.mxu0 0.0
    %1605 = vmatpush1.msra.mxu0 %v1592
    %1606 = vmatprep.subr.mxu0 0.0
    %1607 = vmatpush1.msra.mxu0 %v1593
    %1608 = vmatprep.subr.mxu0 0.0
    %1609 = vmatpush1.msra.mxu0 0.0
    %1610 = vmatprep.subr.mxu0 0.0
    %1611 = vmatpush1.msra.mxu0 0.0
    %1612 = vmatprep.subr.mxu0 0.0
    %1613 = vmatpush1.msra.mxu0 0.0
    %1614 = vmatprep.subr.mxu0 0.0
    %1615 = vmatpush1.msra.mxu0 0.0
    %1616 = vmatprep.subr.mxu0 0.0
    %1617 = vmatpush1.msra.mxu0 0.0
    %1618 = vmatprep.subr.mxu0 0.0
    %1619 = vmatpush1.msra.mxu0 0.0
    %1620 = vmatprep.subr.mxu0 0.0
    %1621 = vmatpush1.msra.mxu0 0.0
    %1622 = vmatprep.subr.mxu0 0.0
    %1623 = vmatpush1.msra.mxu0 0.0
    %1624 = vmatprep.subr.mxu0 0.0
    %1625 = vmatpush1.msra.mxu0 0.0
    %1626 = vmatprep.subr.mxu0 0.0
    %1627 = vmatpush1.msra.mxu0 0.0
    %1628 = vmatprep.subr.mxu0 0.0
    %1629 = vmatpush1.msra.mxu0 0.0
    %1630 = vmatprep.subr.mxu0 0.0
    %1631 = vmatpush1.msra.mxu0 0.0
    %1632 = vmatprep.subr.mxu0 0.0
    %1633 = vmatpush1.msra.mxu0 0.0
    %1634 = vmatprep.subr.mxu0 0.0
    %1635 = vmatpush1.msra.mxu0 0.0
    %1636 = vmatprep.subr.mxu0 0.0
    %1637 = vmatpush1.msra.mxu0 0.0
    %1638 = vmatprep.subr.mxu0 0.0
    %1639 = vmatpush1.msra.mxu0 0.0
    %1640 = vmatprep.subr.mxu0 0.0
    %1641 = vmatpush1.msra.mxu0 0.0
    %1642 = vmatprep.subr.mxu0 0.0
    %1643 = vmatpush1.msra.mxu0 0.0
    %1644 = vmatprep.subr.mxu0 0.0
    %1645 = vmatpush1.msra.mxu0 0.0
    %1646 = vmatprep.subr.mxu0 0.0
    %1647 = vmatpush1.msra.mxu0 0.0
    %1648 = vmatprep.subr.mxu0 0.0
    %1649 = vmatpush1.msra.mxu0 0.0
    %1650 = vmatprep.subr.mxu0 0.0
    %1651 = vmatpush1.msra.mxu0 0.0
    %1652 = vmatprep.subr.mxu0 0.0
    %1653 = vmatpush1.msra.mxu0 0.0
    %1654 = vmatprep.subr.mxu0 0.0
    %1655 = vmatpush1.msra.mxu0 0.0
    %1656 = vmatprep.subr.mxu0 0.0
    %1657 = vmatpush1.msra.mxu0 0.0
    %1658 = vmatprep.subr.mxu0 0.0
    %1659 = vmatpush1.msra.mxu0 0.0
    %1660 = vmatprep.subr.mxu0 0.0
    %1661 = vmatpush1.msra.mxu0 0.0
    %1662 = vmatprep.subr.mxu0 0.0
    %1663 = vmatpush1.msra.mxu0 0.0
    %1664 = vmatprep.mubr.f32.mxu0 0.0
    %1665 = vmatmul.mubr.f32.gmra.mrb[0].mxu0 %v1595
    %v1666 = vpop.f32.mrb[0].mxu0
    %v1667 = vadd.f32 0.0, %v1666
    %v1668 = vpop.f32.mrb[0].mxu0
    %1669 = vmatprep.mubr.f32.mxu0 0.0
    %1670 = vmatmul.mubr.f32.gmra.mrb[0].mxu0 %v1598
    %v1671 = vpop.f32.mrb[0].mxu0
    %v1672 = vadd.f32 0.0, %v1671
    %v1673 = vpop.f32.mrb[0].mxu0
    %1674 = vdwg.mxu0
    %v1676 = vsel %vm284, %v1581, 0
    %v1679 = vsel %vm284, %v1582, 0
    %1681 = vmatprep.subr.mxu0 0.0
    %1682 = vmatpush1.msra.mxu0 %v1585
    %1683 = vmatprep.subr.mxu0 0.0
    %1684 = vmatpush1.msra.mxu0 %v1586
    %1685 = vmatprep.subr.mxu0 0.0
    %1686 = vmatpush1.msra.mxu0 %v1587
    %1687 = vmatprep.subr.mxu0 0.0
    %1688 = vmatpush1.msra.mxu0 %v1588
    %1689 = vmatprep.subr.mxu0 0.0
    %1690 = vmatpush1.msra.mxu0 0.0
    %1691 = vmatprep.subr.mxu0 0.0
    %1692 = vmatpush1.msra.mxu0 0.0
    %1693 = vmatprep.subr.mxu0 0.0
    %1694 = vmatpush1.msra.mxu0 0.0
    %1695 = vmatprep.subr.mxu0 0.0
    %1696 = vmatpush1.msra.mxu0 0.0
    %1697 = vmatprep.subr.mxu0 0.0
    %1698 = vmatpush1.msra.mxu0 0.0
    %1699 = vmatprep.subr.mxu0 0.0
    %1700 = vmatpush1.msra.mxu0 0.0
    %1701 = vmatprep.subr.mxu0 0.0
    %1702 = vmatpush1.msra.mxu0 0.0
    %1703 = vmatprep.subr.mxu0 0.0
    %1704 = vmatpush1.msra.mxu0 0.0
    %1705 = vmatprep.subr.mxu0 0.0
    %1706 = vmatpush1.msra.mxu0 0.0
    %1707 = vmatprep.subr.mxu0 0.0
    %1708 = vmatpush1.msra.mxu0 0.0
    %1709 = vmatprep.subr.mxu0 0.0
    %1710 = vmatpush1.msra.mxu0 0.0
    %1711 = vmatprep.subr.mxu0 0.0
    %1712 = vmatpush1.msra.mxu0 0.0
    %1713 = vmatprep.subr.mxu0 0.0
    %1714 = vmatpush1.msra.mxu0 0.0
    %1715 = vmatprep.subr.mxu0 0.0
    %1716 = vmatpush1.msra.mxu0 0.0
    %1717 = vmatprep.subr.mxu0 0.0
    %1718 = vmatpush1.msra.mxu0 0.0
    %1719 = vmatprep.subr.mxu0 0.0
    %1720 = vmatpush1.msra.mxu0 0.0
    %1721 = vmatprep.subr.mxu0 0.0
    %1722 = vmatpush1.msra.mxu0 0.0
    %1723 = vmatprep.subr.mxu0 0.0
    %1724 = vmatpush1.msra.mxu0 0.0
    %1725 = vmatprep.subr.mxu0 0.0
    %1726 = vmatpush1.msra.mxu0 0.0
    %1727 = vmatprep.subr.mxu0 0.0
    %1728 = vmatpush1.msra.mxu0 0.0
    %1729 = vmatprep.subr.mxu0 0.0
    %1730 = vmatpush1.msra.mxu0 0.0
    %1731 = vmatprep.subr.mxu0 0.0
    %1732 = vmatpush1.msra.mxu0 0.0
    %1733 = vmatprep.subr.mxu0 0.0
    %1734 = vmatpush1.msra.mxu0 0.0
    %1735 = vmatprep.subr.mxu0 0.0
    %1736 = vmatpush1.msra.mxu0 0.0
    %1737 = vmatprep.subr.mxu0 0.0
    %1738 = vmatpush1.msra.mxu0 0.0
    %1739 = vmatprep.subr.mxu0 0.0
    %1740 = vmatpush1.msra.mxu0 0.0
    %1741 = vmatprep.subr.mxu0 0.0
    %1742 = vmatpush1.msra.mxu0 0.0
    %1743 = vmatprep.subr.mxu0 0.0
    %1744 = vmatpush1.msra.mxu0 0.0
    %1745 = vmatprep.mubr.f32.mxu0 0.0
    %1746 = vmatmul.mubr.f32.gmra.mrb[0].mxu0 %v1676
    %v1747 = vpop.f32.mrb[0].mxu0
    %v1748 = vadd.f32 %v1667, %v1747
    %v1749 = vpop.f32.mrb[0].mxu0
    %1750 = vmatprep.mubr.f32.mxu0 0.0
    %1751 = vmatmul.mubr.f32.gmra.mrb[0].mxu0 %v1679
    %v1752 = vpop.f32.mrb[0].mxu0
    %v1753 = vadd.f32 %v1672, %v1752
    %v1754 = vpop.f32.mrb[0].mxu0
    %1755 = vdwg.mxu0
    %v1756 = vld [vmem:[%s6] sm:$0x1]
    %v1758 = vlaneseq
    %v1759 = vshrl.u32 %v1758, 7
    %v1760 = vsub.s32 0, %v1759
    %v1761 = vrot.slane %v1756, %v1760
    %v1763 = vadd.f32 %v1748, %v1761
    %v1764 = vadd.f32 %v1753, %v1761
    %1765 = vst.msk [vmem:[#allocation4] sm:$0xff] %vm167, %v1763
    %1766 = vst.msk [vmem:[#allocation4 + $0x8] sm:$0xff] %vm167, %v1764
    %s1767 = scalar_lea.vmem [#allocation10], 64
    %v1768 = vld [vmem:[%s1767] sm:$0xff]
    %v1769 = vld [vmem:[%s1767 + $0x8] sm:$0xff]
    %v1770 = vld [vmem:[%s1767 + $0x10] sm:$0xff]
    %v1771 = vld [vmem:[%s1767 + $0x18] sm:$0xff]
    %s1772 = scalar_lea.vmem [#allocation10], 96
    %v1773 = vld [vmem:[%s1772] sm:$0xff]
    %v1774 = vld [vmem:[%s1772 + $0x8] sm:$0xff]
    %v1775 = vld [vmem:[%s1772 + $0x10] sm:$0xff]
    %v1776 = vld [vmem:[%s1772 + $0x18] sm:$0xff]
    %1777 = vmatprep.subr.mxu0 0.0
    %1778 = vmatpush1.msra.mxu0 %v1773
    %1779 = vmatprep.subr.mxu0 0.0
    %1780 = vmatpush1.msra.mxu0 %v1774
    %1781 = vmatprep.subr.mxu0 0.0
    %1782 = vmatpush1.msra.mxu0 %v1775
    %1783 = vmatprep.subr.mxu0 0.0
    %1784 = vmatpush1.msra.mxu0 %v1776
    %1785 = vmatprep.subr.mxu0 0.0
    %1786 = vmatpush1.msra.mxu0 0.0
    %1787 = vmatprep.subr.mxu0 0.0
    %1788 = vmatpush1.msra.mxu0 0.0
    %1789 = vmatprep.subr.mxu0 0.0
    %1790 = vmatpush1.msra.mxu0 0.0
    %1791 = vmatprep.subr.mxu0 0.0
    %1792 = vmatpush1.msra.mxu0 0.0
    %1793 = vmatprep.subr.mxu0 0.0
    %1794 = vmatpush1.msra.mxu0 0.0
    %1795 = vmatprep.subr.mxu0 0.0
    %1796 = vmatpush1.msra.mxu0 0.0
    %1797 = vmatprep.subr.mxu0 0.0
    %1798 = vmatpush1.msra.mxu0 0.0
    %1799 = vmatprep.subr.mxu0 0.0
    %1800 = vmatpush1.msra.mxu0 0.0
    %1801 = vmatprep.subr.mxu0 0.0
    %1802 = vmatpush1.msra.mxu0 0.0
    %1803 = vmatprep.subr.mxu0 0.0
    %1804 = vmatpush1.msra.mxu0 0.0
    %1805 = vmatprep.subr.mxu0 0.0
    %1806 = vmatpush1.msra.mxu0 0.0
    %1807 = vmatprep.subr.mxu0 0.0
    %1808 = vmatpush1.msra.mxu0 0.0
    %1809 = vmatprep.subr.mxu0 0.0
    %1810 = vmatpush1.msra.mxu0 0.0
    %1811 = vmatprep.subr.mxu0 0.0
    %1812 = vmatpush1.msra.mxu0 0.0
    %1813 = vmatprep.subr.mxu0 0.0
    %1814 = vmatpush1.msra.mxu0 0.0
    %1815 = vmatprep.subr.mxu0 0.0
    %1816 = vmatpush1.msra.mxu0 0.0
    %1817 = vmatprep.subr.mxu0 0.0
    %1818 = vmatpush1.msra.mxu0 0.0
    %1819 = vmatprep.subr.mxu0 0.0
    %1820 = vmatpush1.msra.mxu0 0.0
    %1821 = vmatprep.subr.mxu0 0.0
    %1822 = vmatpush1.msra.mxu0 0.0
    %1823 = vmatprep.subr.mxu0 0.0
    %1824 = vmatpush1.msra.mxu0 0.0
    %1825 = vmatprep.subr.mxu0 0.0
    %1826 = vmatpush1.msra.mxu0 0.0
    %1827 = vmatprep.subr.mxu0 0.0
    %1828 = vmatpush1.msra.mxu0 0.0
    %1829 = vmatprep.subr.mxu0 0.0
    %1830 = vmatpush1.msra.mxu0 0.0
    %1831 = vmatprep.subr.mxu0 0.0
    %1832 = vmatpush1.msra.mxu0 0.0
    %1833 = vmatprep.subr.mxu0 0.0
    %1834 = vmatpush1.msra.mxu0 0.0
    %1835 = vmatprep.subr.mxu0 0.0
    %1836 = vmatpush1.msra.mxu0 0.0
    %1837 = vmatprep.subr.mxu0 0.0
    %1838 = vmatpush1.msra.mxu0 0.0
    %1839 = vmatprep.subr.mxu0 0.0
    %1840 = vmatpush1.msra.mxu0 0.0
    %1841 = vmatprep.mubr.f32.mxu0 0.0
    %1842 = vmatmul.mubr.f32.gmra.mrb[0].mxu0 %v1595
    %v1843 = vpop.f32.mrb[0].mxu0
    %v1844 = vadd.f32 0.0, %v1843
    %v1845 = vpop.f32.mrb[0].mxu0
    %1846 = vmatprep.mubr.f32.mxu0 0.0
    %1847 = vmatmul.mubr.f32.gmra.mrb[0].mxu0 %v1598
    %v1848 = vpop.f32.mrb[0].mxu0
    %v1849 = vadd.f32 0.0, %v1848
    %v1850 = vpop.f32.mrb[0].mxu0
    %1851 = vdwg.mxu0
    %1852 = vmatprep.subr.mxu0 0.0
    %1853 = vmatpush1.msra.mxu0 %v1768
    %1854 = vmatprep.subr.mxu0 0.0
    %1855 = vmatpush1.msra.mxu0 %v1769
    %1856 = vmatprep.subr.mxu0 0.0
    %1857 = vmatpush1.msra.mxu0 %v1770
    %1858 = vmatprep.subr.mxu0 0.0
    %1859 = vmatpush1.msra.mxu0 %v1771
    %1860 = vmatprep.subr.mxu0 0.0
    %1861 = vmatpush1.msra.mxu0 0.0
    %1862 = vmatprep.subr.mxu0 0.0
    %1863 = vmatpush1.msra.mxu0 0.0
    %1864 = vmatprep.subr.mxu0 0.0
    %1865 = vmatpush1.msra.mxu0 0.0
    %1866 = vmatprep.subr.mxu0 0.0
    %1867 = vmatpush1.msra.mxu0 0.0
    %1868 = vmatprep.subr.mxu0 0.0
    %1869 = vmatpush1.msra.mxu0 0.0
    %1870 = vmatprep.subr.mxu0 0.0
    %1871 = vmatpush1.msra.mxu0 0.0
    %1872 = vmatprep.subr.mxu0 0.0
    %1873 = vmatpush1.msra.mxu0 0.0
    %1874 = vmatprep.subr.mxu0 0.0
    %1875 = vmatpush1.msra.mxu0 0.0
    %1876 = vmatprep.subr.mxu0 0.0
    %1877 = vmatpush1.msra.mxu0 0.0
    %1878 = vmatprep.subr.mxu0 0.0
    %1879 = vmatpush1.msra.mxu0 0.0
    %1880 = vmatprep.subr.mxu0 0.0
    %1881 = vmatpush1.msra.mxu0 0.0
    %1882 = vmatprep.subr.mxu0 0.0
    %1883 = vmatpush1.msra.mxu0 0.0
    %1884 = vmatprep.subr.mxu0 0.0
    %1885 = vmatpush1.msra.mxu0 0.0
    %1886 = vmatprep.subr.mxu0 0.0
    %1887 = vmatpush1.msra.mxu0 0.0
    %1888 = vmatprep.subr.mxu0 0.0
    %1889 = vmatpush1.msra.mxu0 0.0
    %1890 = vmatprep.subr.mxu0 0.0
    %1891 = vmatpush1.msra.mxu0 0.0
    %1892 = vmatprep.subr.mxu0 0.0
    %1893 = vmatpush1.msra.mxu0 0.0
    %1894 = vmatprep.subr.mxu0 0.0
    %1895 = vmatpush1.msra.mxu0 0.0
    %1896 = vmatprep.subr.mxu0 0.0
    %1897 = vmatpush1.msra.mxu0 0.0
    %1898 = vmatprep.subr.mxu0 0.0
    %1899 = vmatpush1.msra.mxu0 0.0
    %1900 = vmatprep.subr.mxu0 0.0
    %1901 = vmatpush1.msra.mxu0 0.0
    %1902 = vmatprep.subr.mxu0 0.0
    %1903 = vmatpush1.msra.mxu0 0.0
    %1904 = vmatprep.subr.mxu0 0.0
    %1905 = vmatpush1.msra.mxu0 0.0
    %1906 = vmatprep.subr.mxu0 0.0
    %1907 = vmatpush1.msra.mxu0 0.0
    %1908 = vmatprep.subr.mxu0 0.0
    %1909 = vmatpush1.msra.mxu0 0.0
    %1910 = vmatprep.subr.mxu0 0.0
    %1911 = vmatpush1.msra.mxu0 0.0
    %1912 = vmatprep.subr.mxu0 0.0
    %1913 = vmatpush1.msra.mxu0 0.0
    %1914 = vmatprep.subr.mxu0 0.0
    %1915 = vmatpush1.msra.mxu0 0.0
    %1916 = vmatprep.mubr.f32.mxu0 0.0
    %1917 = vmatmul.mubr.f32.gmra.mrb[0].mxu0 %v1676
    %v1918 = vpop.f32.mrb[0].mxu0
    %v1919 = vadd.f32 %v1844, %v1918
    %v1920 = vpop.f32.mrb[0].mxu0
    %1921 = vmatprep.mubr.f32.mxu0 0.0
    %1922 = vmatmul.mubr.f32.gmra.mrb[0].mxu0 %v1679
    %v1923 = vpop.f32.mrb[0].mxu0
    %v1924 = vadd.f32 %v1849, %v1923
    %v1925 = vpop.f32.mrb[0].mxu0
    %1926 = vdwg.mxu0
    %s1927 = scalar_lea.vmem %s6, 1
    %v1928 = vld [vmem:[%s1927] sm:$0x1]
    %v1930 = vlaneseq
    %v1931 = vshrl.u32 %v1930, 7
    %v1932 = vsub.s32 0, %v1931
    %v1933 = vrot.slane %v1928, %v1932
    %v1935 = vadd.f32 %v1919, %v1933
    %v1936 = vadd.f32 %v1924, %v1933
    %1937 = vst.msk [vmem:[#allocation5] sm:$0xff] %vm167, %v1935
    %1938 = vst.msk [vmem:[#allocation5 + $0x8] sm:$0xff] %vm167, %v1936
    %v1939 = vld [vmem:[#allocation12] sm:$0xf]
    %v1940 = vld [vmem:[#allocation12 + $0x4] sm:$0xf]
    %v1941 = vld [vmem:[#allocation12 + $0x8] sm:$0xf]
    %v1942 = vld [vmem:[#allocation12 + $0xc] sm:$0xf]
    %s1943 = scalar_lea.vmem [#allocation12], 16
    %v1944 = vld [vmem:[%s1943] sm:$0xf]
    %v1945 = vld [vmem:[%s1943 + $0x4] sm:$0xf]
    %v1946 = vld [vmem:[%s1943 + $0x8] sm:$0xf]
    %v1947 = vld [vmem:[%s1943 + $0xc] sm:$0xf]
    %v1948 = vld [vmem:[%s8] sm:$0x1]
    %s1949 = scalar_lea.vmem %s8, 1
    %v1950 = vld [vmem:[%s1949] sm:$0x1]
    %v1951 = vld [vmem:[#allocation4] sm:$0x3]
    %v1952 = vld [vmem:[#allocation5 + $0xe] sm:$0x3]
    %v1957 = vunpack.c.l.b16 %v1939
    %v1958 = vunpack.c.l.b16 %v1940
    %v1959 = vunpack.c.l.b16 %v1941
    %v1960 = vunpack.c.l.b16 %v1942
    %v1961 = vpack.c.b16 %v1958, %v1957
    %v1962 = vpack.c.b16 %v1960, %v1959
    %1965 = vmatprep.subr.bf16.mxu0 0
    %1966 = vmatpush1.bf16.msra.mxu0 %v1961
    %1967 = vmatprep.subr.bf16.mxu0 0
    %1968 = vmatpush1.bf16.msra.mxu0 %v1962
    %1969 = vmatprep.subr.bf16.mxu0 0
    %1970 = vmatpush1.bf16.msra.mxu0 0
    %1971 = vmatprep.subr.bf16.mxu0 0
    %1972 = vmatpush1.bf16.msra.mxu0 0
    %1973 = vmatprep.subr.bf16.mxu0 0
    %1974 = vmatpush1.bf16.msra.mxu0 0
    %1975 = vmatprep.subr.bf16.mxu0 0
    %1976 = vmatpush1.bf16.msra.mxu0 0
    %1977 = vmatprep.subr.bf16.mxu0 0
    %1978 = vmatpush1.bf16.msra.mxu0 0
    %1979 = vmatprep.subr.bf16.mxu0 0
    %1980 = vmatpush1.bf16.msra.mxu0 0
    %1981 = vmatprep.subr.bf16.mxu0 0
    %1982 = vmatpush1.bf16.msra.mxu0 0
    %1983 = vmatprep.subr.bf16.mxu0 0
    %1984 = vmatpush1.bf16.msra.mxu0 0
    %1985 = vmatprep.subr.bf16.mxu0 0
    %1986 = vmatpush1.bf16.msra.mxu0 0
    %1987 = vmatprep.subr.bf16.mxu0 0
    %1988 = vmatpush1.bf16.msra.mxu0 0
    %1989 = vmatprep.subr.bf16.mxu0 0
    %1990 = vmatpush1.bf16.msra.mxu0 0
    %1991 = vmatprep.subr.bf16.mxu0 0
    %1992 = vmatpush1.bf16.msra.mxu0 0
    %1993 = vmatprep.subr.bf16.mxu0 0
    %1994 = vmatpush1.bf16.msra.mxu0 0
    %1995 = vmatprep.subr.bf16.mxu0 0
    %1996 = vmatpush1.bf16.msra.mxu0 0
    %1997 = vmatprep.mubr.bf16.mxu0 0
    %1998 = vmatmul.mubr.bf16.gmra.mrb[0].mxu0 %v286
    %v1999 = vpop.f32.mrb[0].mxu0
    %v2000 = vadd.f32 0.0, %v1999
    %v2001 = vpop.f32.mrb[0].mxu0
    %v2002 = vpop.f32.mrb[0].mxu0
    %v2003 = vpop.f32.mrb[0].mxu0
    %2004 = vdwg.mxu0
    %v2009 = vunpack.c.l.b16 %v1944
    %v2010 = vunpack.c.l.b16 %v1945
    %v2011 = vunpack.c.l.b16 %v1946
    %v2012 = vunpack.c.l.b16 %v1947
    %v2013 = vpack.c.b16 %v2010, %v2009
    %v2014 = vpack.c.b16 %v2012, %v2011
    %2017 = vmatprep.subr.bf16.mxu0 0
    %2018 = vmatpush1.bf16.msra.mxu0 %v2013
    %2019 = vmatprep.subr.bf16.mxu0 0
    %2020 = vmatpush1.bf16.msra.mxu0 %v2014
    %2021 = vmatprep.subr.bf16.mxu0 0
    %2022 = vmatpush1.bf16.msra.mxu0 0
    %2023 = vmatprep.subr.bf16.mxu0 0
    %2024 = vmatpush1.bf16.msra.mxu0 0
    %2025 = vmatprep.subr.bf16.mxu0 0
    %2026 = vmatpush1.bf16.msra.mxu0 0
    %2027 = vmatprep.subr.bf16.mxu0 0
    %2028 = vmatpush1.bf16.msra.mxu0 0
    %2029 = vmatprep.subr.bf16.mxu0 0
    %2030 = vmatpush1.bf16.msra.mxu0 0
    %2031 = vmatprep.subr.bf16.mxu0 0
    %2032 = vmatpush1.bf16.msra.mxu0 0
    %2033 = vmatprep.subr.bf16.mxu0 0
    %2034 = vmatpush1.bf16.msra.mxu0 0
    %2035 = vmatprep.subr.bf16.mxu0 0
    %2036 = vmatpush1.bf16.msra.mxu0 0
    %2037 = vmatprep.subr.bf16.mxu0 0
    %2038 = vmatpush1.bf16.msra.mxu0 0
    %2039 = vmatprep.subr.bf16.mxu0 0
    %2040 = vmatpush1.bf16.msra.mxu0 0
    %2041 = vmatprep.subr.bf16.mxu0 0
    %2042 = vmatpush1.bf16.msra.mxu0 0
    %2043 = vmatprep.subr.bf16.mxu0 0
    %2044 = vmatpush1.bf16.msra.mxu0 0
    %2045 = vmatprep.subr.bf16.mxu0 0
    %2046 = vmatpush1.bf16.msra.mxu0 0
    %2047 = vmatprep.subr.bf16.mxu0 0
    %2048 = vmatpush1.bf16.msra.mxu0 0
    %2049 = vmatprep.mubr.bf16.mxu0 0
    %2050 = vmatmul.mubr.bf16.gmra.mrb[0].mxu0 %v286
    %v2051 = vpop.f32.mrb[0].mxu0
    %v2052 = vadd.f32 0.0, %v2051
    %v2053 = vpop.f32.mrb[0].mxu0
    %v2054 = vpop.f32.mrb[0].mxu0
    %v2055 = vpop.f32.mrb[0].mxu0
    %2056 = vdwg.mxu0
    %v2057 = vadd.f32 %v1951, %v2000
    %v2058 = vxor.u32 %v2057, 2147483648
    %v2059 = vmul.f32 %v2058, 1.442695
    %v2060 = vpow.pop %v2059
    %v2061 = vadd.f32 %v2060, 1.0
    %v2062 = vrcp.pop %v2061
    %v2063 = vmul.f32 1.0, %v2062
    %v2065 = vlaneseq
    %v2066 = vshrl.u32 %v2065, 7
    %v2067 = vsub.s32 0, %v2066
    %v2068 = vrot.slane %v1948, %v2067
    %2069 = vrot.lane.b32.xlu0 %v2068, 64
    %v2070 = vpop.permute.xlu0 %2069
    %v2072 = vadd.f32 %v2000, %v2070
    %2074 = vrot.lane.b32.xlu0 %v2072, 64
    %v2075 = vpop.permute.xlu0 %2074
    %v2077 = vmul.f32 %v2063, %v2075
    %2079 = vrot.lane.b32.xlu0 %v2077, 64
    %v2080 = vpop.permute.xlu0 %2079
    %v2082 = vadd.f32 %v1951, %v2080
    %v2083 = vtanh.pop %v2082
    %v2084 = vsub.f32 1.0, %v2063
    %2086 = vrot.lane.b32.xlu0 %v2083, 96
    %v2087 = vpop.permute.xlu0 %2086
    %v2089 = vmul.f32 %v2084, %v2087
    %v2090 = vmul.f32 %v2063, 0.0
    %v2091 = vadd.f32 %v2089, %v2090
    %v2092 = vadd.f32 %v1952, %v2052
    %v2093 = vxor.u32 %v2092, 2147483648
    %v2094 = vmul.f32 %v2093, 1.442695
    %v2095 = vpow.pop %v2094
    %v2096 = vadd.f32 %v2095, 1.0
    %v2097 = vrcp.pop %v2096
    %v2098 = vmul.f32 1.0, %v2097
    %v2100 = vlaneseq
    %v2101 = vshrl.u32 %v2100, 7
    %v2102 = vsub.s32 0, %v2101
    %v2103 = vrot.slane %v1950, %v2102
    %2104 = vrot.lane.b32.xlu0 %v2103, 64
    %v2105 = vpop.permute.xlu0 %2104
    %v2107 = vadd.f32 %v2052, %v2105
    %2109 = vrot.lane.b32.xlu0 %v2107, 64
    %v2110 = vpop.permute.xlu0 %2109
    %v2112 = vmul.f32 %v2098, %v2110
    %2114 = vrot.lane.b32.xlu0 %v2112, 64
    %v2115 = vpop.permute.xlu0 %2114
    %v2117 = vadd.f32 %v1952, %v2115
    %v2118 = vtanh.pop %v2117
    %v2119 = vsub.f32 1.0, %v2098
    %2121 = vrot.lane.b32.xlu0 %v2118, 96
    %v2122 = vpop.permute.xlu0 %2121
    %v2124 = vmul.f32 %v2119, %v2122
    %v2125 = vmul.f32 %v2098, 0.0
    %v2126 = vadd.f32 %v2124, %v2125
    %v2127 = vld [vmem:[#allocation4 + $0x2] sm:$0x3]
    %v2128 = vpack.c.bf16 %v2091, %v2091
    %2130 = vrot.lane.b32.xlu0 %v2128, 96
    %v2131 = vpop.permute.xlu0 %2130
    %v2133 = vsel %vm284, %v2131, 0
    %2135 = vmatprep.subr.bf16.mxu0 0
    %2136 = vmatpush1.bf16.msra.mxu0 %v1961
    %2137 = vmatprep.subr.bf16.mxu0 0
    %2138 = vmatpush1.bf16.msra.mxu0 %v1962
    %2139 = vmatprep.subr.bf16.mxu0 0
    %2140 = vmatpush1.bf16.msra.mxu0 0
    %2141 = vmatprep.subr.bf16.mxu0 0
    %2142 = vmatpush1.bf16.msra.mxu0 0
    %2143 = vmatprep.subr.bf16.mxu0 0
    %2144 = vmatpush1.bf16.msra.mxu0 0
    %2145 = vmatprep.subr.bf16.mxu0 0
    %2146 = vmatpush1.bf16.msra.mxu0 0
    %2147 = vmatprep.subr.bf16.mxu0 0
    %2148 = vmatpush1.bf16.msra.mxu0 0
    %2149 = vmatprep.subr.bf16.mxu0 0
    %2150 = vmatpush1.bf16.msra.mxu0 0
    %2151 = vmatprep.subr.bf16.mxu0 0
    %2152 = vmatpush1.bf16.msra.mxu0 0
    %2153 = vmatprep.subr.bf16.mxu0 0
    %2154 = vmatpush1.bf16.msra.mxu0 0
    %2155 = vmatprep.subr.bf16.mxu0 0
    %2156 = vmatpush1.bf16.msra.mxu0 0
    %2157 = vmatprep.subr.bf16.mxu0 0
    %2158 = vmatpush1.bf16.msra.mxu0 0
    %2159 = vmatprep.subr.bf16.mxu0 0
    %2160 = vmatpush1.bf16.msra.mxu0 0
    %2161 = vmatprep.subr.bf16.mxu0 0
    %2162 = vmatpush1.bf16.msra.mxu0 0
    %2163 = vmatprep.subr.bf16.mxu0 0
    %2164 = vmatpush1.bf16.msra.mxu0 0
    %2165 = vmatprep.subr.bf16.mxu0 0
    %2166 = vmatpush1.bf16.msra.mxu0 0
    %2167 = vmatprep.mubr.bf16.mxu0 0
    %2168 = vmatmul.mubr.bf16.gmra.mrb[0].mxu0 %v2133
    %v2169 = vpop.f32.mrb[0].mxu0
    %v2170 = vadd.f32 0.0, %v2169
    %v2171 = vpop.f32.mrb[0].mxu0
    %v2172 = vpop.f32.mrb[0].mxu0
    %v2173 = vpop.f32.mrb[0].mxu0
    %2174 = vdwg.mxu0
    %v2175 = vadd.f32 %v2127, %v2170
    %v2176 = vxor.u32 %v2175, 2147483648
    %v2177 = vmul.f32 %v2176, 1.442695
    %v2178 = vpow.pop %v2177
    %v2179 = vadd.f32 %v2178, 1.0
    %v2180 = vrcp.pop %v2179
    %v2181 = vmul.f32 1.0, %v2180
    %v2182 = vadd.f32 %v2170, %v2070
    %2184 = vrot.lane.b32.xlu0 %v2182, 64
    %v2185 = vpop.permute.xlu0 %2184
    %v2187 = vmul.f32 %v2181, %v2185
    %2189 = vrot.lane.b32.xlu0 %v2187, 64
    %v2190 = vpop.permute.xlu0 %2189
    %v2192 = vadd.f32 %v2127, %v2190
    %v2193 = vtanh.pop %v2192
    %v2194 = vsub.f32 1.0, %v2181
    %2196 = vrot.lane.b32.xlu0 %v2193, 96
    %v2197 = vpop.permute.xlu0 %2196
    %v2199 = vmul.f32 %v2194, %v2197
    %v2200 = vmul.f32 %v2181, %v2091
    %v2201 = vadd.f32 %v2199, %v2200
    %v2202 = vld [vmem:[#allocation4 + $0x4] sm:$0x3]
    %v2203 = vpack.c.bf16 %v2201, %v2201
    %2205 = vrot.lane.b32.xlu0 %v2203, 96
    %v2206 = vpop.permute.xlu0 %2205
    %v2208 = vsel %vm284, %v2206, 0
    %2210 = vmatprep.subr.bf16.mxu0 0
    %2211 = vmatpush1.bf16.msra.mxu0 %v1961
    %2212 = vmatprep.subr.bf16.mxu0 0
    %2213 = vmatpush1.bf16.msra.mxu0 %v1962
    %2214 = vmatprep.subr.bf16.mxu0 0
    %2215 = vmatpush1.bf16.msra.mxu0 0
    %2216 = vmatprep.subr.bf16.mxu0 0
    %2217 = vmatpush1.bf16.msra.mxu0 0
    %2218 = vmatprep.subr.bf16.mxu0 0
    %2219 = vmatpush1.bf16.msra.mxu0 0
    %2220 = vmatprep.subr.bf16.mxu0 0
    %2221 = vmatpush1.bf16.msra.mxu0 0
    %2222 = vmatprep.subr.bf16.mxu0 0
    %2223 = vmatpush1.bf16.msra.mxu0 0
    %2224 = vmatprep.subr.bf16.mxu0 0
    %2225 = vmatpush1.bf16.msra.mxu0 0
    %2226 = vmatprep.subr.bf16.mxu0 0
    %2227 = vmatpush1.bf16.msra.mxu0 0
    %2228 = vmatprep.subr.bf16.mxu0 0
    %2229 = vmatpush1.bf16.msra.mxu0 0
    %2230 = vmatprep.subr.bf16.mxu0 0
    %2231 = vmatpush1.bf16.msra.mxu0 0
    %2232 = vmatprep.subr.bf16.mxu0 0
    %2233 = vmatpush1.bf16.msra.mxu0 0
    %2234 = vmatprep.subr.bf16.mxu0 0
    %2235 = vmatpush1.bf16.msra.mxu0 0
    %2236 = vmatprep.subr.bf16.mxu0 0
    %2237 = vmatpush1.bf16.msra.mxu0 0
    %2238 = vmatprep.subr.bf16.mxu0 0
    %2239 = vmatpush1.bf16.msra.mxu0 0
    %2240 = vmatprep.subr.bf16.mxu0 0
    %2241 = vmatpush1.bf16.msra.mxu0 0
    %2242 = vmatprep.mubr.bf16.mxu0 0
    %2243 = vmatmul.mubr.bf16.gmra.mrb[0].mxu0 %v2208
    %v2244 = vpop.f32.mrb[0].mxu0
    %v2245 = vadd.f32 0.0, %v2244
    %v2246 = vpop.f32.mrb[0].mxu0
    %v2247 = vpop.f32.mrb[0].mxu0
    %v2248 = vpop.f32.mrb[0].mxu0
    %2249 = vdwg.mxu0
    %v2250 = vadd.f32 %v2202, %v2245
    %v2251 = vxor.u32 %v2250, 2147483648
    %v2252 = vmul.f32 %v2251, 1.442695
    %v2253 = vpow.pop %v2252
    %v2254 = vadd.f32 %v2253, 1.0
    %v2255 = vrcp.pop %v2254
    %v2256 = vmul.f32 1.0, %v2255
    %v2257 = vadd.f32 %v2245, %v2070
    %2259 = vrot.lane.b32.xlu0 %v2257, 64
    %v2260 = vpop.permute.xlu0 %2259
    %v2262 = vmul.f32 %v2256, %v2260
    %2264 = vrot.lane.b32.xlu0 %v2262, 64
    %v2265 = vpop.permute.xlu0 %2264
    %v2267 = vadd.f32 %v2202, %v2265
    %v2268 = vtanh.pop %v2267
    %v2269 = vsub.f32 1.0, %v2256
    %2271 = vrot.lane.b32.xlu0 %v2268, 96
    %v2272 = vpop.permute.xlu0 %2271
    %v2274 = vmul.f32 %v2269, %v2272
    %v2275 = vmul.f32 %v2256, %v2201
    %v2276 = vadd.f32 %v2274, %v2275
    %v2277 = vld [vmem:[#allocation4 + $0x6] sm:$0x3]
    %v2278 = vpack.c.bf16 %v2276, %v2276
    %2280 = vrot.lane.b32.xlu0 %v2278, 96
    %v2281 = vpop.permute.xlu0 %2280
    %v2283 = vsel %vm284, %v2281, 0
    %2285 = vmatprep.subr.bf16.mxu0 0
    %2286 = vmatpush1.bf16.msra.mxu0 %v1961
    %2287 = vmatprep.subr.bf16.mxu0 0
    %2288 = vmatpush1.bf16.msra.mxu0 %v1962
    %2289 = vmatprep.subr.bf16.mxu0 0
    %2290 = vmatpush1.bf16.msra.mxu0 0
    %2291 = vmatprep.subr.bf16.mxu0 0
    %2292 = vmatpush1.bf16.msra.mxu0 0
    %2293 = vmatprep.subr.bf16.mxu0 0
    %2294 = vmatpush1.bf16.msra.mxu0 0
    %2295 = vmatprep.subr.bf16.mxu0 0
    %2296 = vmatpush1.bf16.msra.mxu0 0
    %2297 = vmatprep.subr.bf16.mxu0 0
    %2298 = vmatpush1.bf16.msra.mxu0 0
    %2299 = vmatprep.subr.bf16.mxu0 0
    %2300 = vmatpush1.bf16.msra.mxu0 0
    %2301 = vmatprep.subr.bf16.mxu0 0
    %2302 = vmatpush1.bf16.msra.mxu0 0
    %2303 = vmatprep.subr.bf16.mxu0 0
    %2304 = vmatpush1.bf16.msra.mxu0 0
    %2305 = vmatprep.subr.bf16.mxu0 0
    %2306 = vmatpush1.bf16.msra.mxu0 0
    %2307 = vmatprep.subr.bf16.mxu0 0
    %2308 = vmatpush1.bf16.msra.mxu0 0
    %2309 = vmatprep.subr.bf16.mxu0 0
    %2310 = vmatpush1.bf16.msra.mxu0 0
    %2311 = vmatprep.subr.bf16.mxu0 0
    %2312 = vmatpush1.bf16.msra.mxu0 0
    %2313 = vmatprep.subr.bf16.mxu0 0
    %2314 = vmatpush1.bf16.msra.mxu0 0
    %2315 = vmatprep.subr.bf16.mxu0 0
    %2316 = vmatpush1.bf16.msra.mxu0 0
    %2317 = vmatprep.mubr.bf16.mxu0 0
    %2318 = vmatmul.mubr.bf16.gmra.mrb[0].mxu0 %v2283
    %v2319 = vpop.f32.mrb[0].mxu0
    %v2320 = vadd.f32 0.0, %v2319
    %v2321 = vpop.f32.mrb[0].mxu0
    %v2322 = vpop.f32.mrb[0].mxu0
    %v2323 = vpop.f32.mrb[0].mxu0
    %2324 = vdwg.mxu0
    %v2325 = vadd.f32 %v2277, %v2320
    %v2326 = vxor.u32 %v2325, 2147483648
    %v2327 = vmul.f32 %v2326, 1.442695
    %v2328 = vpow.pop %v2327
    %v2329 = vadd.f32 %v2328, 1.0
    %v2330 = vrcp.pop %v2329
    %v2331 = vmul.f32 1.0, %v2330
    %v2332 = vadd.f32 %v2320, %v2070
    %2334 = vrot.lane.b32.xlu0 %v2332, 64
    %v2335 = vpop.permute.xlu0 %2334
    %v2337 = vmul.f32 %v2331, %v2335
    %2339 = vrot.lane.b32.xlu0 %v2337, 64
    %v2340 = vpop.permute.xlu0 %2339
    %v2342 = vadd.f32 %v2277, %v2340
    %v2343 = vtanh.pop %v2342
    %v2344 = vsub.f32 1.0, %v2331
    %2346 = vrot.lane.b32.xlu0 %v2343, 96
    %v2347 = vpop.permute.xlu0 %2346
    %v2349 = vmul.f32 %v2344, %v2347
    %v2350 = vmul.f32 %v2331, %v2276
    %v2351 = vadd.f32 %v2349, %v2350
    %v2352 = vld [vmem:[#allocation4 + $0x8] sm:$0x3]
    %v2353 = vpack.c.bf16 %v2351, %v2351
    %2355 = vrot.lane.b32.xlu0 %v2353, 96
    %v2356 = vpop.permute.xlu0 %2355
    %v2358 = vsel %vm284, %v2356, 0
    %2360 = vmatprep.subr.bf16.mxu0 0
    %2361 = vmatpush1.bf16.msra.mxu0 %v1961
    %2362 = vmatprep.subr.bf16.mxu0 0
    %2363 = vmatpush1.bf16.msra.mxu0 %v1962
    %2364 = vmatprep.subr.bf16.mxu0 0
    %2365 = vmatpush1.bf16.msra.mxu0 0
    %2366 = vmatprep.subr.bf16.mxu0 0
    %2367 = vmatpush1.bf16.msra.mxu0 0
    %2368 = vmatprep.subr.bf16.mxu0 0
    %2369 = vmatpush1.bf16.msra.mxu0 0
    %2370 = vmatprep.subr.bf16.mxu0 0
    %2371 = vmatpush1.bf16.msra.mxu0 0
    %2372 = vmatprep.subr.bf16.mxu0 0
    %2373 = vmatpush1.bf16.msra.mxu0 0
    %2374 = vmatprep.subr.bf16.mxu0 0
    %2375 = vmatpush1.bf16.msra.mxu0 0
    %2376 = vmatprep.subr.bf16.mxu0 0
    %2377 = vmatpush1.bf16.msra.mxu0 0
    %2378 = vmatprep.subr.bf16.mxu0 0
    %2379 = vmatpush1.bf16.msra.mxu0 0
    %2380 = vmatprep.subr.bf16.mxu0 0
    %2381 = vmatpush1.bf16.msra.mxu0 0
    %2382 = vmatprep.subr.bf16.mxu0 0
    %2383 = vmatpush1.bf16.msra.mxu0 0
    %2384 = vmatprep.subr.bf16.mxu0 0
    %2385 = vmatpush1.bf16.msra.mxu0 0
    %2386 = vmatprep.subr.bf16.mxu0 0
    %2387 = vmatpush1.bf16.msra.mxu0 0
    %2388 = vmatprep.subr.bf16.mxu0 0
    %2389 = vmatpush1.bf16.msra.mxu0 0
    %2390 = vmatprep.subr.bf16.mxu0 0
    %2391 = vmatpush1.bf16.msra.mxu0 0
    %2392 = vmatprep.mubr.bf16.mxu0 0
    %2393 = vmatmul.mubr.bf16.gmra.mrb[0].mxu0 %v2358
    %v2394 = vpop.f32.mrb[0].mxu0
    %v2395 = vadd.f32 0.0, %v2394
    %v2396 = vpop.f32.mrb[0].mxu0
    %v2397 = vpop.f32.mrb[0].mxu0
    %v2398 = vpop.f32.mrb[0].mxu0
    %2399 = vdwg.mxu0
    %v2400 = vadd.f32 %v2352, %v2395
    %v2401 = vxor.u32 %v2400, 2147483648
    %v2402 = vmul.f32 %v2401, 1.442695
    %v2403 = vpow.pop %v2402
    %v2404 = vadd.f32 %v2403, 1.0
    %v2405 = vrcp.pop %v2404
    %v2406 = vmul.f32 1.0, %v2405
    %v2407 = vadd.f32 %v2395, %v2070
    %2409 = vrot.lane.b32.xlu0 %v2407, 64
    %v2410 = vpop.permute.xlu0 %2409
    %v2412 = vmul.f32 %v2406, %v2410
    %2414 = vrot.lane.b32.xlu0 %v2412, 64
    %v2415 = vpop.permute.xlu0 %2414
    %v2417 = vadd.f32 %v2352, %v2415
    %v2418 = vtanh.pop %v2417
    %v2419 = vsub.f32 1.0, %v2406
    %2421 = vrot.lane.b32.xlu0 %v2418, 96
    %v2422 = vpop.permute.xlu0 %2421
    %v2424 = vmul.f32 %v2419, %v2422
    %v2425 = vmul.f32 %v2406, %v2351
    %v2426 = vadd.f32 %v2424, %v2425
    %v2427 = vld [vmem:[#allocation4 + $0xa] sm:$0x3]
    %v2428 = vpack.c.bf16 %v2426, %v2426
    %2430 = vrot.lane.b32.xlu0 %v2428, 96
    %v2431 = vpop.permute.xlu0 %2430
    %v2433 = vsel %vm284, %v2431, 0
    %2435 = vmatprep.subr.bf16.mxu0 0
    %2436 = vmatpush1.bf16.msra.mxu0 %v1961
    %2437 = vmatprep.subr.bf16.mxu0 0
    %2438 = vmatpush1.bf16.msra.mxu0 %v1962
    %2439 = vmatprep.subr.bf16.mxu0 0
    %2440 = vmatpush1.bf16.msra.mxu0 0
    %2441 = vmatprep.subr.bf16.mxu0 0
    %2442 = vmatpush1.bf16.msra.mxu0 0
    %2443 = vmatprep.subr.bf16.mxu0 0
    %2444 = vmatpush1.bf16.msra.mxu0 0
    %2445 = vmatprep.subr.bf16.mxu0 0
    %2446 = vmatpush1.bf16.msra.mxu0 0
    %2447 = vmatprep.subr.bf16.mxu0 0
    %2448 = vmatpush1.bf16.msra.mxu0 0
    %2449 = vmatprep.subr.bf16.mxu0 0
    %2450 = vmatpush1.bf16.msra.mxu0 0
    %2451 = vmatprep.subr.bf16.mxu0 0
    %2452 = vmatpush1.bf16.msra.mxu0 0
    %2453 = vmatprep.subr.bf16.mxu0 0
    %2454 = vmatpush1.bf16.msra.mxu0 0
    %2455 = vmatprep.subr.bf16.mxu0 0
    %2456 = vmatpush1.bf16.msra.mxu0 0
    %2457 = vmatprep.subr.bf16.mxu0 0
    %2458 = vmatpush1.bf16.msra.mxu0 0
    %2459 = vmatprep.subr.bf16.mxu0 0
    %2460 = vmatpush1.bf16.msra.mxu0 0
    %2461 = vmatprep.subr.bf16.mxu0 0
    %2462 = vmatpush1.bf16.msra.mxu0 0
    %2463 = vmatprep.subr.bf16.mxu0 0
    %2464 = vmatpush1.bf16.msra.mxu0 0
    %2465 = vmatprep.subr.bf16.mxu0 0
    %2466 = vmatpush1.bf16.msra.mxu0 0
    %2467 = vmatprep.mubr.bf16.mxu0 0
    %2468 = vmatmul.mubr.bf16.gmra.mrb[0].mxu0 %v2433
    %v2469 = vpop.f32.mrb[0].mxu0
    %v2470 = vadd.f32 0.0, %v2469
    %v2471 = vpop.f32.mrb[0].mxu0
    %v2472 = vpop.f32.mrb[0].mxu0
    %v2473 = vpop.f32.mrb[0].mxu0
    %2474 = vdwg.mxu0
    %v2475 = vadd.f32 %v2427, %v2470
    %v2476 = vxor.u32 %v2475, 2147483648
    %v2477 = vmul.f32 %v2476, 1.442695
    %v2478 = vpow.pop %v2477
    %v2479 = vadd.f32 %v2478, 1.0
    %v2480 = vrcp.pop %v2479
    %v2481 = vmul.f32 1.0, %v2480
    %v2482 = vadd.f32 %v2470, %v2070
    %2484 = vrot.lane.b32.xlu0 %v2482, 64
    %v2485 = vpop.permute.xlu0 %2484
    %v2487 = vmul.f32 %v2481, %v2485
    %2489 = vrot.lane.b32.xlu0 %v2487, 64
    %v2490 = vpop.permute.xlu0 %2489
    %v2492 = vadd.f32 %v2427, %v2490
    %v2493 = vtanh.pop %v2492
    %v2494 = vsub.f32 1.0, %v2481
    %2496 = vrot.lane.b32.xlu0 %v2493, 96
    %v2497 = vpop.permute.xlu0 %2496
    %v2499 = vmul.f32 %v2494, %v2497
    %v2500 = vmul.f32 %v2481, %v2426
    %v2501 = vadd.f32 %v2499, %v2500
    %v2502 = vld [vmem:[#allocation4 + $0xc] sm:$0x3]
    %v2503 = vpack.c.bf16 %v2501, %v2501
    %2505 = vrot.lane.b32.xlu0 %v2503, 96
    %v2506 = vpop.permute.xlu0 %2505
    %v2508 = vsel %vm284, %v2506, 0
    %2510 = vmatprep.subr.bf16.mxu0 0
    %2511 = vmatpush1.bf16.msra.mxu0 %v1961
    %2512 = vmatprep.subr.bf16.mxu0 0
    %2513 = vmatpush1.bf16.msra.mxu0 %v1962
    %2514 = vmatprep.subr.bf16.mxu0 0
    %2515 = vmatpush1.bf16.msra.mxu0 0
    %2516 = vmatprep.subr.bf16.mxu0 0
    %2517 = vmatpush1.bf16.msra.mxu0 0
    %2518 = vmatprep.subr.bf16.mxu0 0
    %2519 = vmatpush1.bf16.msra.mxu0 0
    %2520 = vmatprep.subr.bf16.mxu0 0
    %2521 = vmatpush1.bf16.msra.mxu0 0
    %2522 = vmatprep.subr.bf16.mxu0 0
    %2523 = vmatpush1.bf16.msra.mxu0 0
    %2524 = vmatprep.subr.bf16.mxu0 0
    %2525 = vmatpush1.bf16.msra.mxu0 0
    %2526 = vmatprep.subr.bf16.mxu0 0
    %2527 = vmatpush1.bf16.msra.mxu0 0
    %2528 = vmatprep.subr.bf16.mxu0 0
    %2529 = vmatpush1.bf16.msra.mxu0 0
    %2530 = vmatprep.subr.bf16.mxu0 0
    %2531 = vmatpush1.bf16.msra.mxu0 0
    %2532 = vmatprep.subr.bf16.mxu0 0
    %2533 = vmatpush1.bf16.msra.mxu0 0
    %2534 = vmatprep.subr.bf16.mxu0 0
    %2535 = vmatpush1.bf16.msra.mxu0 0
    %2536 = vmatprep.subr.bf16.mxu0 0
    %2537 = vmatpush1.bf16.msra.mxu0 0
    %2538 = vmatprep.subr.bf16.mxu0 0
    %2539 = vmatpush1.bf16.msra.mxu0 0
    %2540 = vmatprep.subr.bf16.mxu0 0
    %2541 = vmatpush1.bf16.msra.mxu0 0
    %2542 = vmatprep.mubr.bf16.mxu0 0
    %2543 = vmatmul.mubr.bf16.gmra.mrb[0].mxu0 %v2508
    %v2544 = vpop.f32.mrb[0].mxu0
    %v2545 = vadd.f32 0.0, %v2544
    %v2546 = vpop.f32.mrb[0].mxu0
    %v2547 = vpop.f32.mrb[0].mxu0
    %v2548 = vpop.f32.mrb[0].mxu0
    %2549 = vdwg.mxu0
    %v2550 = vadd.f32 %v2502, %v2545
    %v2551 = vxor.u32 %v2550, 2147483648
    %v2552 = vmul.f32 %v2551, 1.442695
    %v2553 = vpow.pop %v2552
    %v2554 = vadd.f32 %v2553, 1.0
    %v2555 = vrcp.pop %v2554
    %v2556 = vmul.f32 1.0, %v2555
    %v2557 = vadd.f32 %v2545, %v2070
    %2559 = vrot.lane.b32.xlu0 %v2557, 64
    %v2560 = vpop.permute.xlu0 %2559
    %v2562 = vmul.f32 %v2556, %v2560
    %2564 = vrot.lane.b32.xlu0 %v2562, 64
    %v2565 = vpop.permute.xlu0 %2564
    %v2567 = vadd.f32 %v2502, %v2565
    %v2568 = vtanh.pop %v2567
    %v2569 = vsub.f32 1.0, %v2556
    %2571 = vrot.lane.b32.xlu0 %v2568, 96
    %v2572 = vpop.permute.xlu0 %2571
    %v2574 = vmul.f32 %v2569, %v2572
    %v2575 = vmul.f32 %v2556, %v2501
    %v2576 = vadd.f32 %v2574, %v2575
    %v2577 = vld [vmem:[#allocation4 + $0xe] sm:$0x3]
    %v2578 = vpack.c.bf16 %v2576, %v2576
    %2580 = vrot.lane.b32.xlu0 %v2578, 96
    %v2581 = vpop.permute.xlu0 %2580
    %v2583 = vsel %vm284, %v2581, 0
    %2585 = vmatprep.subr.bf16.mxu0 0
    %2586 = vmatpush1.bf16.msra.mxu0 %v1961
    %2587 = vmatprep.subr.bf16.mxu0 0
    %2588 = vmatpush1.bf16.msra.mxu0 %v1962
    %2589 = vmatprep.subr.bf16.mxu0 0
    %2590 = vmatpush1.bf16.msra.mxu0 0
    %2591 = vmatprep.subr.bf16.mxu0 0
    %2592 = vmatpush1.bf16.msra.mxu0 0
    %2593 = vmatprep.subr.bf16.mxu0 0
    %2594 = vmatpush1.bf16.msra.mxu0 0
    %2595 = vmatprep.subr.bf16.mxu0 0
    %2596 = vmatpush1.bf16.msra.mxu0 0
    %2597 = vmatprep.subr.bf16.mxu0 0
    %2598 = vmatpush1.bf16.msra.mxu0 0
    %2599 = vmatprep.subr.bf16.mxu0 0
    %2600 = vmatpush1.bf16.msra.mxu0 0
    %2601 = vmatprep.subr.bf16.mxu0 0
    %2602 = vmatpush1.bf16.msra.mxu0 0
    %2603 = vmatprep.subr.bf16.mxu0 0
    %2604 = vmatpush1.bf16.msra.mxu0 0
    %2605 = vmatprep.subr.bf16.mxu0 0
    %2606 = vmatpush1.bf16.msra.mxu0 0
    %2607 = vmatprep.subr.bf16.mxu0 0
    %2608 = vmatpush1.bf16.msra.mxu0 0
    %2609 = vmatprep.subr.bf16.mxu0 0
    %2610 = vmatpush1.bf16.msra.mxu0 0
    %2611 = vmatprep.subr.bf16.mxu0 0
    %2612 = vmatpush1.bf16.msra.mxu0 0
    %2613 = vmatprep.subr.bf16.mxu0 0
    %2614 = vmatpush1.bf16.msra.mxu0 0
    %2615 = vmatprep.subr.bf16.mxu0 0
    %2616 = vmatpush1.bf16.msra.mxu0 0
    %2617 = vmatprep.mubr.bf16.mxu0 0
    %2618 = vmatmul.mubr.bf16.gmra.mrb[0].mxu0 %v2583
    %v2619 = vpop.f32.mrb[0].mxu0
    %v2620 = vadd.f32 0.0, %v2619
    %v2621 = vpop.f32.mrb[0].mxu0
    %v2622 = vpop.f32.mrb[0].mxu0
    %v2623 = vpop.f32.mrb[0].mxu0
    %2624 = vdwg.mxu0
    %v2625 = vadd.f32 %v2577, %v2620
    %v2626 = vxor.u32 %v2625, 2147483648
    %v2627 = vmul.f32 %v2626, 1.442695
    %v2628 = vpow.pop %v2627
    %v2629 = vadd.f32 %v2628, 1.0
    %v2630 = vrcp.pop %v2629
    %v2631 = vmul.f32 1.0, %v2630
    %v2632 = vadd.f32 %v2620, %v2070
    %2634 = vrot.lane.b32.xlu0 %v2632, 64
    %v2635 = vpop.permute.xlu0 %2634
    %v2637 = vmul.f32 %v2631, %v2635
    %2639 = vrot.lane.b32.xlu0 %v2637, 64
    %v2640 = vpop.permute.xlu0 %2639
    %v2642 = vadd.f32 %v2577, %v2640
    %v2643 = vtanh.pop %v2642
    %v2644 = vsub.f32 1.0, %v2631
    %2646 = vrot.lane.b32.xlu0 %v2643, 96
    %v2647 = vpop.permute.xlu0 %2646
    %v2649 = vmul.f32 %v2644, %v2647
    %v2650 = vmul.f32 %v2631, %v2576
    %v2651 = vadd.f32 %v2649, %v2650
    %2653 = vrot.lane.b32.xlu0 %v2126, 96
    %v2654 = vpop.permute.xlu0 %2653
    %s2656 = scalar_lea.vmem %s9, 2
    %2657 = vst.msk [vmem:[%s2656] sm:$0x3] %vm454, %v2654
    %2659 = vrot.lane.b32.xlu0 %v2651, 96
    %v2660 = vpop.permute.xlu0 %2659
    %2662 = vst.msk [vmem:[%s9] sm:$0x3] %vm454, %v2660
    // Predicated region
    $region50: #{bilstm_text_embedding_forward.1} parent=1 // pred_check
      _
    $region51: #{bilstm_text_embedding_forward.1} parent=1 // pred_check_branch
      %2664 = sbr.rel (0) target = $region53
    $region52: #{bilstm_text_embedding_forward.1} parent=1 // pred_region
      _
    $region53: #{bilstm_text_embedding_forward.1} parent=1 // pred_fallthru
      _
    // Predicated region
    $region54: #{bilstm_text_embedding_forward.1} parent=1 // pred_check
      _
    $region55: #{bilstm_text_embedding_forward.1} parent=1 // pred_check_branch
      %2666 = sbr.rel (0) target = $region57
    $region56: #{bilstm_text_embedding_forward.1} parent=1 // pred_region
      _
    $region57: #{bilstm_text_embedding_forward.1} parent=1 // pred_fallthru
      _
    %2667 = vsyncpa [#allocation9], 1
    %2668 = vsyncpa [#allocation11], 1

</llo_original>
